<compile_context>
chip_gen: v5e
topology: v5e:2x2
jax: 0.10.0
libtpu: 0.0.40
codegen_flags: <defaults>
</compile_context>

<pallas_src>
import functools

import jax
import jax.numpy as jnp
from jax.experimental import pallas as pl
from jax.experimental.pallas import tpu as pltpu

LANES = 128


def _round_up(n, m):
    return ((n + m - 1) // m) * m


def _pick_block_b(B):
    # Largest divisor of B that still gives >= 2 grid steps (so the batch axis
    # can shard across v7x's two TensorCores); whole batch if B is tiny.
    if B <= 8:
        return B
    for cand in (512, 256, 128, 64, 32, 16, 8):
        if cand < B and B % cand == 0:
            return cand
    return B


# ----------------------------------------------------------------------------
# Fused kernel
# ----------------------------------------------------------------------------
def _fried_kernel(x_ref, m1_ref, b1_ref, w2_ref, b2_ref, w3_ref, b3_ref,
                  w4_ref, b4_ref, w5_ref, b5_ref, w6_ref, b6_ref,
                  o_ref, h_ref, flat_ref, *, periodic):
    Bb, N = x_ref.shape
    Cp = w5_ref.shape[0]                      # padded channel count (128)
    f32, bf16 = jnp.float32, jnp.bfloat16

    # ---- conv1 + relu: one MXU matmul against the banded weight m1 ---------
    # m1[n', n*Cp + c] already encodes the 3-tap stencil + padding mode.
    x = x_ref[...].astype(bf16)                                    # (Bb, N)
    f1 = jnp.dot(x, m1_ref[...], preferred_element_type=f32) + b1_ref[...]
    f1 = jnp.maximum(f1, 0.0)                                      # (Bb, N*Cp)

    if not periodic:
        # Zero halo rows once; rows 1..N are overwritten every layer.
        zrow = jnp.zeros((Bb, Cp), f32)
        h_ref[:, 0, :] = zrow
        h_ref[:, N + 1, :] = zrow

    for n in range(N):                                             # un-flatten
        h_ref[:, n + 1, :] = f1[:, n * Cp:(n + 1) * Cp]
    if periodic:
        h_ref[:, 0, :] = f1[:, (N - 1) * Cp:N * Cp]
        h_ref[:, N + 1, :] = f1[:, 0:Cp]

    # ---- conv2 / conv3 + relu: three per-tap (Cp, Cp) matmuls, no im2col ----
    def conv_relu(w_ref, b_ref):
        prev = h_ref[:, 0:N, :].reshape(Bb * N, Cp).astype(bf16)
        cur = h_ref[:, 1:N + 1, :].reshape(Bb * N, Cp).astype(bf16)
        nxt = h_ref[:, 2:N + 2, :].reshape(Bb * N, Cp).astype(bf16)
        y = (jnp.dot(prev, w_ref[0], preferred_element_type=f32)
             + jnp.dot(cur, w_ref[1], preferred_element_type=f32)
             + jnp.dot(nxt, w_ref[2], preferred_element_type=f32)
             + b_ref[...])
        return jnp.maximum(y, 0.0).reshape(Bb, N, Cp)              # f32

    h2 = conv_relu(w2_ref, b2_ref)
    for n in range(N):
        h_ref[:, n + 1, :] = h2[:, n, :]
    if periodic:
        h_ref[:, 0, :] = h2[:, N - 1, :]
        h_ref[:, N + 1, :] = h2[:, 0, :]

    h3 = conv_relu(w3_ref, b3_ref)                                 # (Bb, N, Cp)

    # ---- fc4: flatten once into VMEM, then a single K = N*Cp matmul ---------
    for n in range(N):
        flat_ref[:, n * Cp:(n + 1) * Cp] = h3[:, n, :].astype(bf16)
    f4 = jnp.dot(flat_ref[...], w4_ref[...], preferred_element_type=f32)
    f4 = jnp.maximum(f4 + b4_ref[...], 0.0)                        # (Bb, Cp)

    # ---- fc5 -> relu -> fc6 (output padded to 128 lanes) --------------------
    f5 = jnp.maximum(
        jnp.dot(f4.astype(bf16), w5_ref[...], preferred_element_type=f32)
        + b5_ref[...], 0.0)
    o_ref[...] = (jnp.dot(f5.astype(bf16), w6_ref[...],
                          preferred_element_type=f32) + b6_ref[...])


# ----------------------------------------------------------------------------
# Parameter prep: PyTorch layouts -> lane-dense bf16 kernel layouts (once)
# ----------------------------------------------------------------------------
def prepare_params(params, N, periodic):
    C = params["w5"].shape[0]                 # 100
    K = params["w6"].shape[0]                 # K_total
    Cp = _round_up(C, LANES)                  # 128
    Kp = _round_up(K, LANES)                  # 128
    pc = Cp - C

    def bias(b, width):                       # (len,) -> (1, width) f32
        return jnp.pad(b.astype(jnp.float32), (0, width - b.shape[0])).reshape(1, width)

    def conv_taps(w):                         # torch (Cout, Cin, 3) -> (3, Cp, Cp)
        cout, cin, _ = w.shape
        t = jnp.transpose(w, (2, 1, 0))       # t[k, ci, co] = w[co, ci, k]
        t = jnp.pad(t, ((0, 0), (0, Cp - cin), (0, Cp - cout)))
        return t.astype(jnp.bfloat16)

    # conv1 as a banded (N, N*Cp) matrix; padding mode (zeros/circular) baked in.
    w1 = jnp.pad(params["w1"][:, 0, :], ((0, pc), (0, 0)))         # (Cp, 3)
    m1 = jnp.zeros((N, N, Cp), jnp.float32)
    for n in range(N):
        for tap, dn in ((0, -1), (1, 0), (2, 1)):
            src = n + dn
            if periodic:
                src %= N
            elif src < 0 or src >= N:
                continue
            m1 = m1.at[src, n, :].add(w1[:, tap])
    m1 = m1.reshape(N, N * Cp).astype(jnp.bfloat16)
    b1_flat = jnp.tile(bias(params["b1"], Cp), (1, N))             # (1, N*Cp)

    # fc4: torch flattens (B, C, N) channel-major (col = c*N + n); the kernel
    # flattens (B, N, Cp) position-major (col = n*Cp + c) -> reorder once here.
    w4 = params["w4"].reshape(C, C, N)                             # (o, c, n)
    w4 = jnp.transpose(w4, (2, 1, 0))                              # (n, c, o)
    w4 = jnp.pad(w4, ((0, 0), (0, pc), (0, pc)))                   # (N, Cp, Cp)
    w4 = w4.reshape(N * Cp, Cp).astype(jnp.bfloat16)

    return {
        "m1": m1, "b1": b1_flat,
        "w2": conv_taps(params["w2"]), "b2": bias(params["b2"], Cp),
        "w3": conv_taps(params["w3"]), "b3": bias(params["b3"], Cp),
        "w4": w4, "b4": bias(params["b4"], Cp),
        "w5": jnp.pad(params["w5"].T, ((0, pc), (0, pc))).astype(jnp.bfloat16),
        "b5": bias(params["b5"], Cp),
        "w6": jnp.pad(params["w6"].T, ((0, pc), (0, Kp - K))).astype(jnp.bfloat16),
        "b6": bias(params["b6"], Kp),
    }


# ----------------------------------------------------------------------------
# Forward wrapper
# ----------------------------------------------------------------------------
def fried_conv_forward(x, prepped, *, k_total, periodic=False, sort_tk=True):
    B, N = x.shape
    Cp = prepped["w5"].shape[0]
    Kp = prepped["w6"].shape[-1]
    block_b = _pick_block_b(B)
    grid = (B // block_b,)                    # _pick_block_b returns a divisor
    x = x.astype(jnp.float32)

    names = ["m1", "b1", "w2", "b2", "w3", "b3", "w4", "b4", "w5", "b5", "w6", "b6"]
    weights = [prepped[n] for n in names]

    def full_spec(arr):
        nd = arr.ndim
        return pl.BlockSpec(arr.shape, lambda i, _nd=nd: (0,) * _nd)

    in_specs = ([pl.BlockSpec((block_b, N), lambda i: (i, 0))]
                + [full_spec(w) for w in weights])
    out_specs = pl.BlockSpec((block_b, Kp), lambda i: (i, 0))

    flops = 2 * B * (N * N * Cp                 # conv1 banded matmul
                     + 2 * N * 3 * Cp * Cp      # conv2, conv3
                     + N * Cp * Cp              # fc4
                     + Cp * Cp + Cp * Kp)       # fc5, fc6
    bytes_accessed = (4 * x.size + 4 * B * Kp
                      + sum(int(w.size) * w.dtype.itemsize for w in weights))

    out = pl.pallas_call(
        functools.partial(_fried_kernel, periodic=periodic),
        out_shape=jax.ShapeDtypeStruct((B, Kp), jnp.float32),
        grid=grid,
        in_specs=in_specs,
        out_specs=out_specs,
        scratch_shapes=[pltpu.VMEM((block_b, N + 2, Cp), jnp.float32),   # halo
                        pltpu.VMEM((block_b, N * Cp), jnp.bfloat16)],    # fc4 flat
        compiler_params=pltpu.CompilerParams(
            dimension_semantics=("parallel",),
            vmem_limit_bytes=32 * 1024 * 1024),
        cost_estimate=pl.CostEstimate(flops=flops, transcendentals=0,
                                      bytes_accessed=bytes_accessed),
    )(x, *weights)

    out = out[:, :k_total]                      # drop lane padding (Kp -> K)
    # TODO(synk): per-row sort of the (B, K_total) head stays as XLA glue
    # (no Pallas sort primitive; negligible at this size).
    if sort_tk:
        out = jnp.sort(out, axis=-1)
    return out


# ----------------------------------------------------------------------------
# Synthetic params in PyTorch layouts + pure-JAX reference for validation
# ----------------------------------------------------------------------------
def init_params(key, N, K_total, C=100):
    ks = jax.random.split(key, 12)

    def u(k, shape, fan_in):
        bound = 1.0 / jnp.sqrt(float(fan_in))
        return jax.random.uniform(k, shape, jnp.float32, -bound, bound)

    return {
        "w1": u(ks[0], (C, 1, 3), 3),        "b1": u(ks[1], (C,), 3),
        "w2": u(ks[2], (C, C, 3), 3 * C),    "b2": u(ks[3], (C,), 3 * C),
        "w3": u(ks[4], (C, C, 3), 3 * C),    "b3": u(ks[5], (C,), 3 * C),
        "w4": u(ks[6], (C, N * C), N * C),   "b4": u(ks[7], (C,), N * C),
        "w5": u(ks[8], (C, C), C),           "b5": u(ks[9], (C,), C),
        "w6": u(ks[10], (K_total, C), C),    "b6": u(ks[11], (K_total,), C),
    }


def reference_forward(x, params, periodic=False, sort_tk=True):
    B, N = x.shape
    mode = "wrap" if periodic else "constant"
    h = x[:, None, :]                                        # (B, 1, N)
    for wn, bn in (("w1", "b1"), ("w2", "b2"), ("w3", "b3")):
        hp = jnp.pad(h, ((0, 0), (0, 0), (1, 1)), mode=mode)
        h = jax.lax.conv_general_dilated(
            hp, params[wn], (1,), "VALID",
            dimension_numbers=("NCH", "OIH", "NCH"))
        h = jnp.maximum(h + params[bn][None, :, None], 0.0)
    f = h.reshape(B, -1)                                     # (B, C*N), c-major
    f4 = jnp.maximum(f @ params["w4"].T + params["b4"], 0.0)
    f5 = jnp.maximum(f4 @ params["w5"].T + params["b5"], 0.0)
    out = f5 @ params["w6"].T + params["b6"]
    return jnp.sort(out, axis=-1) if sort_tk else out


if __name__ == "__main__":
    B, N, K_total, C = 2, 16, 8, 100   # prms['N']=16, prms['K_total']=8
    key = jax.random.PRNGKey(0)
    kx, kp = jax.random.split(key)
    x = jax.random.normal(kx, (B, N), dtype=jnp.float32)
    params = init_params(kp, N, K_total, C)
    prepped = prepare_params(params, N, periodic=False)

    fwd = jax.jit(functools.partial(fried_conv_forward, k_total=K_total,
                                    periodic=False, sort_tk=True))
    out = jax.block_until_ready(fwd(x, prepped))
    assert out.shape == (B, K_total) and out.dtype == jnp.float32

    ref = reference_forward(x, params, periodic=False, sort_tk=True)
    rel_err = float(jnp.max(jnp.abs(out - ref)) / (jnp.max(jnp.abs(ref)) + 1e-6))
    assert rel_err < 2e-2, f"mismatch vs reference: rel err {rel_err}"

    print("KERNEL_OK")
</pallas_src>

<mosaic_0001>
module attributes {stable_mosaic.version = 11 : i64} {
  func.func @_fried_kernel(%arg0: i32, %arg1: memref<2x16xf32, #tpu.memory_space<vmem>>, %arg2: memref<16x2048xbf16, #tpu.memory_space<vmem>>, %arg3: memref<1x2048xf32, #tpu.memory_space<vmem>>, %arg4: memref<3x128x128xbf16, #tpu.memory_space<vmem>>, %arg5: memref<1x128xf32, #tpu.memory_space<vmem>>, %arg6: memref<3x128x128xbf16, #tpu.memory_space<vmem>>, %arg7: memref<1x128xf32, #tpu.memory_space<vmem>>, %arg8: memref<2048x128xbf16, #tpu.memory_space<vmem>>, %arg9: memref<1x128xf32, #tpu.memory_space<vmem>>, %arg10: memref<128x128xbf16, #tpu.memory_space<vmem>>, %arg11: memref<1x128xf32, #tpu.memory_space<vmem>>, %arg12: memref<128x128xbf16, #tpu.memory_space<vmem>>, %arg13: memref<1x128xf32, #tpu.memory_space<vmem>>, %arg14: memref<2x128xf32, #tpu.memory_space<vmem>>, %arg15: memref<2x18x128xf32, #tpu.memory_space<vmem>>, %arg16: memref<2x2048xbf16, #tpu.memory_space<vmem>>) attributes {dimension_semantics = [#tpu.dimension_semantics<parallel>], iteration_bounds = array<i64: 1>, scalar_prefetch = 0 : i64, scratch_operands = 2 : i64, tpu.core_type = #tpu.core_type<tc>, window_params = [{transform_indices = @transform_0, window_bounds = array<i64: 2, 16>}, {pipeline_mode = #tpu.pipeline_mode<synchronous>, transform_indices = @transform_1, window_bounds = array<i64: 16, 2048>}, {pipeline_mode = #tpu.pipeline_mode<synchronous>, transform_indices = @transform_2, window_bounds = array<i64: 1, 2048>}, {pipeline_mode = #tpu.pipeline_mode<synchronous>, transform_indices = @transform_3, window_bounds = array<i64: 3, 128, 128>}, {pipeline_mode = #tpu.pipeline_mode<synchronous>, transform_indices = @transform_4, window_bounds = array<i64: 1, 128>}, {pipeline_mode = #tpu.pipeline_mode<synchronous>, transform_indices = @transform_5, window_bounds = array<i64: 3, 128, 128>}, {pipeline_mode = #tpu.pipeline_mode<synchronous>, transform_indices = @transform_6, window_bounds = array<i64: 1, 128>}, {pipeline_mode = #tpu.pipeline_mode<synchronous>, transform_indices = @transform_7, window_bounds = array<i64: 2048, 128>}, {pipeline_mode = #tpu.pipeline_mode<synchronous>, transform_indices = @transform_8, window_bounds = array<i64: 1, 128>}, {pipeline_mode = #tpu.pipeline_mode<synchronous>, transform_indices = @transform_9, window_bounds = array<i64: 128, 128>}, {pipeline_mode = #tpu.pipeline_mode<synchronous>, transform_indices = @transform_10, window_bounds = array<i64: 1, 128>}, {pipeline_mode = #tpu.pipeline_mode<synchronous>, transform_indices = @transform_11, window_bounds = array<i64: 128, 128>}, {pipeline_mode = #tpu.pipeline_mode<synchronous>, transform_indices = @transform_12, window_bounds = array<i64: 1, 128>}, {transform_indices = @transform_13, window_bounds = array<i64: 2, 128>}]} {
    %c0 = arith.constant 0 : index
    %c0_0 = arith.constant 0 : index
    %0 = vector.load %arg1[%c0, %c0_0] : memref<2x16xf32, #tpu.memory_space<vmem>>, vector<2x16xf32>
    %1 = arith.truncf %0 : vector<2x16xf32> to vector<2x16xbf16>
    %c0_1 = arith.constant 0 : index
    %c0_2 = arith.constant 0 : index
    %2 = vector.load %arg2[%c0_1, %c0_2] : memref<16x2048xbf16, #tpu.memory_space<vmem>>, vector<16x2048xbf16>
    %cst = arith.constant dense<0.000000e+00> : vector<2x2048xf32>
    %3 = tpu.matmul %1, %2, %cst {dimension_numbers = #tpu.dot_dimension_numbers<[1], [0], [0], [1], [0, 0, 1, 1], [], []>} : vector<2x16xbf16>, vector<16x2048xbf16>, vector<2x2048xf32> -> vector<2x2048xf32>
    %c0_3 = arith.constant 0 : index
    %c0_4 = arith.constant 0 : index
    %4 = vector.load %arg3[%c0_3, %c0_4] : memref<1x2048xf32, #tpu.memory_space<vmem>>, vector<1x2048xf32>
    %5 = vector.broadcast %4 : vector<1x2048xf32> to vector<2x2048xf32>
    %6 = arith.addf %3, %5 : vector<2x2048xf32>
    %cst_5 = arith.constant 0.000000e+00 : f32
    %7 = vector.broadcast %cst_5 : f32 to vector<2x2048xf32>
    %8 = arith.maximumf %6, %7 : vector<2x2048xf32>
    %cst_6 = arith.constant 0.000000e+00 : f32
    %9 = vector.broadcast %cst_6 : f32 to vector<2x128xf32>
    %c0_7 = arith.constant 0 : index
    %c0_8 = arith.constant 0 : index
    %c0_9 = arith.constant 0 : index
    %10 = vector.load %arg15[%c0_7, %c0_8, %c0_9] : memref<2x18x128xf32, #tpu.memory_space<vmem>>, vector<2x1x128xf32>
    %11 = vector.shape_cast %10 : vector<2x1x128xf32> to vector<2x128xf32>
    %12 = vector.shape_cast %9 : vector<2x128xf32> to vector<2x1x128xf32>
    tpu.vector_store %arg15[%c0_7, %c0_8, %c0_9], %12 {strides = array<i32>} : memref<2x18x128xf32, #tpu.memory_space<vmem>>, vector<2x1x128xf32>,
    %c0_10 = arith.constant 0 : index
    %c17 = arith.constant 17 : index
    %c0_11 = arith.constant 0 : index
    %13 = vector.load %arg15[%c0_10, %c17, %c0_11] : memref<2x18x128xf32, #tpu.memory_space<vmem>>, vector<2x1x128xf32>
    %14 = vector.shape_cast %13 : vector<2x1x128xf32> to vector<2x128xf32>
    %15 = vector.shape_cast %9 : vector<2x128xf32> to vector<2x1x128xf32>
    tpu.vector_store %arg15[%c0_10, %c17, %c0_11], %15 {strides = array<i32>} : memref<2x18x128xf32, #tpu.memory_space<vmem>>, vector<2x1x128xf32>,
    %16 = vector.extract_strided_slice %8 {offsets = [0, 0], sizes = [2, 128], strides = [1, 1]} : vector<2x2048xf32> to vector<2x128xf32>
    %c0_12 = arith.constant 0 : index
    %c1 = arith.constant 1 : index
    %c0_13 = arith.constant 0 : index
    %17 = vector.load %arg15[%c0_12, %c1, %c0_13] : memref<2x18x128xf32, #tpu.memory_space<vmem>>, vector<2x1x128xf32>
    %18 = vector.shape_cast %17 : vector<2x1x128xf32> to vector<2x128xf32>
    %19 = vector.shape_cast %16 : vector<2x128xf32> to vector<2x1x128xf32>
    tpu.vector_store %arg15[%c0_12, %c1, %c0_13], %19 {strides = array<i32>} : memref<2x18x128xf32, #tpu.memory_space<vmem>>, vector<2x1x128xf32>,
    %20 = vector.extract_strided_slice %8 {offsets = [0, 128], sizes = [2, 128], strides = [1, 1]} : vector<2x2048xf32> to vector<2x128xf32>
    %c0_14 = arith.constant 0 : index
    %c2 = arith.constant 2 : index
    %c0_15 = arith.constant 0 : index
    %21 = vector.load %arg15[%c0_14, %c2, %c0_15] : memref<2x18x128xf32, #tpu.memory_space<vmem>>, vector<2x1x128xf32>
    %22 = vector.shape_cast %21 : vector<2x1x128xf32> to vector<2x128xf32>
    %23 = vector.shape_cast %20 : vector<2x128xf32> to vector<2x1x128xf32>
    tpu.vector_store %arg15[%c0_14, %c2, %c0_15], %23 {strides = array<i32>} : memref<2x18x128xf32, #tpu.memory_space<vmem>>, vector<2x1x128xf32>,
    %24 = vector.extract_strided_slice %8 {offsets = [0, 256], sizes = [2, 128], strides = [1, 1]} : vector<2x2048xf32> to vector<2x128xf32>
    %c0_16 = arith.constant 0 : index
    %c3 = arith.constant 3 : index
    %c0_17 = arith.constant 0 : index
    %25 = vector.load %arg15[%c0_16, %c3, %c0_17] : memref<2x18x128xf32, #tpu.memory_space<vmem>>, vector<2x1x128xf32>
    %26 = vector.shape_cast %25 : vector<2x1x128xf32> to vector<2x128xf32>
    %27 = vector.shape_cast %24 : vector<2x128xf32> to vector<2x1x128xf32>
    tpu.vector_store %arg15[%c0_16, %c3, %c0_17], %27 {strides = array<i32>} : memref<2x18x128xf32, #tpu.memory_space<vmem>>, vector<2x1x128xf32>,
    %28 = vector.extract_strided_slice %8 {offsets = [0, 384], sizes = [2, 128], strides = [1, 1]} : vector<2x2048xf32> to vector<2x128xf32>
    %c0_18 = arith.constant 0 : index
    %c4 = arith.constant 4 : index
    %c0_19 = arith.constant 0 : index
    %29 = vector.load %arg15[%c0_18, %c4, %c0_19] : memref<2x18x128xf32, #tpu.memory_space<vmem>>, vector<2x1x128xf32>
    %30 = vector.shape_cast %29 : vector<2x1x128xf32> to vector<2x128xf32>
    %31 = vector.shape_cast %28 : vector<2x128xf32> to vector<2x1x128xf32>
    tpu.vector_store %arg15[%c0_18, %c4, %c0_19], %31 {strides = array<i32>} : memref<2x18x128xf32, #tpu.memory_space<vmem>>, vector<2x1x128xf32>,
    %32 = vector.extract_strided_slice %8 {offsets = [0, 512], sizes = [2, 128], strides = [1, 1]} : vector<2x2048xf32> to vector<2x128xf32>
    %c0_20 = arith.constant 0 : index
    %c5 = arith.constant 5 : index
    %c0_21 = arith.constant 0 : index
    %33 = vector.load %arg15[%c0_20, %c5, %c0_21] : memref<2x18x128xf32, #tpu.memory_space<vmem>>, vector<2x1x128xf32>
    %34 = vector.shape_cast %33 : vector<2x1x128xf32> to vector<2x128xf32>
    %35 = vector.shape_cast %32 : vector<2x128xf32> to vector<2x1x128xf32>
    tpu.vector_store %arg15[%c0_20, %c5, %c0_21], %35 {strides = array<i32>} : memref<2x18x128xf32, #tpu.memory_space<vmem>>, vector<2x1x128xf32>,
    %36 = vector.extract_strided_slice %8 {offsets = [0, 640], sizes = [2, 128], strides = [1, 1]} : vector<2x2048xf32> to vector<2x128xf32>
    %c0_22 = arith.constant 0 : index
    %c6 = arith.constant 6 : index
    %c0_23 = arith.constant 0 : index
    %37 = vector.load %arg15[%c0_22, %c6, %c0_23] : memref<2x18x128xf32, #tpu.memory_space<vmem>>, vector<2x1x128xf32>
    %38 = vector.shape_cast %37 : vector<2x1x128xf32> to vector<2x128xf32>
    %39 = vector.shape_cast %36 : vector<2x128xf32> to vector<2x1x128xf32>
    tpu.vector_store %arg15[%c0_22, %c6, %c0_23], %39 {strides = array<i32>} : memref<2x18x128xf32, #tpu.memory_space<vmem>>, vector<2x1x128xf32>,
    %40 = vector.extract_strided_slice %8 {offsets = [0, 768], sizes = [2, 128], strides = [1, 1]} : vector<2x2048xf32> to vector<2x128xf32>
    %c0_24 = arith.constant 0 : index
    %c7 = arith.constant 7 : index
    %c0_25 = arith.constant 0 : index
    %41 = vector.load %arg15[%c0_24, %c7, %c0_25] : memref<2x18x128xf32, #tpu.memory_space<vmem>>, vector<2x1x128xf32>
    %42 = vector.shape_cast %41 : vector<2x1x128xf32> to vector<2x128xf32>
    %43 = vector.shape_cast %40 : vector<2x128xf32> to vector<2x1x128xf32>
    tpu.vector_store %arg15[%c0_24, %c7, %c0_25], %43 {strides = array<i32>} : memref<2x18x128xf32, #tpu.memory_space<vmem>>, vector<2x1x128xf32>,
    %44 = vector.extract_strided_slice %8 {offsets = [0, 896], sizes = [2, 128], strides = [1, 1]} : vector<2x2048xf32> to vector<2x128xf32>
    %c0_26 = arith.constant 0 : index
    %c8 = arith.constant 8 : index
    %c0_27 = arith.constant 0 : index
    %45 = vector.load %arg15[%c0_26, %c8, %c0_27] : memref<2x18x128xf32, #tpu.memory_space<vmem>>, vector<2x1x128xf32>
    %46 = vector.shape_cast %45 : vector<2x1x128xf32> to vector<2x128xf32>
    %47 = vector.shape_cast %44 : vector<2x128xf32> to vector<2x1x128xf32>
    tpu.vector_store %arg15[%c0_26, %c8, %c0_27], %47 {strides = array<i32>} : memref<2x18x128xf32, #tpu.memory_space<vmem>>, vector<2x1x128xf32>,
    %48 = vector.extract_strided_slice %8 {offsets = [0, 1024], sizes = [2, 128], strides = [1, 1]} : vector<2x2048xf32> to vector<2x128xf32>
    %c0_28 = arith.constant 0 : index
    %c9 = arith.constant 9 : index
    %c0_29 = arith.constant 0 : index
    %49 = vector.load %arg15[%c0_28, %c9, %c0_29] : memref<2x18x128xf32, #tpu.memory_space<vmem>>, vector<2x1x128xf32>
    %50 = vector.shape_cast %49 : vector<2x1x128xf32> to vector<2x128xf32>
    %51 = vector.shape_cast %48 : vector<2x128xf32> to vector<2x1x128xf32>
    tpu.vector_store %arg15[%c0_28, %c9, %c0_29], %51 {strides = array<i32>} : memref<2x18x128xf32, #tpu.memory_space<vmem>>, vector<2x1x128xf32>,
    %52 = vector.extract_strided_slice %8 {offsets = [0, 1152], sizes = [2, 128], strides = [1, 1]} : vector<2x2048xf32> to vector<2x128xf32>
    %c0_30 = arith.constant 0 : index
    %c10 = arith.constant 10 : index
    %c0_31 = arith.constant 0 : index
    %53 = vector.load %arg15[%c0_30, %c10, %c0_31] : memref<2x18x128xf32, #tpu.memory_space<vmem>>, vector<2x1x128xf32>
    %54 = vector.shape_cast %53 : vector<2x1x128xf32> to vector<2x128xf32>
    %55 = vector.shape_cast %52 : vector<2x128xf32> to vector<2x1x128xf32>
    tpu.vector_store %arg15[%c0_30, %c10, %c0_31], %55 {strides = array<i32>} : memref<2x18x128xf32, #tpu.memory_space<vmem>>, vector<2x1x128xf32>,
    %56 = vector.extract_strided_slice %8 {offsets = [0, 1280], sizes = [2, 128], strides = [1, 1]} : vector<2x2048xf32> to vector<2x128xf32>
    %c0_32 = arith.constant 0 : index
    %c11 = arith.constant 11 : index
    %c0_33 = arith.constant 0 : index
    %57 = vector.load %arg15[%c0_32, %c11, %c0_33] : memref<2x18x128xf32, #tpu.memory_space<vmem>>, vector<2x1x128xf32>
    %58 = vector.shape_cast %57 : vector<2x1x128xf32> to vector<2x128xf32>
    %59 = vector.shape_cast %56 : vector<2x128xf32> to vector<2x1x128xf32>
    tpu.vector_store %arg15[%c0_32, %c11, %c0_33], %59 {strides = array<i32>} : memref<2x18x128xf32, #tpu.memory_space<vmem>>, vector<2x1x128xf32>,
    %60 = vector.extract_strided_slice %8 {offsets = [0, 1408], sizes = [2, 128], strides = [1, 1]} : vector<2x2048xf32> to vector<2x128xf32>
    %c0_34 = arith.constant 0 : index
    %c12 = arith.constant 12 : index
    %c0_35 = arith.constant 0 : index
    %61 = vector.load %arg15[%c0_34, %c12, %c0_35] : memref<2x18x128xf32, #tpu.memory_space<vmem>>, vector<2x1x128xf32>
    %62 = vector.shape_cast %61 : vector<2x1x128xf32> to vector<2x128xf32>
    %63 = vector.shape_cast %60 : vector<2x128xf32> to vector<2x1x128xf32>
    tpu.vector_store %arg15[%c0_34, %c12, %c0_35], %63 {strides = array<i32>} : memref<2x18x128xf32, #tpu.memory_space<vmem>>, vector<2x1x128xf32>,
    %64 = vector.extract_strided_slice %8 {offsets = [0, 1536], sizes = [2, 128], strides = [1, 1]} : vector<2x2048xf32> to vector<2x128xf32>
    %c0_36 = arith.constant 0 : index
    %c13 = arith.constant 13 : index
    %c0_37 = arith.constant 0 : index
    %65 = vector.load %arg15[%c0_36, %c13, %c0_37] : memref<2x18x128xf32, #tpu.memory_space<vmem>>, vector<2x1x128xf32>
    %66 = vector.shape_cast %65 : vector<2x1x128xf32> to vector<2x128xf32>
    %67 = vector.shape_cast %64 : vector<2x128xf32> to vector<2x1x128xf32>
    tpu.vector_store %arg15[%c0_36, %c13, %c0_37], %67 {strides = array<i32>} : memref<2x18x128xf32, #tpu.memory_space<vmem>>, vector<2x1x128xf32>,
    %68 = vector.extract_strided_slice %8 {offsets = [0, 1664], sizes = [2, 128], strides = [1, 1]} : vector<2x2048xf32> to vector<2x128xf32>
    %c0_38 = arith.constant 0 : index
    %c14 = arith.constant 14 : index
    %c0_39 = arith.constant 0 : index
    %69 = vector.load %arg15[%c0_38, %c14, %c0_39] : memref<2x18x128xf32, #tpu.memory_space<vmem>>, vector<2x1x128xf32>
    %70 = vector.shape_cast %69 : vector<2x1x128xf32> to vector<2x128xf32>
    %71 = vector.shape_cast %68 : vector<2x128xf32> to vector<2x1x128xf32>
    tpu.vector_store %arg15[%c0_38, %c14, %c0_39], %71 {strides = array<i32>} : memref<2x18x128xf32, #tpu.memory_space<vmem>>, vector<2x1x128xf32>,
    %72 = vector.extract_strided_slice %8 {offsets = [0, 1792], sizes = [2, 128], strides = [1, 1]} : vector<2x2048xf32> to vector<2x128xf32>
    %c0_40 = arith.constant 0 : index
    %c15 = arith.constant 15 : index
    %c0_41 = arith.constant 0 : index
    %73 = vector.load %arg15[%c0_40, %c15, %c0_41] : memref<2x18x128xf32, #tpu.memory_space<vmem>>, vector<2x1x128xf32>
    %74 = vector.shape_cast %73 : vector<2x1x128xf32> to vector<2x128xf32>
    %75 = vector.shape_cast %72 : vector<2x128xf32> to vector<2x1x128xf32>
    tpu.vector_store %arg15[%c0_40, %c15, %c0_41], %75 {strides = array<i32>} : memref<2x18x128xf32, #tpu.memory_space<vmem>>, vector<2x1x128xf32>,
    %76 = vector.extract_strided_slice %8 {offsets = [0, 1920], sizes = [2, 128], strides = [1, 1]} : vector<2x2048xf32> to vector<2x128xf32>
    %c0_42 = arith.constant 0 : index
    %c16 = arith.constant 16 : index
    %c0_43 = arith.constant 0 : index
    %77 = vector.load %arg15[%c0_42, %c16, %c0_43] : memref<2x18x128xf32, #tpu.memory_space<vmem>>, vector<2x1x128xf32>
    %78 = vector.shape_cast %77 : vector<2x1x128xf32> to vector<2x128xf32>
    %79 = vector.shape_cast %76 : vector<2x128xf32> to vector<2x1x128xf32>
    tpu.vector_store %arg15[%c0_42, %c16, %c0_43], %79 {strides = array<i32>} : memref<2x18x128xf32, #tpu.memory_space<vmem>>, vector<2x1x128xf32>,
    %c0_44 = arith.constant 0 : index
    %c0_45 = arith.constant 0 : index
    %c0_46 = arith.constant 0 : index
    %80 = vector.load %arg15[%c0_44, %c0_45, %c0_46] : memref<2x18x128xf32, #tpu.memory_space<vmem>>, vector<2x16x128xf32>
    %81 = vector.shape_cast %80 : vector<2x16x128xf32> to vector<32x128xf32>
    %82 = arith.truncf %81 : vector<32x128xf32> to vector<32x128xbf16>
    %c0_47 = arith.constant 0 : index
    %c1_48 = arith.constant 1 : index
    %c0_49 = arith.constant 0 : index
    %83 = vector.load %arg15[%c0_47, %c1_48, %c0_49] : memref<2x18x128xf32, #tpu.memory_space<vmem>>, vector<2x16x128xf32>
    %84 = vector.shape_cast %83 : vector<2x16x128xf32> to vector<32x128xf32>
    %85 = arith.truncf %84 : vector<32x128xf32> to vector<32x128xbf16>
    %c0_50 = arith.constant 0 : index
    %c2_51 = arith.constant 2 : index
    %c0_52 = arith.constant 0 : index
    %86 = vector.load %arg15[%c0_50, %c2_51, %c0_52] : memref<2x18x128xf32, #tpu.memory_space<vmem>>, vector<2x16x128xf32>
    %87 = vector.shape_cast %86 : vector<2x16x128xf32> to vector<32x128xf32>
    %88 = arith.truncf %87 : vector<32x128xf32> to vector<32x128xbf16>
    %c0_53 = arith.constant 0 : index
    %c0_54 = arith.constant 0 : index
    %c0_55 = arith.constant 0 : index
    %89 = vector.load %arg4[%c0_53, %c0_54, %c0_55] : memref<3x128x128xbf16, #tpu.memory_space<vmem>>, vector<1x128x128xbf16>
    %90 = vector.shape_cast %89 : vector<1x128x128xbf16> to vector<128x128xbf16>
    %cst_56 = arith.constant dense<0.000000e+00> : vector<32x128xf32>
    %91 = tpu.matmul %82, %90, %cst_56 {dimension_numbers = #tpu.dot_dimension_numbers<[1], [0], [0], [1], [0, 0, 1, 1], [], []>} : vector<32x128xbf16>, vector<128x128xbf16>, vector<32x128xf32> -> vector<32x128xf32>
    %c1_57 = arith.constant 1 : index
    %c0_58 = arith.constant 0 : index
    %c0_59 = arith.constant 0 : index
    %92 = vector.load %arg4[%c1_57, %c0_58, %c0_59] : memref<3x128x128xbf16, #tpu.memory_space<vmem>>, vector<1x128x128xbf16>
    %93 = vector.shape_cast %92 : vector<1x128x128xbf16> to vector<128x128xbf16>
    %cst_60 = arith.constant dense<0.000000e+00> : vector<32x128xf32>
    %94 = tpu.matmul %85, %93, %cst_60 {dimension_numbers = #tpu.dot_dimension_numbers<[1], [0], [0], [1], [0, 0, 1, 1], [], []>} : vector<32x128xbf16>, vector<128x128xbf16>, vector<32x128xf32> -> vector<32x128xf32>
    %95 = arith.addf %91, %94 : vector<32x128xf32>
    %c2_61 = arith.constant 2 : index
    %c0_62 = arith.constant 0 : index
    %c0_63 = arith.constant 0 : index
    %96 = vector.load %arg4[%c2_61, %c0_62, %c0_63] : memref<3x128x128xbf16, #tpu.memory_space<vmem>>, vector<1x128x128xbf16>
    %97 = vector.shape_cast %96 : vector<1x128x128xbf16> to vector<128x128xbf16>
    %cst_64 = arith.constant dense<0.000000e+00> : vector<32x128xf32>
    %98 = tpu.matmul %88, %97, %cst_64 {dimension_numbers = #tpu.dot_dimension_numbers<[1], [0], [0], [1], [0, 0, 1, 1], [], []>} : vector<32x128xbf16>, vector<128x128xbf16>, vector<32x128xf32> -> vector<32x128xf32>
    %99 = arith.addf %95, %98 : vector<32x128xf32>
    %c0_65 = arith.constant 0 : index
    %c0_66 = arith.constant 0 : index
    %100 = vector.load %arg5[%c0_65, %c0_66] : memref<1x128xf32, #tpu.memory_space<vmem>>, vector<1x128xf32>
    %101 = vector.broadcast %100 : vector<1x128xf32> to vector<32x128xf32>
    %102 = arith.addf %99, %101 : vector<32x128xf32>
    %cst_67 = arith.constant 0.000000e+00 : f32
    %103 = vector.broadcast %cst_67 : f32 to vector<32x128xf32>
    %104 = arith.maximumf %102, %103 : vector<32x128xf32>
    %105 = vector.shape_cast %104 : vector<32x128xf32> to vector<2x16x128xf32>
    %106 = vector.extract_strided_slice %105 {offsets = [0, 0, 0], sizes = [2, 1, 128], strides = [1, 1, 1]} : vector<2x16x128xf32> to vector<2x1x128xf32>
    %107 = vector.shape_cast %106 : vector<2x1x128xf32> to vector<2x128xf32>
    %c0_68 = arith.constant 0 : index
    %c1_69 = arith.constant 1 : index
    %c0_70 = arith.constant 0 : index
    %108 = vector.load %arg15[%c0_68, %c1_69, %c0_70] : memref<2x18x128xf32, #tpu.memory_space<vmem>>, vector<2x1x128xf32>
    %109 = vector.shape_cast %108 : vector<2x1x128xf32> to vector<2x128xf32>
    %110 = vector.shape_cast %107 : vector<2x128xf32> to vector<2x1x128xf32>
    tpu.vector_store %arg15[%c0_68, %c1_69, %c0_70], %110 {strides = array<i32>} : memref<2x18x128xf32, #tpu.memory_space<vmem>>, vector<2x1x128xf32>,
    %111 = vector.extract_strided_slice %105 {offsets = [0, 1, 0], sizes = [2, 1, 128], strides = [1, 1, 1]} : vector<2x16x128xf32> to vector<2x1x128xf32>
    %112 = vector.shape_cast %111 : vector<2x1x128xf32> to vector<2x128xf32>
    %c0_71 = arith.constant 0 : index
    %c2_72 = arith.constant 2 : index
    %c0_73 = arith.constant 0 : index
    %113 = vector.load %arg15[%c0_71, %c2_72, %c0_73] : memref<2x18x128xf32, #tpu.memory_space<vmem>>, vector<2x1x128xf32>
    %114 = vector.shape_cast %113 : vector<2x1x128xf32> to vector<2x128xf32>
    %115 = vector.shape_cast %112 : vector<2x128xf32> to vector<2x1x128xf32>
    tpu.vector_store %arg15[%c0_71, %c2_72, %c0_73], %115 {strides = array<i32>} : memref<2x18x128xf32, #tpu.memory_space<vmem>>, vector<2x1x128xf32>,
    %116 = vector.extract_strided_slice %105 {offsets = [0, 2, 0], sizes = [2, 1, 128], strides = [1, 1, 1]} : vector<2x16x128xf32> to vector<2x1x128xf32>
    %117 = vector.shape_cast %116 : vector<2x1x128xf32> to vector<2x128xf32>
    %c0_74 = arith.constant 0 : index
    %c3_75 = arith.constant 3 : index
    %c0_76 = arith.constant 0 : index
    %118 = vector.load %arg15[%c0_74, %c3_75, %c0_76] : memref<2x18x128xf32, #tpu.memory_space<vmem>>, vector<2x1x128xf32>
    %119 = vector.shape_cast %118 : vector<2x1x128xf32> to vector<2x128xf32>
    %120 = vector.shape_cast %117 : vector<2x128xf32> to vector<2x1x128xf32>
    tpu.vector_store %arg15[%c0_74, %c3_75, %c0_76], %120 {strides = array<i32>} : memref<2x18x128xf32, #tpu.memory_space<vmem>>, vector<2x1x128xf32>,
    %121 = vector.extract_strided_slice %105 {offsets = [0, 3, 0], sizes = [2, 1, 128], strides = [1, 1, 1]} : vector<2x16x128xf32> to vector<2x1x128xf32>
    %122 = vector.shape_cast %121 : vector<2x1x128xf32> to vector<2x128xf32>
    %c0_77 = arith.constant 0 : index
    %c4_78 = arith.constant 4 : index
    %c0_79 = arith.constant 0 : index
    %123 = vector.load %arg15[%c0_77, %c4_78, %c0_79] : memref<2x18x128xf32, #tpu.memory_space<vmem>>, vector<2x1x128xf32>
    %124 = vector.shape_cast %123 : vector<2x1x128xf32> to vector<2x128xf32>
    %125 = vector.shape_cast %122 : vector<2x128xf32> to vector<2x1x128xf32>
    tpu.vector_store %arg15[%c0_77, %c4_78, %c0_79], %125 {strides = array<i32>} : memref<2x18x128xf32, #tpu.memory_space<vmem>>, vector<2x1x128xf32>,
    %126 = vector.extract_strided_slice %105 {offsets = [0, 4, 0], sizes = [2, 1, 128], strides = [1, 1, 1]} : vector<2x16x128xf32> to vector<2x1x128xf32>
    %127 = vector.shape_cast %126 : vector<2x1x128xf32> to vector<2x128xf32>
    %c0_80 = arith.constant 0 : index
    %c5_81 = arith.constant 5 : index
    %c0_82 = arith.constant 0 : index
    %128 = vector.load %arg15[%c0_80, %c5_81, %c0_82] : memref<2x18x128xf32, #tpu.memory_space<vmem>>, vector<2x1x128xf32>
    %129 = vector.shape_cast %128 : vector<2x1x128xf32> to vector<2x128xf32>
    %130 = vector.shape_cast %127 : vector<2x128xf32> to vector<2x1x128xf32>
    tpu.vector_store %arg15[%c0_80, %c5_81, %c0_82], %130 {strides = array<i32>} : memref<2x18x128xf32, #tpu.memory_space<vmem>>, vector<2x1x128xf32>,
    %131 = vector.extract_strided_slice %105 {offsets = [0, 5, 0], sizes = [2, 1, 128], strides = [1, 1, 1]} : vector<2x16x128xf32> to vector<2x1x128xf32>
    %132 = vector.shape_cast %131 : vector<2x1x128xf32> to vector<2x128xf32>
    %c0_83 = arith.constant 0 : index
    %c6_84 = arith.constant 6 : index
    %c0_85 = arith.constant 0 : index
    %133 = vector.load %arg15[%c0_83, %c6_84, %c0_85] : memref<2x18x128xf32, #tpu.memory_space<vmem>>, vector<2x1x128xf32>
    %134 = vector.shape_cast %133 : vector<2x1x128xf32> to vector<2x128xf32>
    %135 = vector.shape_cast %132 : vector<2x128xf32> to vector<2x1x128xf32>
    tpu.vector_store %arg15[%c0_83, %c6_84, %c0_85], %135 {strides = array<i32>} : memref<2x18x128xf32, #tpu.memory_space<vmem>>, vector<2x1x128xf32>,
    %136 = vector.extract_strided_slice %105 {offsets = [0, 6, 0], sizes = [2, 1, 128], strides = [1, 1, 1]} : vector<2x16x128xf32> to vector<2x1x128xf32>
    %137 = vector.shape_cast %136 : vector<2x1x128xf32> to vector<2x128xf32>
    %c0_86 = arith.constant 0 : index
    %c7_87 = arith.constant 7 : index
    %c0_88 = arith.constant 0 : index
    %138 = vector.load %arg15[%c0_86, %c7_87, %c0_88] : memref<2x18x128xf32, #tpu.memory_space<vmem>>, vector<2x1x128xf32>
    %139 = vector.shape_cast %138 : vector<2x1x128xf32> to vector<2x128xf32>
    %140 = vector.shape_cast %137 : vector<2x128xf32> to vector<2x1x128xf32>
    tpu.vector_store %arg15[%c0_86, %c7_87, %c0_88], %140 {strides = array<i32>} : memref<2x18x128xf32, #tpu.memory_space<vmem>>, vector<2x1x128xf32>,
    %141 = vector.extract_strided_slice %105 {offsets = [0, 7, 0], sizes = [2, 1, 128], strides = [1, 1, 1]} : vector<2x16x128xf32> to vector<2x1x128xf32>
    %142 = vector.shape_cast %141 : vector<2x1x128xf32> to vector<2x128xf32>
    %c0_89 = arith.constant 0 : index
    %c8_90 = arith.constant 8 : index
    %c0_91 = arith.constant 0 : index
    %143 = vector.load %arg15[%c0_89, %c8_90, %c0_91] : memref<2x18x128xf32, #tpu.memory_space<vmem>>, vector<2x1x128xf32>
    %144 = vector.shape_cast %143 : vector<2x1x128xf32> to vector<2x128xf32>
    %145 = vector.shape_cast %142 : vector<2x128xf32> to vector<2x1x128xf32>
    tpu.vector_store %arg15[%c0_89, %c8_90, %c0_91], %145 {strides = array<i32>} : memref<2x18x128xf32, #tpu.memory_space<vmem>>, vector<2x1x128xf32>,
    %146 = vector.extract_strided_slice %105 {offsets = [0, 8, 0], sizes = [2, 1, 128], strides = [1, 1, 1]} : vector<2x16x128xf32> to vector<2x1x128xf32>
    %147 = vector.shape_cast %146 : vector<2x1x128xf32> to vector<2x128xf32>
    %c0_92 = arith.constant 0 : index
    %c9_93 = arith.constant 9 : index
    %c0_94 = arith.constant 0 : index
    %148 = vector.load %arg15[%c0_92, %c9_93, %c0_94] : memref<2x18x128xf32, #tpu.memory_space<vmem>>, vector<2x1x128xf32>
    %149 = vector.shape_cast %148 : vector<2x1x128xf32> to vector<2x128xf32>
    %150 = vector.shape_cast %147 : vector<2x128xf32> to vector<2x1x128xf32>
    tpu.vector_store %arg15[%c0_92, %c9_93, %c0_94], %150 {strides = array<i32>} : memref<2x18x128xf32, #tpu.memory_space<vmem>>, vector<2x1x128xf32>,
    %151 = vector.extract_strided_slice %105 {offsets = [0, 9, 0], sizes = [2, 1, 128], strides = [1, 1, 1]} : vector<2x16x128xf32> to vector<2x1x128xf32>
    %152 = vector.shape_cast %151 : vector<2x1x128xf32> to vector<2x128xf32>
    %c0_95 = arith.constant 0 : index
    %c10_96 = arith.constant 10 : index
    %c0_97 = arith.constant 0 : index
    %153 = vector.load %arg15[%c0_95, %c10_96, %c0_97] : memref<2x18x128xf32, #tpu.memory_space<vmem>>, vector<2x1x128xf32>
    %154 = vector.shape_cast %153 : vector<2x1x128xf32> to vector<2x128xf32>
    %155 = vector.shape_cast %152 : vector<2x128xf32> to vector<2x1x128xf32>
    tpu.vector_store %arg15[%c0_95, %c10_96, %c0_97], %155 {strides = array<i32>} : memref<2x18x128xf32, #tpu.memory_space<vmem>>, vector<2x1x128xf32>,
    %156 = vector.extract_strided_slice %105 {offsets = [0, 10, 0], sizes = [2, 1, 128], strides = [1, 1, 1]} : vector<2x16x128xf32> to vector<2x1x128xf32>
    %157 = vector.shape_cast %156 : vector<2x1x128xf32> to vector<2x128xf32>
    %c0_98 = arith.constant 0 : index
    %c11_99 = arith.constant 11 : index
    %c0_100 = arith.constant 0 : index
    %158 = vector.load %arg15[%c0_98, %c11_99, %c0_100] : memref<2x18x128xf32, #tpu.memory_space<vmem>>, vector<2x1x128xf32>
    %159 = vector.shape_cast %158 : vector<2x1x128xf32> to vector<2x128xf32>
    %160 = vector.shape_cast %157 : vector<2x128xf32> to vector<2x1x128xf32>
    tpu.vector_store %arg15[%c0_98, %c11_99, %c0_100], %160 {strides = array<i32>} : memref<2x18x128xf32, #tpu.memory_space<vmem>>, vector<2x1x128xf32>,
    %161 = vector.extract_strided_slice %105 {offsets = [0, 11, 0], sizes = [2, 1, 128], strides = [1, 1, 1]} : vector<2x16x128xf32> to vector<2x1x128xf32>
    %162 = vector.shape_cast %161 : vector<2x1x128xf32> to vector<2x128xf32>
    %c0_101 = arith.constant 0 : index
    %c12_102 = arith.constant 12 : index
    %c0_103 = arith.constant 0 : index
    %163 = vector.load %arg15[%c0_101, %c12_102, %c0_103] : memref<2x18x128xf32, #tpu.memory_space<vmem>>, vector<2x1x128xf32>
    %164 = vector.shape_cast %163 : vector<2x1x128xf32> to vector<2x128xf32>
    %165 = vector.shape_cast %162 : vector<2x128xf32> to vector<2x1x128xf32>
    tpu.vector_store %arg15[%c0_101, %c12_102, %c0_103], %165 {strides = array<i32>} : memref<2x18x128xf32, #tpu.memory_space<vmem>>, vector<2x1x128xf32>,
    %166 = vector.extract_strided_slice %105 {offsets = [0, 12, 0], sizes = [2, 1, 128], strides = [1, 1, 1]} : vector<2x16x128xf32> to vector<2x1x128xf32>
    %167 = vector.shape_cast %166 : vector<2x1x128xf32> to vector<2x128xf32>
    %c0_104 = arith.constant 0 : index
    %c13_105 = arith.constant 13 : index
    %c0_106 = arith.constant 0 : index
    %168 = vector.load %arg15[%c0_104, %c13_105, %c0_106] : memref<2x18x128xf32, #tpu.memory_space<vmem>>, vector<2x1x128xf32>
    %169 = vector.shape_cast %168 : vector<2x1x128xf32> to vector<2x128xf32>
    %170 = vector.shape_cast %167 : vector<2x128xf32> to vector<2x1x128xf32>
    tpu.vector_store %arg15[%c0_104, %c13_105, %c0_106], %170 {strides = array<i32>} : memref<2x18x128xf32, #tpu.memory_space<vmem>>, vector<2x1x128xf32>,
    %171 = vector.extract_strided_slice %105 {offsets = [0, 13, 0], sizes = [2, 1, 128], strides = [1, 1, 1]} : vector<2x16x128xf32> to vector<2x1x128xf32>
    %172 = vector.shape_cast %171 : vector<2x1x128xf32> to vector<2x128xf32>
    %c0_107 = arith.constant 0 : index
    %c14_108 = arith.constant 14 : index
    %c0_109 = arith.constant 0 : index
    %173 = vector.load %arg15[%c0_107, %c14_108, %c0_109] : memref<2x18x128xf32, #tpu.memory_space<vmem>>, vector<2x1x128xf32>
    %174 = vector.shape_cast %173 : vector<2x1x128xf32> to vector<2x128xf32>
    %175 = vector.shape_cast %172 : vector<2x128xf32> to vector<2x1x128xf32>
    tpu.vector_store %arg15[%c0_107, %c14_108, %c0_109], %175 {strides = array<i32>} : memref<2x18x128xf32, #tpu.memory_space<vmem>>, vector<2x1x128xf32>,
    %176 = vector.extract_strided_slice %105 {offsets = [0, 14, 0], sizes = [2, 1, 128], strides = [1, 1, 1]} : vector<2x16x128xf32> to vector<2x1x128xf32>
    %177 = vector.shape_cast %176 : vector<2x1x128xf32> to vector<2x128xf32>
    %c0_110 = arith.constant 0 : index
    %c15_111 = arith.constant 15 : index
    %c0_112 = arith.constant 0 : index
    %178 = vector.load %arg15[%c0_110, %c15_111, %c0_112] : memref<2x18x128xf32, #tpu.memory_space<vmem>>, vector<2x1x128xf32>
    %179 = vector.shape_cast %178 : vector<2x1x128xf32> to vector<2x128xf32>
    %180 = vector.shape_cast %177 : vector<2x128xf32> to vector<2x1x128xf32>
    tpu.vector_store %arg15[%c0_110, %c15_111, %c0_112], %180 {strides = array<i32>} : memref<2x18x128xf32, #tpu.memory_space<vmem>>, vector<2x1x128xf32>,
    %181 = vector.extract_strided_slice %105 {offsets = [0, 15, 0], sizes = [2, 1, 128], strides = [1, 1, 1]} : vector<2x16x128xf32> to vector<2x1x128xf32>
    %182 = vector.shape_cast %181 : vector<2x1x128xf32> to vector<2x128xf32>
    %c0_113 = arith.constant 0 : index
    %c16_114 = arith.constant 16 : index
    %c0_115 = arith.constant 0 : index
    %183 = vector.load %arg15[%c0_113, %c16_114, %c0_115] : memref<2x18x128xf32, #tpu.memory_space<vmem>>, vector<2x1x128xf32>
    %184 = vector.shape_cast %183 : vector<2x1x128xf32> to vector<2x128xf32>
    %185 = vector.shape_cast %182 : vector<2x128xf32> to vector<2x1x128xf32>
    tpu.vector_store %arg15[%c0_113, %c16_114, %c0_115], %185 {strides = array<i32>} : memref<2x18x128xf32, #tpu.memory_space<vmem>>, vector<2x1x128xf32>,
    %c0_116 = arith.constant 0 : index
    %c0_117 = arith.constant 0 : index
    %c0_118 = arith.constant 0 : index
    %186 = vector.load %arg15[%c0_116, %c0_117, %c0_118] : memref<2x18x128xf32, #tpu.memory_space<vmem>>, vector<2x16x128xf32>
    %187 = vector.shape_cast %186 : vector<2x16x128xf32> to vector<32x128xf32>
    %188 = arith.truncf %187 : vector<32x128xf32> to vector<32x128xbf16>
    %c0_119 = arith.constant 0 : index
    %c1_120 = arith.constant 1 : index
    %c0_121 = arith.constant 0 : index
    %189 = vector.load %arg15[%c0_119, %c1_120, %c0_121] : memref<2x18x128xf32, #tpu.memory_space<vmem>>, vector<2x16x128xf32>
    %190 = vector.shape_cast %189 : vector<2x16x128xf32> to vector<32x128xf32>
    %191 = arith.truncf %190 : vector<32x128xf32> to vector<32x128xbf16>
    %c0_122 = arith.constant 0 : index
    %c2_123 = arith.constant 2 : index
    %c0_124 = arith.constant 0 : index
    %192 = vector.load %arg15[%c0_122, %c2_123, %c0_124] : memref<2x18x128xf32, #tpu.memory_space<vmem>>, vector<2x16x128xf32>
    %193 = vector.shape_cast %192 : vector<2x16x128xf32> to vector<32x128xf32>
    %194 = arith.truncf %193 : vector<32x128xf32> to vector<32x128xbf16>
    %c0_125 = arith.constant 0 : index
    %c0_126 = arith.constant 0 : index
    %c0_127 = arith.constant 0 : index
    %195 = vector.load %arg6[%c0_125, %c0_126, %c0_127] : memref<3x128x128xbf16, #tpu.memory_space<vmem>>, vector<1x128x128xbf16>
    %196 = vector.shape_cast %195 : vector<1x128x128xbf16> to vector<128x128xbf16>
    %cst_128 = arith.constant dense<0.000000e+00> : vector<32x128xf32>
    %197 = tpu.matmul %188, %196, %cst_128 {dimension_numbers = #tpu.dot_dimension_numbers<[1], [0], [0], [1], [0, 0, 1, 1], [], []>} : vector<32x128xbf16>, vector<128x128xbf16>, vector<32x128xf32> -> vector<32x128xf32>
    %c1_129 = arith.constant 1 : index
    %c0_130 = arith.constant 0 : index
    %c0_131 = arith.constant 0 : index
    %198 = vector.load %arg6[%c1_129, %c0_130, %c0_131] : memref<3x128x128xbf16, #tpu.memory_space<vmem>>, vector<1x128x128xbf16>
    %199 = vector.shape_cast %198 : vector<1x128x128xbf16> to vector<128x128xbf16>
    %cst_132 = arith.constant dense<0.000000e+00> : vector<32x128xf32>
    %200 = tpu.matmul %191, %199, %cst_132 {dimension_numbers = #tpu.dot_dimension_numbers<[1], [0], [0], [1], [0, 0, 1, 1], [], []>} : vector<32x128xbf16>, vector<128x128xbf16>, vector<32x128xf32> -> vector<32x128xf32>
    %201 = arith.addf %197, %200 : vector<32x128xf32>
    %c2_133 = arith.constant 2 : index
    %c0_134 = arith.constant 0 : index
    %c0_135 = arith.constant 0 : index
    %202 = vector.load %arg6[%c2_133, %c0_134, %c0_135] : memref<3x128x128xbf16, #tpu.memory_space<vmem>>, vector<1x128x128xbf16>
    %203 = vector.shape_cast %202 : vector<1x128x128xbf16> to vector<128x128xbf16>
    %cst_136 = arith.constant dense<0.000000e+00> : vector<32x128xf32>
    %204 = tpu.matmul %194, %203, %cst_136 {dimension_numbers = #tpu.dot_dimension_numbers<[1], [0], [0], [1], [0, 0, 1, 1], [], []>} : vector<32x128xbf16>, vector<128x128xbf16>, vector<32x128xf32> -> vector<32x128xf32>
    %205 = arith.addf %201, %204 : vector<32x128xf32>
    %c0_137 = arith.constant 0 : index
    %c0_138 = arith.constant 0 : index
    %206 = vector.load %arg7[%c0_137, %c0_138] : memref<1x128xf32, #tpu.memory_space<vmem>>, vector<1x128xf32>
    %207 = vector.broadcast %206 : vector<1x128xf32> to vector<32x128xf32>
    %208 = arith.addf %205, %207 : vector<32x128xf32>
    %cst_139 = arith.constant 0.000000e+00 : f32
    %209 = vector.broadcast %cst_139 : f32 to vector<32x128xf32>
    %210 = arith.maximumf %208, %209 : vector<32x128xf32>
    %211 = vector.shape_cast %210 : vector<32x128xf32> to vector<2x16x128xf32>
    %212 = vector.extract_strided_slice %211 {offsets = [0, 0, 0], sizes = [2, 1, 128], strides = [1, 1, 1]} : vector<2x16x128xf32> to vector<2x1x128xf32>
    %213 = vector.shape_cast %212 : vector<2x1x128xf32> to vector<2x128xf32>
    %214 = arith.truncf %213 : vector<2x128xf32> to vector<2x128xbf16>
    %c0_140 = arith.constant 0 : index
    %c0_141 = arith.constant 0 : index
    %215 = vector.load %arg16[%c0_140, %c0_141] : memref<2x2048xbf16, #tpu.memory_space<vmem>>, vector<2x128xbf16>
    tpu.vector_store %arg16[%c0_140, %c0_141], %214 {strides = array<i32>} : memref<2x2048xbf16, #tpu.memory_space<vmem>>, vector<2x128xbf16>,
    %216 = vector.extract_strided_slice %211 {offsets = [0, 1, 0], sizes = [2, 1, 128], strides = [1, 1, 1]} : vector<2x16x128xf32> to vector<2x1x128xf32>
    %217 = vector.shape_cast %216 : vector<2x1x128xf32> to vector<2x128xf32>
    %218 = arith.truncf %217 : vector<2x128xf32> to vector<2x128xbf16>
    %c0_142 = arith.constant 0 : index
    %c128 = arith.constant 128 : index
    %219 = vector.load %arg16[%c0_142, %c128] : memref<2x2048xbf16, #tpu.memory_space<vmem>>, vector<2x128xbf16>
    tpu.vector_store %arg16[%c0_142, %c128], %218 {strides = array<i32>} : memref<2x2048xbf16, #tpu.memory_space<vmem>>, vector<2x128xbf16>,
    %220 = vector.extract_strided_slice %211 {offsets = [0, 2, 0], sizes = [2, 1, 128], strides = [1, 1, 1]} : vector<2x16x128xf32> to vector<2x1x128xf32>
    %221 = vector.shape_cast %220 : vector<2x1x128xf32> to vector<2x128xf32>
    %222 = arith.truncf %221 : vector<2x128xf32> to vector<2x128xbf16>
    %c0_143 = arith.constant 0 : index
    %c256 = arith.constant 256 : index
    %223 = vector.load %arg16[%c0_143, %c256] : memref<2x2048xbf16, #tpu.memory_space<vmem>>, vector<2x128xbf16>
    tpu.vector_store %arg16[%c0_143, %c256], %222 {strides = array<i32>} : memref<2x2048xbf16, #tpu.memory_space<vmem>>, vector<2x128xbf16>,
    %224 = vector.extract_strided_slice %211 {offsets = [0, 3, 0], sizes = [2, 1, 128], strides = [1, 1, 1]} : vector<2x16x128xf32> to vector<2x1x128xf32>
    %225 = vector.shape_cast %224 : vector<2x1x128xf32> to vector<2x128xf32>
    %226 = arith.truncf %225 : vector<2x128xf32> to vector<2x128xbf16>
    %c0_144 = arith.constant 0 : index
    %c384 = arith.constant 384 : index
    %227 = vector.load %arg16[%c0_144, %c384] : memref<2x2048xbf16, #tpu.memory_space<vmem>>, vector<2x128xbf16>
    tpu.vector_store %arg16[%c0_144, %c384], %226 {strides = array<i32>} : memref<2x2048xbf16, #tpu.memory_space<vmem>>, vector<2x128xbf16>,
    %228 = vector.extract_strided_slice %211 {offsets = [0, 4, 0], sizes = [2, 1, 128], strides = [1, 1, 1]} : vector<2x16x128xf32> to vector<2x1x128xf32>
    %229 = vector.shape_cast %228 : vector<2x1x128xf32> to vector<2x128xf32>
    %230 = arith.truncf %229 : vector<2x128xf32> to vector<2x128xbf16>
    %c0_145 = arith.constant 0 : index
    %c512 = arith.constant 512 : index
    %231 = vector.load %arg16[%c0_145, %c512] : memref<2x2048xbf16, #tpu.memory_space<vmem>>, vector<2x128xbf16>
    tpu.vector_store %arg16[%c0_145, %c512], %230 {strides = array<i32>} : memref<2x2048xbf16, #tpu.memory_space<vmem>>, vector<2x128xbf16>,
    %232 = vector.extract_strided_slice %211 {offsets = [0, 5, 0], sizes = [2, 1, 128], strides = [1, 1, 1]} : vector<2x16x128xf32> to vector<2x1x128xf32>
    %233 = vector.shape_cast %232 : vector<2x1x128xf32> to vector<2x128xf32>
    %234 = arith.truncf %233 : vector<2x128xf32> to vector<2x128xbf16>
    %c0_146 = arith.constant 0 : index
    %c640 = arith.constant 640 : index
    %235 = vector.load %arg16[%c0_146, %c640] : memref<2x2048xbf16, #tpu.memory_space<vmem>>, vector<2x128xbf16>
    tpu.vector_store %arg16[%c0_146, %c640], %234 {strides = array<i32>} : memref<2x2048xbf16, #tpu.memory_space<vmem>>, vector<2x128xbf16>,
    %236 = vector.extract_strided_slice %211 {offsets = [0, 6, 0], sizes = [2, 1, 128], strides = [1, 1, 1]} : vector<2x16x128xf32> to vector<2x1x128xf32>
    %237 = vector.shape_cast %236 : vector<2x1x128xf32> to vector<2x128xf32>
    %238 = arith.truncf %237 : vector<2x128xf32> to vector<2x128xbf16>
    %c0_147 = arith.constant 0 : index
    %c768 = arith.constant 768 : index
    %239 = vector.load %arg16[%c0_147, %c768] : memref<2x2048xbf16, #tpu.memory_space<vmem>>, vector<2x128xbf16>
    tpu.vector_store %arg16[%c0_147, %c768], %238 {strides = array<i32>} : memref<2x2048xbf16, #tpu.memory_space<vmem>>, vector<2x128xbf16>,
    %240 = vector.extract_strided_slice %211 {offsets = [0, 7, 0], sizes = [2, 1, 128], strides = [1, 1, 1]} : vector<2x16x128xf32> to vector<2x1x128xf32>
    %241 = vector.shape_cast %240 : vector<2x1x128xf32> to vector<2x128xf32>
    %242 = arith.truncf %241 : vector<2x128xf32> to vector<2x128xbf16>
    %c0_148 = arith.constant 0 : index
    %c896 = arith.constant 896 : index
    %243 = vector.load %arg16[%c0_148, %c896] : memref<2x2048xbf16, #tpu.memory_space<vmem>>, vector<2x128xbf16>
    tpu.vector_store %arg16[%c0_148, %c896], %242 {strides = array<i32>} : memref<2x2048xbf16, #tpu.memory_space<vmem>>, vector<2x128xbf16>,
    %244 = vector.extract_strided_slice %211 {offsets = [0, 8, 0], sizes = [2, 1, 128], strides = [1, 1, 1]} : vector<2x16x128xf32> to vector<2x1x128xf32>
    %245 = vector.shape_cast %244 : vector<2x1x128xf32> to vector<2x128xf32>
    %246 = arith.truncf %245 : vector<2x128xf32> to vector<2x128xbf16>
    %c0_149 = arith.constant 0 : index
    %c1024 = arith.constant 1024 : index
    %247 = vector.load %arg16[%c0_149, %c1024] : memref<2x2048xbf16, #tpu.memory_space<vmem>>, vector<2x128xbf16>
    tpu.vector_store %arg16[%c0_149, %c1024], %246 {strides = array<i32>} : memref<2x2048xbf16, #tpu.memory_space<vmem>>, vector<2x128xbf16>,
    %248 = vector.extract_strided_slice %211 {offsets = [0, 9, 0], sizes = [2, 1, 128], strides = [1, 1, 1]} : vector<2x16x128xf32> to vector<2x1x128xf32>
    %249 = vector.shape_cast %248 : vector<2x1x128xf32> to vector<2x128xf32>
    %250 = arith.truncf %249 : vector<2x128xf32> to vector<2x128xbf16>
    %c0_150 = arith.constant 0 : index
    %c1152 = arith.constant 1152 : index
    %251 = vector.load %arg16[%c0_150, %c1152] : memref<2x2048xbf16, #tpu.memory_space<vmem>>, vector<2x128xbf16>
    tpu.vector_store %arg16[%c0_150, %c1152], %250 {strides = array<i32>} : memref<2x2048xbf16, #tpu.memory_space<vmem>>, vector<2x128xbf16>,
    %252 = vector.extract_strided_slice %211 {offsets = [0, 10, 0], sizes = [2, 1, 128], strides = [1, 1, 1]} : vector<2x16x128xf32> to vector<2x1x128xf32>
    %253 = vector.shape_cast %252 : vector<2x1x128xf32> to vector<2x128xf32>
    %254 = arith.truncf %253 : vector<2x128xf32> to vector<2x128xbf16>
    %c0_151 = arith.constant 0 : index
    %c1280 = arith.constant 1280 : index
    %255 = vector.load %arg16[%c0_151, %c1280] : memref<2x2048xbf16, #tpu.memory_space<vmem>>, vector<2x128xbf16>
    tpu.vector_store %arg16[%c0_151, %c1280], %254 {strides = array<i32>} : memref<2x2048xbf16, #tpu.memory_space<vmem>>, vector<2x128xbf16>,
    %256 = vector.extract_strided_slice %211 {offsets = [0, 11, 0], sizes = [2, 1, 128], strides = [1, 1, 1]} : vector<2x16x128xf32> to vector<2x1x128xf32>
    %257 = vector.shape_cast %256 : vector<2x1x128xf32> to vector<2x128xf32>
    %258 = arith.truncf %257 : vector<2x128xf32> to vector<2x128xbf16>
    %c0_152 = arith.constant 0 : index
    %c1408 = arith.constant 1408 : index
    %259 = vector.load %arg16[%c0_152, %c1408] : memref<2x2048xbf16, #tpu.memory_space<vmem>>, vector<2x128xbf16>
    tpu.vector_store %arg16[%c0_152, %c1408], %258 {strides = array<i32>} : memref<2x2048xbf16, #tpu.memory_space<vmem>>, vector<2x128xbf16>,
    %260 = vector.extract_strided_slice %211 {offsets = [0, 12, 0], sizes = [2, 1, 128], strides = [1, 1, 1]} : vector<2x16x128xf32> to vector<2x1x128xf32>
    %261 = vector.shape_cast %260 : vector<2x1x128xf32> to vector<2x128xf32>
    %262 = arith.truncf %261 : vector<2x128xf32> to vector<2x128xbf16>
    %c0_153 = arith.constant 0 : index
    %c1536 = arith.constant 1536 : index
    %263 = vector.load %arg16[%c0_153, %c1536] : memref<2x2048xbf16, #tpu.memory_space<vmem>>, vector<2x128xbf16>
    tpu.vector_store %arg16[%c0_153, %c1536], %262 {strides = array<i32>} : memref<2x2048xbf16, #tpu.memory_space<vmem>>, vector<2x128xbf16>,
    %264 = vector.extract_strided_slice %211 {offsets = [0, 13, 0], sizes = [2, 1, 128], strides = [1, 1, 1]} : vector<2x16x128xf32> to vector<2x1x128xf32>
    %265 = vector.shape_cast %264 : vector<2x1x128xf32> to vector<2x128xf32>
    %266 = arith.truncf %265 : vector<2x128xf32> to vector<2x128xbf16>
    %c0_154 = arith.constant 0 : index
    %c1664 = arith.constant 1664 : index
    %267 = vector.load %arg16[%c0_154, %c1664] : memref<2x2048xbf16, #tpu.memory_space<vmem>>, vector<2x128xbf16>
    tpu.vector_store %arg16[%c0_154, %c1664], %266 {strides = array<i32>} : memref<2x2048xbf16, #tpu.memory_space<vmem>>, vector<2x128xbf16>,
    %268 = vector.extract_strided_slice %211 {offsets = [0, 14, 0], sizes = [2, 1, 128], strides = [1, 1, 1]} : vector<2x16x128xf32> to vector<2x1x128xf32>
    %269 = vector.shape_cast %268 : vector<2x1x128xf32> to vector<2x128xf32>
    %270 = arith.truncf %269 : vector<2x128xf32> to vector<2x128xbf16>
    %c0_155 = arith.constant 0 : index
    %c1792 = arith.constant 1792 : index
    %271 = vector.load %arg16[%c0_155, %c1792] : memref<2x2048xbf16, #tpu.memory_space<vmem>>, vector<2x128xbf16>
    tpu.vector_store %arg16[%c0_155, %c1792], %270 {strides = array<i32>} : memref<2x2048xbf16, #tpu.memory_space<vmem>>, vector<2x128xbf16>,
    %272 = vector.extract_strided_slice %211 {offsets = [0, 15, 0], sizes = [2, 1, 128], strides = [1, 1, 1]} : vector<2x16x128xf32> to vector<2x1x128xf32>
    %273 = vector.shape_cast %272 : vector<2x1x128xf32> to vector<2x128xf32>
    %274 = arith.truncf %273 : vector<2x128xf32> to vector<2x128xbf16>
    %c0_156 = arith.constant 0 : index
    %c1920 = arith.constant 1920 : index
    %275 = vector.load %arg16[%c0_156, %c1920] : memref<2x2048xbf16, #tpu.memory_space<vmem>>, vector<2x128xbf16>
    tpu.vector_store %arg16[%c0_156, %c1920], %274 {strides = array<i32>} : memref<2x2048xbf16, #tpu.memory_space<vmem>>, vector<2x128xbf16>,
    %c0_157 = arith.constant 0 : index
    %c0_158 = arith.constant 0 : index
    %276 = vector.load %arg16[%c0_157, %c0_158] : memref<2x2048xbf16, #tpu.memory_space<vmem>>, vector<2x2048xbf16>
    %c0_159 = arith.constant 0 : index
    %c0_160 = arith.constant 0 : index
    %277 = vector.load %arg8[%c0_159, %c0_160] : memref<2048x128xbf16, #tpu.memory_space<vmem>>, vector<2048x128xbf16>
    %cst_161 = arith.constant dense<0.000000e+00> : vector<2x128xf32>
    %278 = tpu.matmul %276, %277, %cst_161 {dimension_numbers = #tpu.dot_dimension_numbers<[1], [0], [0], [1], [0, 0, 1, 1], [], []>} : vector<2x2048xbf16>, vector<2048x128xbf16>, vector<2x128xf32> -> vector<2x128xf32>
    %c0_162 = arith.constant 0 : index
    %c0_163 = arith.constant 0 : index
    %279 = vector.load %arg9[%c0_162, %c0_163] : memref<1x128xf32, #tpu.memory_space<vmem>>, vector<1x128xf32>
    %280 = vector.broadcast %279 : vector<1x128xf32> to vector<2x128xf32>
    %281 = arith.addf %278, %280 : vector<2x128xf32>
    %cst_164 = arith.constant 0.000000e+00 : f32
    %282 = vector.broadcast %cst_164 : f32 to vector<2x128xf32>
    %283 = arith.maximumf %281, %282 : vector<2x128xf32>
    %284 = arith.truncf %283 : vector<2x128xf32> to vector<2x128xbf16>
    %c0_165 = arith.constant 0 : index
    %c0_166 = arith.constant 0 : index
    %285 = vector.load %arg10[%c0_165, %c0_166] : memref<128x128xbf16, #tpu.memory_space<vmem>>, vector<128x128xbf16>
    %cst_167 = arith.constant dense<0.000000e+00> : vector<2x128xf32>
    %286 = tpu.matmul %284, %285, %cst_167 {dimension_numbers = #tpu.dot_dimension_numbers<[1], [0], [0], [1], [0, 0, 1, 1], [], []>} : vector<2x128xbf16>, vector<128x128xbf16>, vector<2x128xf32> -> vector<2x128xf32>
    %c0_168 = arith.constant 0 : index
    %c0_169 = arith.constant 0 : index
    %287 = vector.load %arg11[%c0_168, %c0_169] : memref<1x128xf32, #tpu.memory_space<vmem>>, vector<1x128xf32>
    %288 = vector.broadcast %287 : vector<1x128xf32> to vector<2x128xf32>
    %289 = arith.addf %286, %288 : vector<2x128xf32>
    %cst_170 = arith.constant 0.000000e+00 : f32
    %290 = vector.broadcast %cst_170 : f32 to vector<2x128xf32>
    %291 = arith.maximumf %289, %290 : vector<2x128xf32>
    %292 = arith.truncf %291 : vector<2x128xf32> to vector<2x128xbf16>
    %c0_171 = arith.constant 0 : index
    %c0_172 = arith.constant 0 : index
    %293 = vector.load %arg12[%c0_171, %c0_172] : memref<128x128xbf16, #tpu.memory_space<vmem>>, vector<128x128xbf16>
    %cst_173 = arith.constant dense<0.000000e+00> : vector<2x128xf32>
    %294 = tpu.matmul %292, %293, %cst_173 {dimension_numbers = #tpu.dot_dimension_numbers<[1], [0], [0], [1], [0, 0, 1, 1], [], []>} : vector<2x128xbf16>, vector<128x128xbf16>, vector<2x128xf32> -> vector<2x128xf32>
    %c0_174 = arith.constant 0 : index
    %c0_175 = arith.constant 0 : index
    %295 = vector.load %arg13[%c0_174, %c0_175] : memref<1x128xf32, #tpu.memory_space<vmem>>, vector<1x128xf32>
    %296 = vector.broadcast %295 : vector<1x128xf32> to vector<2x128xf32>
    %297 = arith.addf %294, %296 : vector<2x128xf32>
    %c0_176 = arith.constant 0 : index
    %c0_177 = arith.constant 0 : index
    %298 = vector.load %arg14[%c0_176, %c0_177] : memref<2x128xf32, #tpu.memory_space<vmem>>, vector<2x128xf32>
    tpu.vector_store %arg14[%c0_176, %c0_177], %297 {strides = array<i32>} : memref<2x128xf32, #tpu.memory_space<vmem>>, vector<2x128xf32>,
    return
  }
  func.func @transform_0(%arg0: i32) -> (i32, i32) {
    %c0_i32 = arith.constant 0 : i32
    %c0_i32_0 = arith.constant 0 : i32
    return %arg0, %c0_i32 : i32, i32
  }
  func.func @transform_1(%arg0: i32) -> (i32, i32) {
    %c0_i32 = arith.constant 0 : i32
    %c0_i32_0 = arith.constant 0 : i32
    %c0_i32_1 = arith.constant 0 : i32
    return %c0_i32, %c0_i32_0 : i32, i32
  }
  func.func @transform_2(%arg0: i32) -> (i32, i32) {
    %c0_i32 = arith.constant 0 : i32
    %c0_i32_0 = arith.constant 0 : i32
    %c0_i32_1 = arith.constant 0 : i32
    return %c0_i32, %c0_i32_0 : i32, i32
  }
  func.func @transform_3(%arg0: i32) -> (i32, i32, i32) {
    %c0_i32 = arith.constant 0 : i32
    %c0_i32_0 = arith.constant 0 : i32
    %c0_i32_1 = arith.constant 0 : i32
    %c0_i32_2 = arith.constant 0 : i32
    return %c0_i32, %c0_i32_0, %c0_i32_1 : i32, i32, i32
  }
  func.func @transform_4(%arg0: i32) -> (i32, i32) {
    %c0_i32 = arith.constant 0 : i32
    %c0_i32_0 = arith.constant 0 : i32
    %c0_i32_1 = arith.constant 0 : i32
    return %c0_i32, %c0_i32_0 : i32, i32
  }
  func.func @transform_5(%arg0: i32) -> (i32, i32, i32) {
    %c0_i32 = arith.constant 0 : i32
    %c0_i32_0 = arith.constant 0 : i32
    %c0_i32_1 = arith.constant 0 : i32
    %c0_i32_2 = arith.constant 0 : i32
    return %c0_i32, %c0_i32_0, %c0_i32_1 : i32, i32, i32
  }
  func.func @transform_6(%arg0: i32) -> (i32, i32) {
    %c0_i32 = arith.constant 0 : i32
    %c0_i32_0 = arith.constant 0 : i32
    %c0_i32_1 = arith.constant 0 : i32
    return %c0_i32, %c0_i32_0 : i32, i32
  }
  func.func @transform_7(%arg0: i32) -> (i32, i32) {
    %c0_i32 = arith.constant 0 : i32
    %c0_i32_0 = arith.constant 0 : i32
    %c0_i32_1 = arith.constant 0 : i32
    return %c0_i32, %c0_i32_0 : i32, i32
  }
  func.func @transform_8(%arg0: i32) -> (i32, i32) {
    %c0_i32 = arith.constant 0 : i32
    %c0_i32_0 = arith.constant 0 : i32
    %c0_i32_1 = arith.constant 0 : i32
    return %c0_i32, %c0_i32_0 : i32, i32
  }
  func.func @transform_9(%arg0: i32) -> (i32, i32) {
    %c0_i32 = arith.constant 0 : i32
    %c0_i32_0 = arith.constant 0 : i32
    %c0_i32_1 = arith.constant 0 : i32
    return %c0_i32, %c0_i32_0 : i32, i32
  }
  func.func @transform_10(%arg0: i32) -> (i32, i32) {
    %c0_i32 = arith.constant 0 : i32
    %c0_i32_0 = arith.constant 0 : i32
    %c0_i32_1 = arith.constant 0 : i32
    return %c0_i32, %c0_i32_0 : i32, i32
  }
  func.func @transform_11(%arg0: i32) -> (i32, i32) {
    %c0_i32 = arith.constant 0 : i32
    %c0_i32_0 = arith.constant 0 : i32
    %c0_i32_1 = arith.constant 0 : i32
    return %c0_i32, %c0_i32_0 : i32, i32
  }
  func.func @transform_12(%arg0: i32) -> (i32, i32) {
    %c0_i32 = arith.constant 0 : i32
    %c0_i32_0 = arith.constant 0 : i32
    %c0_i32_1 = arith.constant 0 : i32
    return %c0_i32, %c0_i32_0 : i32, i32
  }
  func.func @transform_13(%arg0: i32) -> (i32, i32) {
    %c0_i32 = arith.constant 0 : i32
    %c0_i32_0 = arith.constant 0 : i32
    return %arg0, %c0_i32 : i32, i32
  }
}

</mosaic_0001>

<llo_original>
// kernel: fried_conv_forward.1
$region0: #{fried_conv_forward.1}
  #allocation0 [shape = 'u32[]', space=smem, size = 0x4, offset = 0x4, fixed_abs, tag = 'smem constant byte address 0x4 - core index']
  #allocation1 [shape = 'u32[72,128]{1,0:T(1,128)}', space=vmem, size = 0x9000, scoped, tag = 'internal scratch']
  #allocation2 [shape = 'f32[2,18,128]{2,1,0:T(8,128)}', space=vmem, size = 0x6000, scoped, tag = 'scratch operand']
  #allocation3 [shape = 'bf16[2,2048]{1,0:T(2,128)(2,1)}', space=vmem, size = 0x2000, scoped, tag = 'scratch operand']
  %s0 = inlined_call_operand.hbm [shape: f32[2,16], index: 0, kind: input, shape index: {}]
  %s1 = inlined_call_operand.hbm [shape: bf16[16,2048], index: 1, kind: input, shape index: {}]
  %s2 = inlined_call_operand.hbm [shape: f32[1,2048], index: 2, kind: input, shape index: {}]
  %s3 = inlined_call_operand.hbm [shape: bf16[3,128,128], index: 3, kind: input, shape index: {}]
  %s4 = inlined_call_operand.vmem [shape: f32[1,128], index: 4, kind: input, shape index: {}]
  %s5 = inlined_call_operand.hbm [shape: bf16[3,128,128], index: 5, kind: input, shape index: {}]
  %s6 = inlined_call_operand.vmem [shape: f32[1,128], index: 6, kind: input, shape index: {}]
  %s7 = inlined_call_operand.hbm [shape: bf16[2048,128], index: 7, kind: input, shape index: {}]
  %s8 = inlined_call_operand.vmem [shape: f32[1,128], index: 8, kind: input, shape index: {}]
  %s9 = inlined_call_operand.hbm [shape: bf16[128,128], index: 9, kind: input, shape index: {}]
  %s10 = inlined_call_operand.vmem [shape: f32[1,128], index: 10, kind: input, shape index: {}]
  %s11 = inlined_call_operand.hbm [shape: bf16[128,128], index: 11, kind: input, shape index: {}]
  %s12 = inlined_call_operand.vmem [shape: f32[1,128], index: 12, kind: input, shape index: {}]
  %s13 = inlined_call_operand.vmem [shape: f32[2,128], index: 13, kind: output, shape index: {}]
  %s14 = sld [smem:[#allocation0]]
  $region94: #{fried_conv_forward.1} parent=0
    _
  %s16 = ssub.s32 1, %s14
  %s17 = scalar_select 0, %s16, %s14
  $region1: #{fried_conv_forward.1} parent=0
    #allocation4 [shape = 'u8[1024]{0}', space=vmem, size = 0x400, scoped, tag = 'input window, operand 0, single buffered']
    #allocation5 [shape = 's32[1]{0}', space=sflag, size = 0x4, scoped, tag = 'scoped memory for fried_conv_forward.1']
    #allocation6 [shape = 'u8[65536]{0}', space=vmem, size = 0x10000, scoped, tag = 'input window, operand 1, single buffered']
    #allocation7 [shape = 's32[1]{0}', space=sflag, size = 0x4, scoped, tag = 'scoped memory for fried_conv_forward.1']
    #allocation8 [shape = 'u8[8192]{0}', space=vmem, size = 0x2000, scoped, tag = 'input window, operand 2, single buffered']
    #allocation9 [shape = 'u8[98304]{0}', space=vmem, size = 0x18000, scoped, tag = 'input window, operand 3, single buffered']
    #allocation10 [shape = 's32[1]{0}', space=sflag, size = 0x4, scoped, tag = 'scoped memory for fried_conv_forward.1']
    #allocation11 [shape = 'u8[98304]{0}', space=vmem, size = 0x18000, scoped, tag = 'input window, operand 5, single buffered']
    #allocation12 [shape = 'u8[524288]{0}', space=vmem, size = 0x80000, scoped, tag = 'input window, operand 7, single buffered']
    #allocation13 [shape = 's32[1]{0}', space=sflag, size = 0x4, scoped, tag = 'scoped memory for fried_conv_forward.1']
    #allocation14 [shape = 'u8[32768]{0}', space=vmem, size = 0x8000, scoped, tag = 'input window, operand 9, single buffered']
    #allocation15 [shape = 'u8[32768]{0}', space=vmem, size = 0x8000, scoped, tag = 'input window, operand 11, single buffered']
    #allocation16 [shape = 's32[1]{0}', space=sflag, size = 0x4, scoped, tag = 'scoped memory for fried_conv_forward.1']
    %18 = vsyncpa [#allocation5], 0
    %19 = vsyncpa [#allocation7], 0
    %20 = vsyncpa [#allocation10], 0
    %21 = vsyncpa [#allocation13], 0
    %22 = vsyncpa [#allocation16], 0
    // Predicated region
    $region2: #{fried_conv_forward.1} parent=1 // pred_check
      _
    $region3: #{fried_conv_forward.1} parent=1 // pred_check_branch
      %24 = sbr.rel (0) target = $region5
    $region4: #{fried_conv_forward.1} parent=1 // pred_region
      %26 = vsyncadd [#allocation5], 0
      %s28 = sshll.u32 %s0, 4
      %s29 = int_to_ptr.hbm [resolvable:$true] %s28
      %s30 = sshll.u32 [#allocation4], 4
      %s31 = int_to_ptr.vmem [resolvable:$true] %s30
      %33 = dma.hbm_to_vmem [thread:$0]  %s29, 32, %s31, [#allocation5]
    $region5: #{fried_conv_forward.1} parent=1 // pred_fallthru
      _
    // Predicated region
    $region6: #{fried_conv_forward.1} parent=1 // pred_check
      _
    $region7: #{fried_conv_forward.1} parent=1 // pred_check_branch
      %35 = sbr.rel (0) target = $region9
    $region8: #{fried_conv_forward.1} parent=1 // pred_region
      %37 = vsyncadd [#allocation7], 0
      %s38 = sshll.u32 %s1, 4
      %s39 = int_to_ptr.hbm [resolvable:$true] %s38
      %s40 = sshll.u32 [#allocation6], 4
      %s41 = int_to_ptr.vmem [resolvable:$true] %s40
      %46 = dma.hbm_to_vmem [thread:$0]  %s39, 2048, %s41, [#allocation7], 1024, 1024, 64
    $region9: #{fried_conv_forward.1} parent=1 // pred_fallthru
      _
    // Predicated region
    $region10: #{fried_conv_forward.1} parent=1 // pred_check
      _
    $region11: #{fried_conv_forward.1} parent=1 // pred_check_branch
      %48 = sbr.rel (0) target = $region13
    $region12: #{fried_conv_forward.1} parent=1 // pred_region
      %50 = vsyncadd [#allocation7], 0
      %s52 = sshll.u32 %s2, 4
      %s53 = int_to_ptr.hbm [resolvable:$true] %s52
      %s54 = sshll.u32 [#allocation8], 4
      %s55 = int_to_ptr.vmem [resolvable:$true] %s54
      %57 = dma.hbm_to_vmem [thread:$0]  %s53, 256, %s55, [#allocation7]
    $region13: #{fried_conv_forward.1} parent=1 // pred_fallthru
      _
    // Predicated region
    $region14: #{fried_conv_forward.1} parent=1 // pred_check
      _
    $region15: #{fried_conv_forward.1} parent=1 // pred_check_branch
      %59 = sbr.rel (0) target = $region17
    $region16: #{fried_conv_forward.1} parent=1 // pred_region
      %61 = vsyncadd [#allocation10], 0
      %s62 = sshll.u32 %s3, 4
      %s63 = int_to_ptr.hbm [resolvable:$true] %s62
      %s64 = sshll.u32 [#allocation9], 4
      %s65 = int_to_ptr.vmem [resolvable:$true] %s64
      %70 = dma.hbm_to_vmem [thread:$0]  %s63, 3072, %s65, [#allocation10], 64, 64, 4
    $region17: #{fried_conv_forward.1} parent=1 // pred_fallthru
      _
    // Predicated region
    $region18: #{fried_conv_forward.1} parent=1 // pred_check
      _
    $region19: #{fried_conv_forward.1} parent=1 // pred_check_branch
      %72 = sbr.rel (0) target = $region21
    $region20: #{fried_conv_forward.1} parent=1 // pred_region
      _
    $region21: #{fried_conv_forward.1} parent=1 // pred_fallthru
      _
    // Predicated region
    $region22: #{fried_conv_forward.1} parent=1 // pred_check
      _
    $region23: #{fried_conv_forward.1} parent=1 // pred_check_branch
      %74 = sbr.rel (0) target = $region25
    $region24: #{fried_conv_forward.1} parent=1 // pred_region
      %76 = vsyncadd [#allocation10], 0
      %s77 = sshll.u32 %s5, 4
      %s78 = int_to_ptr.hbm [resolvable:$true] %s77
      %s79 = sshll.u32 [#allocation11], 4
      %s80 = int_to_ptr.vmem [resolvable:$true] %s79
      %85 = dma.hbm_to_vmem [thread:$0]  %s78, 3072, %s80, [#allocation10], 64, 64, 4
    $region25: #{fried_conv_forward.1} parent=1 // pred_fallthru
      _
    // Predicated region
    $region26: #{fried_conv_forward.1} parent=1 // pred_check
      _
    $region27: #{fried_conv_forward.1} parent=1 // pred_check_branch
      %87 = sbr.rel (0) target = $region29
    $region28: #{fried_conv_forward.1} parent=1 // pred_region
      _
    $region29: #{fried_conv_forward.1} parent=1 // pred_fallthru
      _
    // Predicated region
    $region30: #{fried_conv_forward.1} parent=1 // pred_check
      _
    $region31: #{fried_conv_forward.1} parent=1 // pred_check_branch
      %89 = sbr.rel (0) target = $region33
    $region32: #{fried_conv_forward.1} parent=1 // pred_region
      %91 = vsyncadd [#allocation13], 0
      %s92 = sshll.u32 %s7, 4
      %s93 = int_to_ptr.hbm [resolvable:$true] %s92
      %s94 = sshll.u32 [#allocation12], 4
      %s95 = int_to_ptr.vmem [resolvable:$true] %s94
      %100 = dma.hbm_to_vmem [thread:$0]  %s93, 16384, %s95, [#allocation13], 64, 64, 4
    $region33: #{fried_conv_forward.1} parent=1 // pred_fallthru
      _
    // Predicated region
    $region34: #{fried_conv_forward.1} parent=1 // pred_check
      _
    $region35: #{fried_conv_forward.1} parent=1 // pred_check_branch
      %102 = sbr.rel (0) target = $region37
    $region36: #{fried_conv_forward.1} parent=1 // pred_region
      _
    $region37: #{fried_conv_forward.1} parent=1 // pred_fallthru
      _
    // Predicated region
    $region38: #{fried_conv_forward.1} parent=1 // pred_check
      _
    $region39: #{fried_conv_forward.1} parent=1 // pred_check_branch
      %104 = sbr.rel (0) target = $region41
    $region40: #{fried_conv_forward.1} parent=1 // pred_region
      %106 = vsyncadd [#allocation13], 0
      %s107 = sshll.u32 %s9, 4
      %s108 = int_to_ptr.hbm [resolvable:$true] %s107
      %s109 = sshll.u32 [#allocation14], 4
      %s110 = int_to_ptr.vmem [resolvable:$true] %s109
      %115 = dma.hbm_to_vmem [thread:$0]  %s108, 1024, %s110, [#allocation13], 64, 64, 4
    $region41: #{fried_conv_forward.1} parent=1 // pred_fallthru
      _
    // Predicated region
    $region42: #{fried_conv_forward.1} parent=1 // pred_check
      _
    $region43: #{fried_conv_forward.1} parent=1 // pred_check_branch
      %117 = sbr.rel (0) target = $region45
    $region44: #{fried_conv_forward.1} parent=1 // pred_region
      _
    $region45: #{fried_conv_forward.1} parent=1 // pred_fallthru
      _
    // Predicated region
    $region46: #{fried_conv_forward.1} parent=1 // pred_check
      _
    $region47: #{fried_conv_forward.1} parent=1 // pred_check_branch
      %119 = sbr.rel (0) target = $region49
    $region48: #{fried_conv_forward.1} parent=1 // pred_region
      %121 = vsyncadd [#allocation16], 0
      %s122 = sshll.u32 %s11, 4
      %s123 = int_to_ptr.hbm [resolvable:$true] %s122
      %s124 = sshll.u32 [#allocation15], 4
      %s125 = int_to_ptr.vmem [resolvable:$true] %s124
      %130 = dma.hbm_to_vmem [thread:$0]  %s123, 1024, %s125, [#allocation16], 64, 64, 4
    $region49: #{fried_conv_forward.1} parent=1 // pred_fallthru
      _
    // Predicated region
    $region50: #{fried_conv_forward.1} parent=1 // pred_check
      _
    $region51: #{fried_conv_forward.1} parent=1 // pred_check_branch
      %132 = sbr.rel (0) target = $region53
    $region52: #{fried_conv_forward.1} parent=1 // pred_region
      _
    $region53: #{fried_conv_forward.1} parent=1 // pred_fallthru
      _
    // Predicated region
    $region54: #{fried_conv_forward.1} parent=1 // pred_check
      _
    $region55: #{fried_conv_forward.1} parent=1 // pred_check_branch
      %134 = sbr.rel (0) target = $region57
    $region56: #{fried_conv_forward.1} parent=1 // pred_region
      %136 = dma.done [#allocation5], 32
    $region57: #{fried_conv_forward.1} parent=1 // pred_fallthru
      _
    // Predicated region
    $region58: #{fried_conv_forward.1} parent=1 // pred_check
      _
    $region59: #{fried_conv_forward.1} parent=1 // pred_check_branch
      %138 = sbr.rel (0) target = $region61
    $region60: #{fried_conv_forward.1} parent=1 // pred_region
      %140 = dma.done [#allocation7], 2048
    $region61: #{fried_conv_forward.1} parent=1 // pred_fallthru
      _
    // Predicated region
    $region62: #{fried_conv_forward.1} parent=1 // pred_check
      _
    $region63: #{fried_conv_forward.1} parent=1 // pred_check_branch
      %142 = sbr.rel (0) target = $region65
    $region64: #{fried_conv_forward.1} parent=1 // pred_region
      %144 = dma.done [#allocation7], 256
    $region65: #{fried_conv_forward.1} parent=1 // pred_fallthru
      _
    // Predicated region
    $region66: #{fried_conv_forward.1} parent=1 // pred_check
      _
    $region67: #{fried_conv_forward.1} parent=1 // pred_check_branch
      %146 = sbr.rel (0) target = $region69
    $region68: #{fried_conv_forward.1} parent=1 // pred_region
      %148 = dma.done [#allocation10], 3072
    $region69: #{fried_conv_forward.1} parent=1 // pred_fallthru
      _
    // Predicated region
    $region70: #{fried_conv_forward.1} parent=1 // pred_check
      _
    $region71: #{fried_conv_forward.1} parent=1 // pred_check_branch
      %150 = sbr.rel (0) target = $region73
    $region72: #{fried_conv_forward.1} parent=1 // pred_region
      %152 = dma.done [#allocation10], 3072
    $region73: #{fried_conv_forward.1} parent=1 // pred_fallthru
      _
    // Predicated region
    $region74: #{fried_conv_forward.1} parent=1 // pred_check
      _
    $region75: #{fried_conv_forward.1} parent=1 // pred_check_branch
      %154 = sbr.rel (0) target = $region77
    $region76: #{fried_conv_forward.1} parent=1 // pred_region
      %156 = dma.done [#allocation13], 16384
    $region77: #{fried_conv_forward.1} parent=1 // pred_fallthru
      _
    // Predicated region
    $region78: #{fried_conv_forward.1} parent=1 // pred_check
      _
    $region79: #{fried_conv_forward.1} parent=1 // pred_check_branch
      %158 = sbr.rel (0) target = $region81
    $region80: #{fried_conv_forward.1} parent=1 // pred_region
      %160 = dma.done [#allocation13], 1024
    $region81: #{fried_conv_forward.1} parent=1 // pred_fallthru
      _
    // Predicated region
    $region82: #{fried_conv_forward.1} parent=1 // pred_check
      _
    $region83: #{fried_conv_forward.1} parent=1 // pred_check_branch
      %162 = sbr.rel (0) target = $region85
    $region84: #{fried_conv_forward.1} parent=1 // pred_region
      %164 = dma.done [#allocation16], 1024
    $region85: #{fried_conv_forward.1} parent=1 // pred_fallthru
      _
    %v166 = vld [vmem:[#allocation4] sm:$0x3]
    %v167 = vpack.c.bf16 %v166, %v166
    %v168 = vld [vmem:[#allocation6] sm:$0xff]
    %v169 = vld [vmem:[#allocation6 + $0x8] sm:$0xff]
    %v170 = vld [vmem:[#allocation6 + $0x10] sm:$0xff]
    %v171 = vld [vmem:[#allocation6 + $0x18] sm:$0xff]
    %v172 = vld [vmem:[#allocation6 + $0x20] sm:$0xff]
    %v173 = vld [vmem:[#allocation6 + $0x28] sm:$0xff]
    %v174 = vld [vmem:[#allocation6 + $0x30] sm:$0xff]
    %v175 = vld [vmem:[#allocation6 + $0x38] sm:$0xff]
    %v176 = vld [vmem:[#allocation6 + $0x40] sm:$0xff]
    %v177 = vld [vmem:[#allocation6 + $0x48] sm:$0xff]
    %v178 = vld [vmem:[#allocation6 + $0x50] sm:$0xff]
    %v179 = vld [vmem:[#allocation6 + $0x58] sm:$0xff]
    %v180 = vld [vmem:[#allocation6 + $0x60] sm:$0xff]
    %v181 = vld [vmem:[#allocation6 + $0x68] sm:$0xff]
    %v182 = vld [vmem:[#allocation6 + $0x70] sm:$0xff]
    %v183 = vld [vmem:[#allocation6 + $0x78] sm:$0xff]
    %v184 = vld [vmem:[#allocation8] sm:$0xff]
    %v185 = vld [vmem:[#allocation8 + $0x8] sm:$0xff]
    %v188 = vperm.slane %v184, 0
    %v189 = vperm.slane %v184, 1
    %v190 = vperm.slane %v184, 2
    %v191 = vperm.slane %v184, 3
    %v192 = vperm.slane %v184, 4
    %v193 = vperm.slane %v184, 5
    %v194 = vperm.slane %v184, 6
    %v195 = vperm.slane %v184, 7
    %v196 = vperm.slane %v185, 0
    %v197 = vperm.slane %v185, 1
    %v198 = vperm.slane %v185, 2
    %v199 = vperm.slane %v185, 3
    %v200 = vperm.slane %v185, 4
    %v201 = vperm.slane %v185, 5
    %v202 = vperm.slane %v185, 6
    %v203 = vperm.slane %v185, 7
    %v236 = vunpack.c.l.b16 %v168
    %v237 = vunpack.c.h.b16 %v168
    %v238 = vunpack.c.l.b16 %v169
    %v239 = vunpack.c.h.b16 %v169
    %v240 = vunpack.c.l.b16 %v170
    %v241 = vunpack.c.h.b16 %v170
    %v242 = vunpack.c.l.b16 %v171
    %v243 = vunpack.c.h.b16 %v171
    %v244 = vunpack.c.l.b16 %v172
    %v245 = vunpack.c.h.b16 %v172
    %v246 = vunpack.c.l.b16 %v173
    %v247 = vunpack.c.h.b16 %v173
    %v248 = vunpack.c.l.b16 %v174
    %v249 = vunpack.c.h.b16 %v174
    %v250 = vunpack.c.l.b16 %v175
    %v251 = vunpack.c.h.b16 %v175
    %v252 = vunpack.c.l.b16 %v176
    %v253 = vunpack.c.h.b16 %v176
    %v254 = vunpack.c.l.b16 %v177
    %v255 = vunpack.c.h.b16 %v177
    %v256 = vunpack.c.l.b16 %v178
    %v257 = vunpack.c.h.b16 %v178
    %v258 = vunpack.c.l.b16 %v179
    %v259 = vunpack.c.h.b16 %v179
    %v260 = vunpack.c.l.b16 %v180
    %v261 = vunpack.c.h.b16 %v180
    %v262 = vunpack.c.l.b16 %v181
    %v263 = vunpack.c.h.b16 %v181
    %v264 = vunpack.c.l.b16 %v182
    %v265 = vunpack.c.h.b16 %v182
    %v266 = vunpack.c.l.b16 %v183
    %v267 = vunpack.c.h.b16 %v183
    %v268 = vpack.c.b16 %v252, %v236
    %v269 = vpack.c.b16 %v253, %v237
    %v270 = vpack.c.b16 %v254, %v238
    %v271 = vpack.c.b16 %v255, %v239
    %v272 = vpack.c.b16 %v256, %v240
    %v273 = vpack.c.b16 %v257, %v241
    %v274 = vpack.c.b16 %v258, %v242
    %v275 = vpack.c.b16 %v259, %v243
    %v276 = vpack.c.b16 %v260, %v244
    %v277 = vpack.c.b16 %v261, %v245
    %v278 = vpack.c.b16 %v262, %v246
    %v279 = vpack.c.b16 %v263, %v247
    %v280 = vpack.c.b16 %v264, %v248
    %v281 = vpack.c.b16 %v265, %v249
    %v282 = vpack.c.b16 %v266, %v250
    %v283 = vpack.c.b16 %v267, %v251
    %vm300 = vcmask 130048
    %v302 = vsel %vm300, %v167, 0
    %304 = vmatpush.bf16.msra.mxu0 0
    %305 = vmatpush.bf16.msra.mxu0 0
    %306 = vmatpush.bf16.msra.mxu0 0
    %307 = vmatpush.bf16.msra.mxu0 0
    %308 = vmatpush.bf16.msra.mxu0 0
    %309 = vmatpush.bf16.msra.mxu0 0
    %310 = vmatpush.bf16.msra.mxu0 0
    %311 = vmatpush.bf16.msra.mxu0 %v268
    %312 = vmatmul.bf16.gmra.mxu0 %v302
    %v313 = vpop.f32.mrf.mxu0
    %v314 = vadd.f32 %v188, %v313
    %v315 = vpop.f32.mrf.mxu0
    %316 = vdwg.mxu0
    %317 = vmatpush.bf16.msra.mxu0 0
    %318 = vmatpush.bf16.msra.mxu0 0
    %319 = vmatpush.bf16.msra.mxu0 0
    %320 = vmatpush.bf16.msra.mxu0 0
    %321 = vmatpush.bf16.msra.mxu0 0
    %322 = vmatpush.bf16.msra.mxu0 0
    %323 = vmatpush.bf16.msra.mxu0 0
    %324 = vmatpush.bf16.msra.mxu0 %v269
    %325 = vmatmul.bf16.gmra.mxu0 %v302
    %v326 = vpop.f32.mrf.mxu0
    %v327 = vadd.f32 %v189, %v326
    %v328 = vpop.f32.mrf.mxu0
    %329 = vdwg.mxu0
    %330 = vmatpush.bf16.msra.mxu0 0
    %331 = vmatpush.bf16.msra.mxu0 0
    %332 = vmatpush.bf16.msra.mxu0 0
    %333 = vmatpush.bf16.msra.mxu0 0
    %334 = vmatpush.bf16.msra.mxu0 0
    %335 = vmatpush.bf16.msra.mxu0 0
    %336 = vmatpush.bf16.msra.mxu0 0
    %337 = vmatpush.bf16.msra.mxu0 %v270
    %338 = vmatmul.bf16.gmra.mxu0 %v302
    %v339 = vpop.f32.mrf.mxu0
    %v340 = vadd.f32 %v190, %v339
    %v341 = vpop.f32.mrf.mxu0
    %342 = vdwg.mxu0
    %343 = vmatpush.bf16.msra.mxu0 0
    %344 = vmatpush.bf16.msra.mxu0 0
    %345 = vmatpush.bf16.msra.mxu0 0
    %346 = vmatpush.bf16.msra.mxu0 0
    %347 = vmatpush.bf16.msra.mxu0 0
    %348 = vmatpush.bf16.msra.mxu0 0
    %349 = vmatpush.bf16.msra.mxu0 0
    %350 = vmatpush.bf16.msra.mxu0 %v271
    %351 = vmatmul.bf16.gmra.mxu0 %v302
    %v352 = vpop.f32.mrf.mxu0
    %v353 = vadd.f32 %v191, %v352
    %v354 = vpop.f32.mrf.mxu0
    %355 = vdwg.mxu0
    %356 = vmatpush.bf16.msra.mxu0 0
    %357 = vmatpush.bf16.msra.mxu0 0
    %358 = vmatpush.bf16.msra.mxu0 0
    %359 = vmatpush.bf16.msra.mxu0 0
    %360 = vmatpush.bf16.msra.mxu0 0
    %361 = vmatpush.bf16.msra.mxu0 0
    %362 = vmatpush.bf16.msra.mxu0 0
    %363 = vmatpush.bf16.msra.mxu0 %v272
    %364 = vmatmul.bf16.gmra.mxu0 %v302
    %v365 = vpop.f32.mrf.mxu0
    %v366 = vadd.f32 %v192, %v365
    %v367 = vpop.f32.mrf.mxu0
    %368 = vdwg.mxu0
    %369 = vmatpush.bf16.msra.mxu0 0
    %370 = vmatpush.bf16.msra.mxu0 0
    %371 = vmatpush.bf16.msra.mxu0 0
    %372 = vmatpush.bf16.msra.mxu0 0
    %373 = vmatpush.bf16.msra.mxu0 0
    %374 = vmatpush.bf16.msra.mxu0 0
    %375 = vmatpush.bf16.msra.mxu0 0
    %376 = vmatpush.bf16.msra.mxu0 %v273
    %377 = vmatmul.bf16.gmra.mxu0 %v302
    %v378 = vpop.f32.mrf.mxu0
    %v379 = vadd.f32 %v193, %v378
    %v380 = vpop.f32.mrf.mxu0
    %381 = vdwg.mxu0
    %382 = vmatpush.bf16.msra.mxu0 0
    %383 = vmatpush.bf16.msra.mxu0 0
    %384 = vmatpush.bf16.msra.mxu0 0
    %385 = vmatpush.bf16.msra.mxu0 0
    %386 = vmatpush.bf16.msra.mxu0 0
    %387 = vmatpush.bf16.msra.mxu0 0
    %388 = vmatpush.bf16.msra.mxu0 0
    %389 = vmatpush.bf16.msra.mxu0 %v274
    %390 = vmatmul.bf16.gmra.mxu0 %v302
    %v391 = vpop.f32.mrf.mxu0
    %v392 = vadd.f32 %v194, %v391
    %v393 = vpop.f32.mrf.mxu0
    %394 = vdwg.mxu0
    %395 = vmatpush.bf16.msra.mxu0 0
    %396 = vmatpush.bf16.msra.mxu0 0
    %397 = vmatpush.bf16.msra.mxu0 0
    %398 = vmatpush.bf16.msra.mxu0 0
    %399 = vmatpush.bf16.msra.mxu0 0
    %400 = vmatpush.bf16.msra.mxu0 0
    %401 = vmatpush.bf16.msra.mxu0 0
    %402 = vmatpush.bf16.msra.mxu0 %v275
    %403 = vmatmul.bf16.gmra.mxu0 %v302
    %v404 = vpop.f32.mrf.mxu0
    %v405 = vadd.f32 %v195, %v404
    %v406 = vpop.f32.mrf.mxu0
    %407 = vdwg.mxu0
    %408 = vmatpush.bf16.msra.mxu0 0
    %409 = vmatpush.bf16.msra.mxu0 0
    %410 = vmatpush.bf16.msra.mxu0 0
    %411 = vmatpush.bf16.msra.mxu0 0
    %412 = vmatpush.bf16.msra.mxu0 0
    %413 = vmatpush.bf16.msra.mxu0 0
    %414 = vmatpush.bf16.msra.mxu0 0
    %415 = vmatpush.bf16.msra.mxu0 %v276
    %416 = vmatmul.bf16.gmra.mxu0 %v302
    %v417 = vpop.f32.mrf.mxu0
    %v418 = vadd.f32 %v196, %v417
    %v419 = vpop.f32.mrf.mxu0
    %420 = vdwg.mxu0
    %421 = vmatpush.bf16.msra.mxu0 0
    %422 = vmatpush.bf16.msra.mxu0 0
    %423 = vmatpush.bf16.msra.mxu0 0
    %424 = vmatpush.bf16.msra.mxu0 0
    %425 = vmatpush.bf16.msra.mxu0 0
    %426 = vmatpush.bf16.msra.mxu0 0
    %427 = vmatpush.bf16.msra.mxu0 0
    %428 = vmatpush.bf16.msra.mxu0 %v277
    %429 = vmatmul.bf16.gmra.mxu0 %v302
    %v430 = vpop.f32.mrf.mxu0
    %v431 = vadd.f32 %v197, %v430
    %v432 = vpop.f32.mrf.mxu0
    %433 = vdwg.mxu0
    %434 = vmatpush.bf16.msra.mxu0 0
    %435 = vmatpush.bf16.msra.mxu0 0
    %436 = vmatpush.bf16.msra.mxu0 0
    %437 = vmatpush.bf16.msra.mxu0 0
    %438 = vmatpush.bf16.msra.mxu0 0
    %439 = vmatpush.bf16.msra.mxu0 0
    %440 = vmatpush.bf16.msra.mxu0 0
    %441 = vmatpush.bf16.msra.mxu0 %v278
    %442 = vmatmul.bf16.gmra.mxu0 %v302
    %v443 = vpop.f32.mrf.mxu0
    %v444 = vadd.f32 %v198, %v443
    %v445 = vpop.f32.mrf.mxu0
    %446 = vdwg.mxu0
    %447 = vmatpush.bf16.msra.mxu0 0
    %448 = vmatpush.bf16.msra.mxu0 0
    %449 = vmatpush.bf16.msra.mxu0 0
    %450 = vmatpush.bf16.msra.mxu0 0
    %451 = vmatpush.bf16.msra.mxu0 0
    %452 = vmatpush.bf16.msra.mxu0 0
    %453 = vmatpush.bf16.msra.mxu0 0
    %454 = vmatpush.bf16.msra.mxu0 %v279
    %455 = vmatmul.bf16.gmra.mxu0 %v302
    %v456 = vpop.f32.mrf.mxu0
    %v457 = vadd.f32 %v199, %v456
    %v458 = vpop.f32.mrf.mxu0
    %459 = vdwg.mxu0
    %460 = vmatpush.bf16.msra.mxu0 0
    %461 = vmatpush.bf16.msra.mxu0 0
    %462 = vmatpush.bf16.msra.mxu0 0
    %463 = vmatpush.bf16.msra.mxu0 0
    %464 = vmatpush.bf16.msra.mxu0 0
    %465 = vmatpush.bf16.msra.mxu0 0
    %466 = vmatpush.bf16.msra.mxu0 0
    %467 = vmatpush.bf16.msra.mxu0 %v280
    %468 = vmatmul.bf16.gmra.mxu0 %v302
    %v469 = vpop.f32.mrf.mxu0
    %v470 = vadd.f32 %v200, %v469
    %v471 = vpop.f32.mrf.mxu0
    %472 = vdwg.mxu0
    %473 = vmatpush.bf16.msra.mxu0 0
    %474 = vmatpush.bf16.msra.mxu0 0
    %475 = vmatpush.bf16.msra.mxu0 0
    %476 = vmatpush.bf16.msra.mxu0 0
    %477 = vmatpush.bf16.msra.mxu0 0
    %478 = vmatpush.bf16.msra.mxu0 0
    %479 = vmatpush.bf16.msra.mxu0 0
    %480 = vmatpush.bf16.msra.mxu0 %v281
    %481 = vmatmul.bf16.gmra.mxu0 %v302
    %v482 = vpop.f32.mrf.mxu0
    %v483 = vadd.f32 %v201, %v482
    %v484 = vpop.f32.mrf.mxu0
    %485 = vdwg.mxu0
    %486 = vmatpush.bf16.msra.mxu0 0
    %487 = vmatpush.bf16.msra.mxu0 0
    %488 = vmatpush.bf16.msra.mxu0 0
    %489 = vmatpush.bf16.msra.mxu0 0
    %490 = vmatpush.bf16.msra.mxu0 0
    %491 = vmatpush.bf16.msra.mxu0 0
    %492 = vmatpush.bf16.msra.mxu0 0
    %493 = vmatpush.bf16.msra.mxu0 %v282
    %494 = vmatmul.bf16.gmra.mxu0 %v302
    %v495 = vpop.f32.mrf.mxu0
    %v496 = vadd.f32 %v202, %v495
    %v497 = vpop.f32.mrf.mxu0
    %498 = vdwg.mxu0
    %499 = vmatpush.bf16.msra.mxu0 0
    %500 = vmatpush.bf16.msra.mxu0 0
    %501 = vmatpush.bf16.msra.mxu0 0
    %502 = vmatpush.bf16.msra.mxu0 0
    %503 = vmatpush.bf16.msra.mxu0 0
    %504 = vmatpush.bf16.msra.mxu0 0
    %505 = vmatpush.bf16.msra.mxu0 0
    %506 = vmatpush.bf16.msra.mxu0 %v283
    %507 = vmatmul.bf16.gmra.mxu0 %v302
    %v508 = vpop.f32.mrf.mxu0
    %v509 = vadd.f32 %v203, %v508
    %v510 = vpop.f32.mrf.mxu0
    %511 = vdwg.mxu0
    %v512 = vmax.f32 %v314, 0.0
    %v513 = vmax.f32 %v327, 0.0
    %v514 = vmax.f32 %v340, 0.0
    %v515 = vmax.f32 %v353, 0.0
    %v516 = vmax.f32 %v366, 0.0
    %v517 = vmax.f32 %v379, 0.0
    %v518 = vmax.f32 %v392, 0.0
    %v519 = vmax.f32 %v405, 0.0
    %v520 = vmax.f32 %v418, 0.0
    %v521 = vmax.f32 %v431, 0.0
    %v522 = vmax.f32 %v444, 0.0
    %v523 = vmax.f32 %v457, 0.0
    %v524 = vmax.f32 %v470, 0.0
    %v525 = vmax.f32 %v483, 0.0
    %v526 = vmax.f32 %v496, 0.0
    %v527 = vmax.f32 %v509, 0.0
    %528 = vst [vmem:[#allocation2] sm:$0x1] 0.0
    %529 = vst [vmem:[#allocation2 + $0x18] sm:$0x1] 0.0
    %530 = vst [vmem:[#allocation2 + $0x11] sm:$0x1] 0.0
    %531 = vst [vmem:[#allocation2 + $0x29] sm:$0x1] 0.0
    %v533 = vrot.slane %v512, 1
    %535 = vst [vmem:[#allocation2 + $0x1] sm:$0x1] %v512
    %536 = vst [vmem:[#allocation2 + $0x19] sm:$0x1] %v533
    %v538 = vrot.slane %v513, 1
    %540 = vst [vmem:[#allocation2 + $0x2] sm:$0x1] %v513
    %541 = vst [vmem:[#allocation2 + $0x1a] sm:$0x1] %v538
    %v543 = vrot.slane %v514, 1
    %545 = vst [vmem:[#allocation2 + $0x3] sm:$0x1] %v514
    %546 = vst [vmem:[#allocation2 + $0x1b] sm:$0x1] %v543
    %v548 = vrot.slane %v515, 1
    %550 = vst [vmem:[#allocation2 + $0x4] sm:$0x1] %v515
    %551 = vst [vmem:[#allocation2 + $0x1c] sm:$0x1] %v548
    %v553 = vrot.slane %v516, 1
    %555 = vst [vmem:[#allocation2 + $0x5] sm:$0x1] %v516
    %556 = vst [vmem:[#allocation2 + $0x1d] sm:$0x1] %v553
    %v558 = vrot.slane %v517, 1
    %560 = vst [vmem:[#allocation2 + $0x6] sm:$0x1] %v517
    %561 = vst [vmem:[#allocation2 + $0x1e] sm:$0x1] %v558
    %v563 = vrot.slane %v518, 1
    %565 = vst [vmem:[#allocation2 + $0x7] sm:$0x1] %v518
    %566 = vst [vmem:[#allocation2 + $0x1f] sm:$0x1] %v563
    %v568 = vrot.slane %v519, 1
    %570 = vst [vmem:[#allocation2 + $0x8] sm:$0x1] %v519
    %571 = vst [vmem:[#allocation2 + $0x20] sm:$0x1] %v568
    %v573 = vrot.slane %v520, 1
    %575 = vst [vmem:[#allocation2 + $0x9] sm:$0x1] %v520
    %576 = vst [vmem:[#allocation2 + $0x21] sm:$0x1] %v573
    %v578 = vrot.slane %v521, 1
    %580 = vst [vmem:[#allocation2 + $0xa] sm:$0x1] %v521
    %581 = vst [vmem:[#allocation2 + $0x22] sm:$0x1] %v578
    %v583 = vrot.slane %v522, 1
    %585 = vst [vmem:[#allocation2 + $0xb] sm:$0x1] %v522
    %586 = vst [vmem:[#allocation2 + $0x23] sm:$0x1] %v583
    %v588 = vrot.slane %v523, 1
    %590 = vst [vmem:[#allocation2 + $0xc] sm:$0x1] %v523
    %591 = vst [vmem:[#allocation2 + $0x24] sm:$0x1] %v588
    %v593 = vrot.slane %v524, 1
    %595 = vst [vmem:[#allocation2 + $0xd] sm:$0x1] %v524
    %596 = vst [vmem:[#allocation2 + $0x25] sm:$0x1] %v593
    %v598 = vrot.slane %v525, 1
    %600 = vst [vmem:[#allocation2 + $0xe] sm:$0x1] %v525
    %601 = vst [vmem:[#allocation2 + $0x26] sm:$0x1] %v598
    %v603 = vrot.slane %v526, 1
    %605 = vst [vmem:[#allocation2 + $0xf] sm:$0x1] %v526
    %606 = vst [vmem:[#allocation2 + $0x27] sm:$0x1] %v603
    %v608 = vrot.slane %v527, 1
    %610 = vst [vmem:[#allocation2 + $0x10] sm:$0x1] %v527
    %611 = vst [vmem:[#allocation2 + $0x28] sm:$0x1] %v608
    %v612 = vld [vmem:[#allocation2] sm:$0xff]
    %v613 = vld [vmem:[#allocation2 + $0x8] sm:$0xff]
    %v614 = vld [vmem:[#allocation2 + $0x18] sm:$0xff]
    %v615 = vld [vmem:[#allocation2 + $0x20] sm:$0xff]
    %v616 = vpack.c.bf16 %v613, %v612
    %v617 = vpack.c.bf16 %v615, %v614
    %v618 = vld [vmem:[#allocation2 + $0x1] sm:$0xff]
    %v619 = vld [vmem:[#allocation2 + $0x9] sm:$0xff]
    %v620 = vld [vmem:[#allocation2 + $0x19] sm:$0xff]
    %v621 = vld [vmem:[#allocation2 + $0x21] sm:$0xff]
    %v622 = vpack.c.bf16 %v619, %v618
    %v623 = vpack.c.bf16 %v621, %v620
    %v624 = vld [vmem:[#allocation2 + $0x2] sm:$0xff]
    %v625 = vld [vmem:[#allocation2 + $0xa] sm:$0xff]
    %v626 = vld [vmem:[#allocation2 + $0x1a] sm:$0xff]
    %v627 = vld [vmem:[#allocation2 + $0x22] sm:$0xff]
    %v628 = vpack.c.bf16 %v625, %v624
    %v629 = vpack.c.bf16 %v627, %v626
    %v630 = vld [vmem:[#allocation9] sm:$0xf]
    %v631 = vld [vmem:[#allocation9 + $0x4] sm:$0xf]
    %v632 = vld [vmem:[#allocation9 + $0x8] sm:$0xf]
    %v633 = vld [vmem:[#allocation9 + $0xc] sm:$0xf]
    %v634 = vld [vmem:[#allocation9 + $0x10] sm:$0xf]
    %v635 = vld [vmem:[#allocation9 + $0x14] sm:$0xf]
    %v636 = vld [vmem:[#allocation9 + $0x18] sm:$0xf]
    %v637 = vld [vmem:[#allocation9 + $0x1c] sm:$0xf]
    %v638 = vld [vmem:[#allocation9 + $0x20] sm:$0xf]
    %v639 = vld [vmem:[#allocation9 + $0x24] sm:$0xf]
    %v640 = vld [vmem:[#allocation9 + $0x28] sm:$0xf]
    %v641 = vld [vmem:[#allocation9 + $0x2c] sm:$0xf]
    %v642 = vld [vmem:[#allocation9 + $0x30] sm:$0xf]
    %v643 = vld [vmem:[#allocation9 + $0x34] sm:$0xf]
    %v644 = vld [vmem:[#allocation9 + $0x38] sm:$0xf]
    %v645 = vld [vmem:[#allocation9 + $0x3c] sm:$0xf]
    %s646 = scalar_lea.vmem [#allocation9], 64
    %v647 = vld [vmem:[%s646] sm:$0xf]
    %v648 = vld [vmem:[%s646 + $0x4] sm:$0xf]
    %v649 = vld [vmem:[%s646 + $0x8] sm:$0xf]
    %v650 = vld [vmem:[%s646 + $0xc] sm:$0xf]
    %v651 = vld [vmem:[%s646 + $0x10] sm:$0xf]
    %v652 = vld [vmem:[%s646 + $0x14] sm:$0xf]
    %v653 = vld [vmem:[%s646 + $0x18] sm:$0xf]
    %v654 = vld [vmem:[%s646 + $0x1c] sm:$0xf]
    %v655 = vld [vmem:[%s646 + $0x20] sm:$0xf]
    %v656 = vld [vmem:[%s646 + $0x24] sm:$0xf]
    %v657 = vld [vmem:[%s646 + $0x28] sm:$0xf]
    %v658 = vld [vmem:[%s646 + $0x2c] sm:$0xf]
    %v659 = vld [vmem:[%s646 + $0x30] sm:$0xf]
    %v660 = vld [vmem:[%s646 + $0x34] sm:$0xf]
    %v661 = vld [vmem:[%s646 + $0x38] sm:$0xf]
    %v662 = vld [vmem:[%s646 + $0x3c] sm:$0xf]
    %v679 = vunpack.c.l.b16 %v647
    %v680 = vunpack.c.l.b16 %v648
    %v681 = vunpack.c.l.b16 %v649
    %v682 = vunpack.c.l.b16 %v650
    %v683 = vunpack.c.l.b16 %v651
    %v684 = vunpack.c.l.b16 %v652
    %v685 = vunpack.c.l.b16 %v653
    %v686 = vunpack.c.l.b16 %v654
    %v687 = vunpack.c.l.b16 %v655
    %v688 = vunpack.c.l.b16 %v656
    %v689 = vunpack.c.l.b16 %v657
    %v690 = vunpack.c.l.b16 %v658
    %v691 = vunpack.c.l.b16 %v659
    %v692 = vunpack.c.l.b16 %v660
    %v693 = vunpack.c.l.b16 %v661
    %v694 = vunpack.c.l.b16 %v662
    %v695 = vpack.c.b16 %v680, %v679
    %v696 = vpack.c.b16 %v682, %v681
    %v697 = vpack.c.b16 %v684, %v683
    %v698 = vpack.c.b16 %v686, %v685
    %v699 = vpack.c.b16 %v688, %v687
    %v700 = vpack.c.b16 %v690, %v689
    %v701 = vpack.c.b16 %v692, %v691
    %v702 = vpack.c.b16 %v694, %v693
    %711 = vmatpush.bf16.msra.mxu0 %v702
    %712 = vmatpush.bf16.msra.mxu0 %v701
    %713 = vmatpush.bf16.msra.mxu0 %v700
    %714 = vmatpush.bf16.msra.mxu0 %v699
    %715 = vmatpush.bf16.msra.mxu0 %v698
    %716 = vmatpush.bf16.msra.mxu0 %v697
    %717 = vmatpush.bf16.msra.mxu0 %v696
    %718 = vmatpush.bf16.msra.mxu0 %v695
    %719 = vmatmul.bf16.gmra.mxu0 %v622
    %v720 = vpop.f32.mrf.mxu0
    %v721 = vadd.f32 0.0, %v720
    %v722 = vpop.f32.mrf.mxu0
    %v723 = vadd.f32 0.0, %v722
    %724 = vmatmul.bf16.gmra.mxu0 %v623
    %v725 = vpop.f32.mrf.mxu0
    %v726 = vadd.f32 0.0, %v725
    %v727 = vpop.f32.mrf.mxu0
    %v728 = vadd.f32 0.0, %v727
    %729 = vdwg.mxu0
    %v746 = vunpack.c.l.b16 %v630
    %v747 = vunpack.c.l.b16 %v631
    %v748 = vunpack.c.l.b16 %v632
    %v749 = vunpack.c.l.b16 %v633
    %v750 = vunpack.c.l.b16 %v634
    %v751 = vunpack.c.l.b16 %v635
    %v752 = vunpack.c.l.b16 %v636
    %v753 = vunpack.c.l.b16 %v637
    %v754 = vunpack.c.l.b16 %v638
    %v755 = vunpack.c.l.b16 %v639
    %v756 = vunpack.c.l.b16 %v640
    %v757 = vunpack.c.l.b16 %v641
    %v758 = vunpack.c.l.b16 %v642
    %v759 = vunpack.c.l.b16 %v643
    %v760 = vunpack.c.l.b16 %v644
    %v761 = vunpack.c.l.b16 %v645
    %v762 = vpack.c.b16 %v747, %v746
    %v763 = vpack.c.b16 %v749, %v748
    %v764 = vpack.c.b16 %v751, %v750
    %v765 = vpack.c.b16 %v753, %v752
    %v766 = vpack.c.b16 %v755, %v754
    %v767 = vpack.c.b16 %v757, %v756
    %v768 = vpack.c.b16 %v759, %v758
    %v769 = vpack.c.b16 %v761, %v760
    %778 = vmatpush.bf16.msra.mxu0 %v769
    %779 = vmatpush.bf16.msra.mxu0 %v768
    %780 = vmatpush.bf16.msra.mxu0 %v767
    %781 = vmatpush.bf16.msra.mxu0 %v766
    %782 = vmatpush.bf16.msra.mxu0 %v765
    %783 = vmatpush.bf16.msra.mxu0 %v764
    %784 = vmatpush.bf16.msra.mxu0 %v763
    %785 = vmatpush.bf16.msra.mxu0 %v762
    %786 = vmatmul.bf16.gmra.mxu0 %v616
    %v787 = vpop.f32.mrf.mxu0
    %v788 = vadd.f32 %v721, %v787
    %v789 = vpop.f32.mrf.mxu0
    %v790 = vadd.f32 %v723, %v789
    %791 = vmatmul.bf16.gmra.mxu0 %v617
    %v792 = vpop.f32.mrf.mxu0
    %v793 = vadd.f32 %v726, %v792
    %v794 = vpop.f32.mrf.mxu0
    %v795 = vadd.f32 %v728, %v794
    %796 = vdwg.mxu0
    %s797 = scalar_lea.vmem [#allocation9], 128
    %v798 = vld [vmem:[%s797] sm:$0xf]
    %v799 = vld [vmem:[%s797 + $0x4] sm:$0xf]
    %v800 = vld [vmem:[%s797 + $0x8] sm:$0xf]
    %v801 = vld [vmem:[%s797 + $0xc] sm:$0xf]
    %v802 = vld [vmem:[%s797 + $0x10] sm:$0xf]
    %v803 = vld [vmem:[%s797 + $0x14] sm:$0xf]
    %v804 = vld [vmem:[%s797 + $0x18] sm:$0xf]
    %v805 = vld [vmem:[%s797 + $0x1c] sm:$0xf]
    %v806 = vld [vmem:[%s797 + $0x20] sm:$0xf]
    %v807 = vld [vmem:[%s797 + $0x24] sm:$0xf]
    %v808 = vld [vmem:[%s797 + $0x28] sm:$0xf]
    %v809 = vld [vmem:[%s797 + $0x2c] sm:$0xf]
    %v810 = vld [vmem:[%s797 + $0x30] sm:$0xf]
    %v811 = vld [vmem:[%s797 + $0x34] sm:$0xf]
    %v812 = vld [vmem:[%s797 + $0x38] sm:$0xf]
    %v813 = vld [vmem:[%s797 + $0x3c] sm:$0xf]
    %v830 = vunpack.c.l.b16 %v798
    %v831 = vunpack.c.l.b16 %v799
    %v832 = vunpack.c.l.b16 %v800
    %v833 = vunpack.c.l.b16 %v801
    %v834 = vunpack.c.l.b16 %v802
    %v835 = vunpack.c.l.b16 %v803
    %v836 = vunpack.c.l.b16 %v804
    %v837 = vunpack.c.l.b16 %v805
    %v838 = vunpack.c.l.b16 %v806
    %v839 = vunpack.c.l.b16 %v807
    %v840 = vunpack.c.l.b16 %v808
    %v841 = vunpack.c.l.b16 %v809
    %v842 = vunpack.c.l.b16 %v810
    %v843 = vunpack.c.l.b16 %v811
    %v844 = vunpack.c.l.b16 %v812
    %v845 = vunpack.c.l.b16 %v813
    %v846 = vpack.c.b16 %v831, %v830
    %v847 = vpack.c.b16 %v833, %v832
    %v848 = vpack.c.b16 %v835, %v834
    %v849 = vpack.c.b16 %v837, %v836
    %v850 = vpack.c.b16 %v839, %v838
    %v851 = vpack.c.b16 %v841, %v840
    %v852 = vpack.c.b16 %v843, %v842
    %v853 = vpack.c.b16 %v845, %v844
    %862 = vmatpush.bf16.msra.mxu0 %v853
    %863 = vmatpush.bf16.msra.mxu0 %v852
    %864 = vmatpush.bf16.msra.mxu0 %v851
    %865 = vmatpush.bf16.msra.mxu0 %v850
    %866 = vmatpush.bf16.msra.mxu0 %v849
    %867 = vmatpush.bf16.msra.mxu0 %v848
    %868 = vmatpush.bf16.msra.mxu0 %v847
    %869 = vmatpush.bf16.msra.mxu0 %v846
    %870 = vmatmul.bf16.gmra.mxu0 %v628
    %v871 = vpop.f32.mrf.mxu0
    %v872 = vadd.f32 0.0, %v871
    %v873 = vpop.f32.mrf.mxu0
    %v874 = vadd.f32 0.0, %v873
    %875 = vmatmul.bf16.gmra.mxu0 %v629
    %v876 = vpop.f32.mrf.mxu0
    %v877 = vadd.f32 0.0, %v876
    %v878 = vpop.f32.mrf.mxu0
    %v879 = vadd.f32 0.0, %v878
    %880 = vdwg.mxu0
    %v881 = vadd.f32 %v788, %v872
    %v882 = vadd.f32 %v790, %v874
    %v883 = vadd.f32 %v793, %v877
    %v884 = vadd.f32 %v795, %v879
    %v885 = vld [vmem:[%s4] sm:$0x1]
    %v887 = vperm.slane %v885, 0
    %v889 = vadd.f32 %v881, %v887
    %v890 = vadd.f32 %v882, %v887
    %v891 = vadd.f32 %v883, %v887
    %v892 = vadd.f32 %v884, %v887
    %v893 = vmax.f32 %v889, 0.0
    %v894 = vmax.f32 %v890, 0.0
    %v895 = vmax.f32 %v891, 0.0
    %v896 = vmax.f32 %v892, 0.0
    %897 = vst [vmem:[#allocation2 + $0x1] sm:$0x1] %v893
    %898 = vst [vmem:[#allocation2 + $0x19] sm:$0x1] %v895
    %899 = vst [vmem:[#allocation2 + $0x1] sm:$0x2] %v893
    %900 = vst [vmem:[#allocation2 + $0x19] sm:$0x2] %v895
    %901 = vst [vmem:[#allocation2 + $0x1] sm:$0x4] %v893
    %902 = vst [vmem:[#allocation2 + $0x19] sm:$0x4] %v895
    %903 = vst [vmem:[#allocation2 + $0x1] sm:$0x8] %v893
    %904 = vst [vmem:[#allocation2 + $0x19] sm:$0x8] %v895
    %905 = vst [vmem:[#allocation2 + $0x1] sm:$0x10] %v893
    %906 = vst [vmem:[#allocation2 + $0x19] sm:$0x10] %v895
    %907 = vst [vmem:[#allocation2 + $0x1] sm:$0x20] %v893
    %908 = vst [vmem:[#allocation2 + $0x19] sm:$0x20] %v895
    %909 = vst [vmem:[#allocation2 + $0x1] sm:$0x40] %v893
    %910 = vst [vmem:[#allocation2 + $0x19] sm:$0x40] %v895
    %911 = vst [vmem:[#allocation2 + $0x1] sm:$0x80] %v893
    %912 = vst [vmem:[#allocation2 + $0x19] sm:$0x80] %v895
    %913 = vst [vmem:[#allocation2 + $0x9] sm:$0x1] %v894
    %914 = vst [vmem:[#allocation2 + $0x21] sm:$0x1] %v896
    %915 = vst [vmem:[#allocation2 + $0x9] sm:$0x2] %v894
    %916 = vst [vmem:[#allocation2 + $0x21] sm:$0x2] %v896
    %917 = vst [vmem:[#allocation2 + $0x9] sm:$0x4] %v894
    %918 = vst [vmem:[#allocation2 + $0x21] sm:$0x4] %v896
    %919 = vst [vmem:[#allocation2 + $0x9] sm:$0x8] %v894
    %920 = vst [vmem:[#allocation2 + $0x21] sm:$0x8] %v896
    %921 = vst [vmem:[#allocation2 + $0x9] sm:$0x10] %v894
    %922 = vst [vmem:[#allocation2 + $0x21] sm:$0x10] %v896
    %923 = vst [vmem:[#allocation2 + $0x9] sm:$0x20] %v894
    %924 = vst [vmem:[#allocation2 + $0x21] sm:$0x20] %v896
    %925 = vst [vmem:[#allocation2 + $0x9] sm:$0x40] %v894
    %926 = vst [vmem:[#allocation2 + $0x21] sm:$0x40] %v896
    %927 = vst [vmem:[#allocation2 + $0x9] sm:$0x80] %v894
    %928 = vst [vmem:[#allocation2 + $0x21] sm:$0x80] %v896
    %v929 = vld [vmem:[#allocation2] sm:$0xff]
    %v930 = vld [vmem:[#allocation2 + $0x8] sm:$0xff]
    %v931 = vld [vmem:[#allocation2 + $0x18] sm:$0xff]
    %v932 = vld [vmem:[#allocation2 + $0x20] sm:$0xff]
    %v933 = vpack.c.bf16 %v930, %v929
    %v934 = vpack.c.bf16 %v932, %v931
    %v935 = vld [vmem:[#allocation2 + $0x1] sm:$0xff]
    %v936 = vld [vmem:[#allocation2 + $0x9] sm:$0xff]
    %v937 = vld [vmem:[#allocation2 + $0x19] sm:$0xff]
    %v938 = vld [vmem:[#allocation2 + $0x21] sm:$0xff]
    %v939 = vpack.c.bf16 %v936, %v935
    %v940 = vpack.c.bf16 %v938, %v937
    %v941 = vld [vmem:[#allocation2 + $0x2] sm:$0xff]
    %v942 = vld [vmem:[#allocation2 + $0xa] sm:$0xff]
    %v943 = vld [vmem:[#allocation2 + $0x1a] sm:$0xff]
    %v944 = vld [vmem:[#allocation2 + $0x22] sm:$0xff]
    %v945 = vpack.c.bf16 %v942, %v941
    %v946 = vpack.c.bf16 %v944, %v943
    %v947 = vld [vmem:[#allocation11] sm:$0xf]
    %v948 = vld [vmem:[#allocation11 + $0x4] sm:$0xf]
    %v949 = vld [vmem:[#allocation11 + $0x8] sm:$0xf]
    %v950 = vld [vmem:[#allocation11 + $0xc] sm:$0xf]
    %v951 = vld [vmem:[#allocation11 + $0x10] sm:$0xf]
    %v952 = vld [vmem:[#allocation11 + $0x14] sm:$0xf]
    %v953 = vld [vmem:[#allocation11 + $0x18] sm:$0xf]
    %v954 = vld [vmem:[#allocation11 + $0x1c] sm:$0xf]
    %v955 = vld [vmem:[#allocation11 + $0x20] sm:$0xf]
    %v956 = vld [vmem:[#allocation11 + $0x24] sm:$0xf]
    %v957 = vld [vmem:[#allocation11 + $0x28] sm:$0xf]
    %v958 = vld [vmem:[#allocation11 + $0x2c] sm:$0xf]
    %v959 = vld [vmem:[#allocation11 + $0x30] sm:$0xf]
    %v960 = vld [vmem:[#allocation11 + $0x34] sm:$0xf]
    %v961 = vld [vmem:[#allocation11 + $0x38] sm:$0xf]
    %v962 = vld [vmem:[#allocation11 + $0x3c] sm:$0xf]
    %s963 = scalar_lea.vmem [#allocation11], 64
    %v964 = vld [vmem:[%s963] sm:$0xf]
    %v965 = vld [vmem:[%s963 + $0x4] sm:$0xf]
    %v966 = vld [vmem:[%s963 + $0x8] sm:$0xf]
    %v967 = vld [vmem:[%s963 + $0xc] sm:$0xf]
    %v968 = vld [vmem:[%s963 + $0x10] sm:$0xf]
    %v969 = vld [vmem:[%s963 + $0x14] sm:$0xf]
    %v970 = vld [vmem:[%s963 + $0x18] sm:$0xf]
    %v971 = vld [vmem:[%s963 + $0x1c] sm:$0xf]
    %v972 = vld [vmem:[%s963 + $0x20] sm:$0xf]
    %v973 = vld [vmem:[%s963 + $0x24] sm:$0xf]
    %v974 = vld [vmem:[%s963 + $0x28] sm:$0xf]
    %v975 = vld [vmem:[%s963 + $0x2c] sm:$0xf]
    %v976 = vld [vmem:[%s963 + $0x30] sm:$0xf]
    %v977 = vld [vmem:[%s963 + $0x34] sm:$0xf]
    %v978 = vld [vmem:[%s963 + $0x38] sm:$0xf]
    %v979 = vld [vmem:[%s963 + $0x3c] sm:$0xf]
    %v996 = vunpack.c.l.b16 %v964
    %v997 = vunpack.c.l.b16 %v965
    %v998 = vunpack.c.l.b16 %v966
    %v999 = vunpack.c.l.b16 %v967
    %v1000 = vunpack.c.l.b16 %v968
    %v1001 = vunpack.c.l.b16 %v969
    %v1002 = vunpack.c.l.b16 %v970
    %v1003 = vunpack.c.l.b16 %v971
    %v1004 = vunpack.c.l.b16 %v972
    %v1005 = vunpack.c.l.b16 %v973
    %v1006 = vunpack.c.l.b16 %v974
    %v1007 = vunpack.c.l.b16 %v975
    %v1008 = vunpack.c.l.b16 %v976
    %v1009 = vunpack.c.l.b16 %v977
    %v1010 = vunpack.c.l.b16 %v978
    %v1011 = vunpack.c.l.b16 %v979
    %v1012 = vpack.c.b16 %v997, %v996
    %v1013 = vpack.c.b16 %v999, %v998
    %v1014 = vpack.c.b16 %v1001, %v1000
    %v1015 = vpack.c.b16 %v1003, %v1002
    %v1016 = vpack.c.b16 %v1005, %v1004
    %v1017 = vpack.c.b16 %v1007, %v1006
    %v1018 = vpack.c.b16 %v1009, %v1008
    %v1019 = vpack.c.b16 %v1011, %v1010
    %1028 = vmatpush.bf16.msra.mxu0 %v1019
    %1029 = vmatpush.bf16.msra.mxu0 %v1018
    %1030 = vmatpush.bf16.msra.mxu0 %v1017
    %1031 = vmatpush.bf16.msra.mxu0 %v1016
    %1032 = vmatpush.bf16.msra.mxu0 %v1015
    %1033 = vmatpush.bf16.msra.mxu0 %v1014
    %1034 = vmatpush.bf16.msra.mxu0 %v1013
    %1035 = vmatpush.bf16.msra.mxu0 %v1012
    %1036 = vmatmul.bf16.gmra.mxu0 %v939
    %v1037 = vpop.f32.mrf.mxu0
    %v1038 = vadd.f32 0.0, %v1037
    %v1039 = vpop.f32.mrf.mxu0
    %v1040 = vadd.f32 0.0, %v1039
    %1041 = vmatmul.bf16.gmra.mxu0 %v940
    %v1042 = vpop.f32.mrf.mxu0
    %v1043 = vadd.f32 0.0, %v1042
    %v1044 = vpop.f32.mrf.mxu0
    %v1045 = vadd.f32 0.0, %v1044
    %1046 = vdwg.mxu0
    %v1063 = vunpack.c.l.b16 %v947
    %v1064 = vunpack.c.l.b16 %v948
    %v1065 = vunpack.c.l.b16 %v949
    %v1066 = vunpack.c.l.b16 %v950
    %v1067 = vunpack.c.l.b16 %v951
    %v1068 = vunpack.c.l.b16 %v952
    %v1069 = vunpack.c.l.b16 %v953
    %v1070 = vunpack.c.l.b16 %v954
    %v1071 = vunpack.c.l.b16 %v955
    %v1072 = vunpack.c.l.b16 %v956
    %v1073 = vunpack.c.l.b16 %v957
    %v1074 = vunpack.c.l.b16 %v958
    %v1075 = vunpack.c.l.b16 %v959
    %v1076 = vunpack.c.l.b16 %v960
    %v1077 = vunpack.c.l.b16 %v961
    %v1078 = vunpack.c.l.b16 %v962
    %v1079 = vpack.c.b16 %v1064, %v1063
    %v1080 = vpack.c.b16 %v1066, %v1065
    %v1081 = vpack.c.b16 %v1068, %v1067
    %v1082 = vpack.c.b16 %v1070, %v1069
    %v1083 = vpack.c.b16 %v1072, %v1071
    %v1084 = vpack.c.b16 %v1074, %v1073
    %v1085 = vpack.c.b16 %v1076, %v1075
    %v1086 = vpack.c.b16 %v1078, %v1077
    %1095 = vmatpush.bf16.msra.mxu0 %v1086
    %1096 = vmatpush.bf16.msra.mxu0 %v1085
    %1097 = vmatpush.bf16.msra.mxu0 %v1084
    %1098 = vmatpush.bf16.msra.mxu0 %v1083
    %1099 = vmatpush.bf16.msra.mxu0 %v1082
    %1100 = vmatpush.bf16.msra.mxu0 %v1081
    %1101 = vmatpush.bf16.msra.mxu0 %v1080
    %1102 = vmatpush.bf16.msra.mxu0 %v1079
    %1103 = vmatmul.bf16.gmra.mxu0 %v933
    %v1104 = vpop.f32.mrf.mxu0
    %v1105 = vadd.f32 %v1038, %v1104
    %v1106 = vpop.f32.mrf.mxu0
    %v1107 = vadd.f32 %v1040, %v1106
    %1108 = vmatmul.bf16.gmra.mxu0 %v934
    %v1109 = vpop.f32.mrf.mxu0
    %v1110 = vadd.f32 %v1043, %v1109
    %v1111 = vpop.f32.mrf.mxu0
    %v1112 = vadd.f32 %v1045, %v1111
    %1113 = vdwg.mxu0
    %s1114 = scalar_lea.vmem [#allocation11], 128
    %v1115 = vld [vmem:[%s1114] sm:$0xf]
    %v1116 = vld [vmem:[%s1114 + $0x4] sm:$0xf]
    %v1117 = vld [vmem:[%s1114 + $0x8] sm:$0xf]
    %v1118 = vld [vmem:[%s1114 + $0xc] sm:$0xf]
    %v1119 = vld [vmem:[%s1114 + $0x10] sm:$0xf]
    %v1120 = vld [vmem:[%s1114 + $0x14] sm:$0xf]
    %v1121 = vld [vmem:[%s1114 + $0x18] sm:$0xf]
    %v1122 = vld [vmem:[%s1114 + $0x1c] sm:$0xf]
    %v1123 = vld [vmem:[%s1114 + $0x20] sm:$0xf]
    %v1124 = vld [vmem:[%s1114 + $0x24] sm:$0xf]
    %v1125 = vld [vmem:[%s1114 + $0x28] sm:$0xf]
    %v1126 = vld [vmem:[%s1114 + $0x2c] sm:$0xf]
    %v1127 = vld [vmem:[%s1114 + $0x30] sm:$0xf]
    %v1128 = vld [vmem:[%s1114 + $0x34] sm:$0xf]
    %v1129 = vld [vmem:[%s1114 + $0x38] sm:$0xf]
    %v1130 = vld [vmem:[%s1114 + $0x3c] sm:$0xf]
    %v1147 = vunpack.c.l.b16 %v1115
    %v1148 = vunpack.c.l.b16 %v1116
    %v1149 = vunpack.c.l.b16 %v1117
    %v1150 = vunpack.c.l.b16 %v1118
    %v1151 = vunpack.c.l.b16 %v1119
    %v1152 = vunpack.c.l.b16 %v1120
    %v1153 = vunpack.c.l.b16 %v1121
    %v1154 = vunpack.c.l.b16 %v1122
    %v1155 = vunpack.c.l.b16 %v1123
    %v1156 = vunpack.c.l.b16 %v1124
    %v1157 = vunpack.c.l.b16 %v1125
    %v1158 = vunpack.c.l.b16 %v1126
    %v1159 = vunpack.c.l.b16 %v1127
    %v1160 = vunpack.c.l.b16 %v1128
    %v1161 = vunpack.c.l.b16 %v1129
    %v1162 = vunpack.c.l.b16 %v1130
    %v1163 = vpack.c.b16 %v1148, %v1147
    %v1164 = vpack.c.b16 %v1150, %v1149
    %v1165 = vpack.c.b16 %v1152, %v1151
    %v1166 = vpack.c.b16 %v1154, %v1153
    %v1167 = vpack.c.b16 %v1156, %v1155
    %v1168 = vpack.c.b16 %v1158, %v1157
    %v1169 = vpack.c.b16 %v1160, %v1159
    %v1170 = vpack.c.b16 %v1162, %v1161
    %1179 = vmatpush.bf16.msra.mxu0 %v1170
    %1180 = vmatpush.bf16.msra.mxu0 %v1169
    %1181 = vmatpush.bf16.msra.mxu0 %v1168
    %1182 = vmatpush.bf16.msra.mxu0 %v1167
    %1183 = vmatpush.bf16.msra.mxu0 %v1166
    %1184 = vmatpush.bf16.msra.mxu0 %v1165
    %1185 = vmatpush.bf16.msra.mxu0 %v1164
    %1186 = vmatpush.bf16.msra.mxu0 %v1163
    %1187 = vmatmul.bf16.gmra.mxu0 %v945
    %v1188 = vpop.f32.mrf.mxu0
    %v1189 = vadd.f32 0.0, %v1188
    %v1190 = vpop.f32.mrf.mxu0
    %v1191 = vadd.f32 0.0, %v1190
    %1192 = vmatmul.bf16.gmra.mxu0 %v946
    %v1193 = vpop.f32.mrf.mxu0
    %v1194 = vadd.f32 0.0, %v1193
    %v1195 = vpop.f32.mrf.mxu0
    %v1196 = vadd.f32 0.0, %v1195
    %1197 = vdwg.mxu0
    %v1198 = vadd.f32 %v1105, %v1189
    %v1199 = vadd.f32 %v1107, %v1191
    %v1200 = vadd.f32 %v1110, %v1194
    %v1201 = vadd.f32 %v1112, %v1196
    %v1202 = vld [vmem:[%s6] sm:$0x1]
    %v1204 = vperm.slane %v1202, 0
    %v1206 = vadd.f32 %v1198, %v1204
    %v1207 = vadd.f32 %v1199, %v1204
    %v1208 = vadd.f32 %v1200, %v1204
    %v1209 = vadd.f32 %v1201, %v1204
    %v1210 = vmax.f32 %v1206, 0.0
    %v1211 = vmax.f32 %v1207, 0.0
    %v1212 = vmax.f32 %v1208, 0.0
    %v1213 = vmax.f32 %v1209, 0.0
    %v1214 = vpack.c.bf16 %v1210, %v1210
    %v1215 = vpack.c.bf16 %v1212, %v1212
    %v1218 = vrot.slane %v1214, 3
    %v1219 = vrot.slane %v1215, 3
    %vm1220 = vcmask 1040384
    %v1223 = vsel %vm1220, %v1214, %v1218
    %v1226 = vsel %vm1220, %v1215, %v1219
    %1227 = vst [vmem:[#allocation1] ss:$4 sm:$0xff] %v1223
    %v1228 = vld [vmem:[#allocation1] sm:$0xff]
    %s1230 = scalar_lea.vmem [#allocation1], 32
    %1231 = vst [vmem:[%s1230] ss:$4 sm:$0xff] %v1226
    %v1232 = vld [vmem:[#allocation1 + $0x20] sm:$0xff]
    %v1234 = vunpack.c.l.b16 %v1228
    %v1235 = vunpack.c.l.b16 %v1232
    %v1236 = vrot.slane %v1235, 7
    %vm1237 = vcmask 1041409
    %v1238 = vsel %vm1237, %v1236, %v1234
    %v1239 = vpack.c.b16 %v1238, %v1238
    %v1240 = vrot.slane %v1239, 3
    %v1243 = vsel %vm1220, %v1239, %v1240
    %1245 = vst [vmem:[#allocation3] sm:$0x1] %v1243
    %1246 = vst [vmem:[#allocation1] ss:$4 sm:$0xff] %v1223
    %v1247 = vld [vmem:[#allocation1] sm:$0xff]
    %s1249 = scalar_lea.vmem [#allocation1], 32
    %1250 = vst [vmem:[%s1249] ss:$4 sm:$0xff] %v1226
    %v1251 = vld [vmem:[#allocation1 + $0x20] sm:$0xff]
    %v1253 = vunpack.c.l.b16 %v1247
    %v1254 = vunpack.c.l.b16 %v1251
    %v1255 = vrot.slane %v1253, 1
    %v1256 = vsel %vm1237, %v1254, %v1255
    %v1257 = vpack.c.b16 %v1256, %v1256
    %v1258 = vrot.slane %v1257, 3
    %v1261 = vsel %vm1220, %v1257, %v1258
    %1263 = vst [vmem:[#allocation3 + $0x1] sm:$0x1] %v1261
    %1264 = vst [vmem:[#allocation1] sm:$0xff] %v1214
    %s1265 = scalar_lea.vmem [#allocation1], 1
    %v1266 = vld [vmem:[%s1265] ss:$4 sm:$0xff]
    %1267 = vst [vmem:[#allocation1 + $0x20] sm:$0xff] %v1215
    %s1268 = scalar_lea.vmem [#allocation1], 33
    %v1269 = vld [vmem:[%s1268] ss:$4 sm:$0xff]
    %1270 = vst [vmem:[#allocation1] ss:$4 sm:$0xff] %v1266
    %v1271 = vld [vmem:[#allocation1] sm:$0xff]
    %s1273 = scalar_lea.vmem [#allocation1], 32
    %1274 = vst [vmem:[%s1273] ss:$4 sm:$0xff] %v1269
    %v1275 = vld [vmem:[#allocation1 + $0x20] sm:$0xff]
    %v1277 = vunpack.c.l.b16 %v1271
    %v1278 = vunpack.c.l.b16 %v1275
    %v1279 = vrot.slane %v1278, 7
    %v1280 = vsel %vm1237, %v1279, %v1277
    %v1281 = vpack.c.b16 %v1280, %v1280
    %v1282 = vrot.slane %v1281, 3
    %v1285 = vsel %vm1220, %v1281, %v1282
    %1287 = vst [vmem:[#allocation3 + $0x2] sm:$0x1] %v1285
    %1288 = vst [vmem:[#allocation1] sm:$0xff] %v1214
    %s1289 = scalar_lea.vmem [#allocation1], 1
    %v1290 = vld [vmem:[%s1289] ss:$4 sm:$0xff]
    %1291 = vst [vmem:[#allocation1 + $0x20] sm:$0xff] %v1215
    %s1292 = scalar_lea.vmem [#allocation1], 33
    %v1293 = vld [vmem:[%s1292] ss:$4 sm:$0xff]
    %1294 = vst [vmem:[#allocation1] ss:$4 sm:$0xff] %v1290
    %v1295 = vld [vmem:[#allocation1] sm:$0xff]
    %s1297 = scalar_lea.vmem [#allocation1], 32
    %1298 = vst [vmem:[%s1297] ss:$4 sm:$0xff] %v1293
    %v1299 = vld [vmem:[#allocation1 + $0x20] sm:$0xff]
    %v1301 = vunpack.c.l.b16 %v1295
    %v1302 = vunpack.c.l.b16 %v1299
    %v1303 = vrot.slane %v1301, 1
    %v1304 = vsel %vm1237, %v1302, %v1303
    %v1305 = vpack.c.b16 %v1304, %v1304
    %v1306 = vrot.slane %v1305, 3
    %v1309 = vsel %vm1220, %v1305, %v1306
    %1311 = vst [vmem:[#allocation3 + $0x3] sm:$0x1] %v1309
    %1312 = vst [vmem:[#allocation1] sm:$0xff] %v1214
    %s1313 = scalar_lea.vmem [#allocation1], 2
    %v1314 = vld [vmem:[%s1313] ss:$4 sm:$0xff]
    %1315 = vst [vmem:[#allocation1 + $0x20] sm:$0xff] %v1215
    %s1316 = scalar_lea.vmem [#allocation1], 34
    %v1317 = vld [vmem:[%s1316] ss:$4 sm:$0xff]
    %1318 = vst [vmem:[#allocation1] ss:$4 sm:$0xff] %v1314
    %v1319 = vld [vmem:[#allocation1] sm:$0xff]
    %s1321 = scalar_lea.vmem [#allocation1], 32
    %1322 = vst [vmem:[%s1321] ss:$4 sm:$0xff] %v1317
    %v1323 = vld [vmem:[#allocation1 + $0x20] sm:$0xff]
    %v1325 = vunpack.c.l.b16 %v1319
    %v1326 = vunpack.c.l.b16 %v1323
    %v1327 = vrot.slane %v1326, 7
    %v1328 = vsel %vm1237, %v1327, %v1325
    %v1329 = vpack.c.b16 %v1328, %v1328
    %v1330 = vrot.slane %v1329, 3
    %v1333 = vsel %vm1220, %v1329, %v1330
    %1335 = vst [vmem:[#allocation3 + $0x4] sm:$0x1] %v1333
    %1336 = vst [vmem:[#allocation1] sm:$0xff] %v1214
    %s1337 = scalar_lea.vmem [#allocation1], 2
    %v1338 = vld [vmem:[%s1337] ss:$4 sm:$0xff]
    %1339 = vst [vmem:[#allocation1 + $0x20] sm:$0xff] %v1215
    %s1340 = scalar_lea.vmem [#allocation1], 34
    %v1341 = vld [vmem:[%s1340] ss:$4 sm:$0xff]
    %1342 = vst [vmem:[#allocation1] ss:$4 sm:$0xff] %v1338
    %v1343 = vld [vmem:[#allocation1] sm:$0xff]
    %s1345 = scalar_lea.vmem [#allocation1], 32
    %1346 = vst [vmem:[%s1345] ss:$4 sm:$0xff] %v1341
    %v1347 = vld [vmem:[#allocation1 + $0x20] sm:$0xff]
    %v1349 = vunpack.c.l.b16 %v1343
    %v1350 = vunpack.c.l.b16 %v1347
    %v1351 = vrot.slane %v1349, 1
    %v1352 = vsel %vm1237, %v1350, %v1351
    %v1353 = vpack.c.b16 %v1352, %v1352
    %v1354 = vrot.slane %v1353, 3
    %v1357 = vsel %vm1220, %v1353, %v1354
    %1359 = vst [vmem:[#allocation3 + $0x5] sm:$0x1] %v1357
    %1360 = vst [vmem:[#allocation1] sm:$0xff] %v1214
    %s1361 = scalar_lea.vmem [#allocation1], 3
    %v1362 = vld [vmem:[%s1361] ss:$4 sm:$0xff]
    %1363 = vst [vmem:[#allocation1 + $0x20] sm:$0xff] %v1215
    %s1364 = scalar_lea.vmem [#allocation1], 35
    %v1365 = vld [vmem:[%s1364] ss:$4 sm:$0xff]
    %1366 = vst [vmem:[#allocation1] ss:$4 sm:$0xff] %v1362
    %v1367 = vld [vmem:[#allocation1] sm:$0xff]
    %s1369 = scalar_lea.vmem [#allocation1], 32
    %1370 = vst [vmem:[%s1369] ss:$4 sm:$0xff] %v1365
    %v1371 = vld [vmem:[#allocation1 + $0x20] sm:$0xff]
    %v1373 = vunpack.c.l.b16 %v1367
    %v1374 = vunpack.c.l.b16 %v1371
    %v1375 = vrot.slane %v1374, 7
    %v1376 = vsel %vm1237, %v1375, %v1373
    %v1377 = vpack.c.b16 %v1376, %v1376
    %v1378 = vrot.slane %v1377, 3
    %v1381 = vsel %vm1220, %v1377, %v1378
    %1383 = vst [vmem:[#allocation3 + $0x6] sm:$0x1] %v1381
    %1384 = vst [vmem:[#allocation1] sm:$0xff] %v1214
    %s1385 = scalar_lea.vmem [#allocation1], 3
    %v1386 = vld [vmem:[%s1385] ss:$4 sm:$0xff]
    %1387 = vst [vmem:[#allocation1 + $0x20] sm:$0xff] %v1215
    %s1388 = scalar_lea.vmem [#allocation1], 35
    %v1389 = vld [vmem:[%s1388] ss:$4 sm:$0xff]
    %1390 = vst [vmem:[#allocation1] ss:$4 sm:$0xff] %v1386
    %v1391 = vld [vmem:[#allocation1] sm:$0xff]
    %s1393 = scalar_lea.vmem [#allocation1], 32
    %1394 = vst [vmem:[%s1393] ss:$4 sm:$0xff] %v1389
    %v1395 = vld [vmem:[#allocation1 + $0x20] sm:$0xff]
    %v1397 = vunpack.c.l.b16 %v1391
    %v1398 = vunpack.c.l.b16 %v1395
    %v1399 = vrot.slane %v1397, 1
    %v1400 = vsel %vm1237, %v1398, %v1399
    %v1401 = vpack.c.b16 %v1400, %v1400
    %v1402 = vrot.slane %v1401, 3
    %v1405 = vsel %vm1220, %v1401, %v1402
    %1407 = vst [vmem:[#allocation3 + $0x7] sm:$0x1] %v1405
    %v1408 = vpack.c.bf16 %v1211, %v1211
    %v1409 = vpack.c.bf16 %v1213, %v1213
    %v1412 = vrot.slane %v1408, 3
    %v1413 = vrot.slane %v1409, 3
    %v1416 = vsel %vm1220, %v1408, %v1412
    %v1419 = vsel %vm1220, %v1409, %v1413
    %1420 = vst [vmem:[#allocation1] ss:$4 sm:$0xff] %v1416
    %v1421 = vld [vmem:[#allocation1] sm:$0xff]
    %s1423 = scalar_lea.vmem [#allocation1], 32
    %1424 = vst [vmem:[%s1423] ss:$4 sm:$0xff] %v1419
    %v1425 = vld [vmem:[#allocation1 + $0x20] sm:$0xff]
    %v1427 = vunpack.c.l.b16 %v1421
    %v1428 = vunpack.c.l.b16 %v1425
    %v1429 = vrot.slane %v1428, 7
    %v1430 = vsel %vm1237, %v1429, %v1427
    %v1431 = vpack.c.b16 %v1430, %v1430
    %v1432 = vrot.slane %v1431, 3
    %v1435 = vsel %vm1220, %v1431, %v1432
    %1437 = vst [vmem:[#allocation3 + $0x8] sm:$0x1] %v1435
    %1438 = vst [vmem:[#allocation1] ss:$4 sm:$0xff] %v1416
    %v1439 = vld [vmem:[#allocation1] sm:$0xff]
    %s1441 = scalar_lea.vmem [#allocation1], 32
    %1442 = vst [vmem:[%s1441] ss:$4 sm:$0xff] %v1419
    %v1443 = vld [vmem:[#allocation1 + $0x20] sm:$0xff]
    %v1445 = vunpack.c.l.b16 %v1439
    %v1446 = vunpack.c.l.b16 %v1443
    %v1447 = vrot.slane %v1445, 1
    %v1448 = vsel %vm1237, %v1446, %v1447
    %v1449 = vpack.c.b16 %v1448, %v1448
    %v1450 = vrot.slane %v1449, 3
    %v1453 = vsel %vm1220, %v1449, %v1450
    %1455 = vst [vmem:[#allocation3 + $0x9] sm:$0x1] %v1453
    %1456 = vst [vmem:[#allocation1] sm:$0xff] %v1408
    %s1457 = scalar_lea.vmem [#allocation1], 1
    %v1458 = vld [vmem:[%s1457] ss:$4 sm:$0xff]
    %1459 = vst [vmem:[#allocation1 + $0x20] sm:$0xff] %v1409
    %s1460 = scalar_lea.vmem [#allocation1], 33
    %v1461 = vld [vmem:[%s1460] ss:$4 sm:$0xff]
    %1462 = vst [vmem:[#allocation1] ss:$4 sm:$0xff] %v1458
    %v1463 = vld [vmem:[#allocation1] sm:$0xff]
    %s1465 = scalar_lea.vmem [#allocation1], 32
    %1466 = vst [vmem:[%s1465] ss:$4 sm:$0xff] %v1461
    %v1467 = vld [vmem:[#allocation1 + $0x20] sm:$0xff]
    %v1469 = vunpack.c.l.b16 %v1463
    %v1470 = vunpack.c.l.b16 %v1467
    %v1471 = vrot.slane %v1470, 7
    %v1472 = vsel %vm1237, %v1471, %v1469
    %v1473 = vpack.c.b16 %v1472, %v1472
    %v1474 = vrot.slane %v1473, 3
    %v1477 = vsel %vm1220, %v1473, %v1474
    %1479 = vst [vmem:[#allocation3 + $0xa] sm:$0x1] %v1477
    %1480 = vst [vmem:[#allocation1] sm:$0xff] %v1408
    %s1481 = scalar_lea.vmem [#allocation1], 1
    %v1482 = vld [vmem:[%s1481] ss:$4 sm:$0xff]
    %1483 = vst [vmem:[#allocation1 + $0x20] sm:$0xff] %v1409
    %s1484 = scalar_lea.vmem [#allocation1], 33
    %v1485 = vld [vmem:[%s1484] ss:$4 sm:$0xff]
    %1486 = vst [vmem:[#allocation1] ss:$4 sm:$0xff] %v1482
    %v1487 = vld [vmem:[#allocation1] sm:$0xff]
    %s1489 = scalar_lea.vmem [#allocation1], 32
    %1490 = vst [vmem:[%s1489] ss:$4 sm:$0xff] %v1485
    %v1491 = vld [vmem:[#allocation1 + $0x20] sm:$0xff]
    %v1493 = vunpack.c.l.b16 %v1487
    %v1494 = vunpack.c.l.b16 %v1491
    %v1495 = vrot.slane %v1493, 1
    %v1496 = vsel %vm1237, %v1494, %v1495
    %v1497 = vpack.c.b16 %v1496, %v1496
    %v1498 = vrot.slane %v1497, 3
    %v1501 = vsel %vm1220, %v1497, %v1498
    %1503 = vst [vmem:[#allocation3 + $0xb] sm:$0x1] %v1501
    %1504 = vst [vmem:[#allocation1] sm:$0xff] %v1408
    %s1505 = scalar_lea.vmem [#allocation1], 2
    %v1506 = vld [vmem:[%s1505] ss:$4 sm:$0xff]
    %1507 = vst [vmem:[#allocation1 + $0x20] sm:$0xff] %v1409
    %s1508 = scalar_lea.vmem [#allocation1], 34
    %v1509 = vld [vmem:[%s1508] ss:$4 sm:$0xff]
    %1510 = vst [vmem:[#allocation1] ss:$4 sm:$0xff] %v1506
    %v1511 = vld [vmem:[#allocation1] sm:$0xff]
    %s1513 = scalar_lea.vmem [#allocation1], 32
    %1514 = vst [vmem:[%s1513] ss:$4 sm:$0xff] %v1509
    %v1515 = vld [vmem:[#allocation1 + $0x20] sm:$0xff]
    %v1517 = vunpack.c.l.b16 %v1511
    %v1518 = vunpack.c.l.b16 %v1515
    %v1519 = vrot.slane %v1518, 7
    %v1520 = vsel %vm1237, %v1519, %v1517
    %v1521 = vpack.c.b16 %v1520, %v1520
    %v1522 = vrot.slane %v1521, 3
    %v1525 = vsel %vm1220, %v1521, %v1522
    %1527 = vst [vmem:[#allocation3 + $0xc] sm:$0x1] %v1525
    %1528 = vst [vmem:[#allocation1] sm:$0xff] %v1408
    %s1529 = scalar_lea.vmem [#allocation1], 2
    %v1530 = vld [vmem:[%s1529] ss:$4 sm:$0xff]
    %1531 = vst [vmem:[#allocation1 + $0x20] sm:$0xff] %v1409
    %s1532 = scalar_lea.vmem [#allocation1], 34
    %v1533 = vld [vmem:[%s1532] ss:$4 sm:$0xff]
    %1534 = vst [vmem:[#allocation1] ss:$4 sm:$0xff] %v1530
    %v1535 = vld [vmem:[#allocation1] sm:$0xff]
    %s1537 = scalar_lea.vmem [#allocation1], 32
    %1538 = vst [vmem:[%s1537] ss:$4 sm:$0xff] %v1533
    %v1539 = vld [vmem:[#allocation1 + $0x20] sm:$0xff]
    %v1541 = vunpack.c.l.b16 %v1535
    %v1542 = vunpack.c.l.b16 %v1539
    %v1543 = vrot.slane %v1541, 1
    %v1544 = vsel %vm1237, %v1542, %v1543
    %v1545 = vpack.c.b16 %v1544, %v1544
    %v1546 = vrot.slane %v1545, 3
    %v1549 = vsel %vm1220, %v1545, %v1546
    %1551 = vst [vmem:[#allocation3 + $0xd] sm:$0x1] %v1549
    %1552 = vst [vmem:[#allocation1] sm:$0xff] %v1408
    %s1553 = scalar_lea.vmem [#allocation1], 3
    %v1554 = vld [vmem:[%s1553] ss:$4 sm:$0xff]
    %1555 = vst [vmem:[#allocation1 + $0x20] sm:$0xff] %v1409
    %s1556 = scalar_lea.vmem [#allocation1], 35
    %v1557 = vld [vmem:[%s1556] ss:$4 sm:$0xff]
    %1558 = vst [vmem:[#allocation1] ss:$4 sm:$0xff] %v1554
    %v1559 = vld [vmem:[#allocation1] sm:$0xff]
    %s1561 = scalar_lea.vmem [#allocation1], 32
    %1562 = vst [vmem:[%s1561] ss:$4 sm:$0xff] %v1557
    %v1563 = vld [vmem:[#allocation1 + $0x20] sm:$0xff]
    %v1565 = vunpack.c.l.b16 %v1559
    %v1566 = vunpack.c.l.b16 %v1563
    %v1567 = vrot.slane %v1566, 7
    %v1568 = vsel %vm1237, %v1567, %v1565
    %v1569 = vpack.c.b16 %v1568, %v1568
    %v1570 = vrot.slane %v1569, 3
    %v1573 = vsel %vm1220, %v1569, %v1570
    %1575 = vst [vmem:[#allocation3 + $0xe] sm:$0x1] %v1573
    %1576 = vst [vmem:[#allocation1] sm:$0xff] %v1408
    %s1577 = scalar_lea.vmem [#allocation1], 3
    %v1578 = vld [vmem:[%s1577] ss:$4 sm:$0xff]
    %1579 = vst [vmem:[#allocation1 + $0x20] sm:$0xff] %v1409
    %s1580 = scalar_lea.vmem [#allocation1], 35
    %v1581 = vld [vmem:[%s1580] ss:$4 sm:$0xff]
    %1582 = vst [vmem:[#allocation1] ss:$4 sm:$0xff] %v1578
    %v1583 = vld [vmem:[#allocation1] sm:$0xff]
    %s1585 = scalar_lea.vmem [#allocation1], 32
    %1586 = vst [vmem:[%s1585] ss:$4 sm:$0xff] %v1581
    %v1587 = vld [vmem:[#allocation1 + $0x20] sm:$0xff]
    %v1589 = vunpack.c.l.b16 %v1583
    %v1590 = vunpack.c.l.b16 %v1587
    %v1591 = vrot.slane %v1589, 1
    %v1592 = vsel %vm1237, %v1590, %v1591
    %v1593 = vpack.c.b16 %v1592, %v1592
    %v1594 = vrot.slane %v1593, 3
    %v1597 = vsel %vm1220, %v1593, %v1594
    %1599 = vst [vmem:[#allocation3 + $0xf] sm:$0x1] %v1597
    %v1600 = vld [vmem:[#allocation3] sm:$0xff]
    %v1601 = vld [vmem:[#allocation3 + $0x8] sm:$0xff]
    %v1602 = vld [vmem:[#allocation12] sm:$0xf]
    %v1603 = vld [vmem:[#allocation12 + $0x4] sm:$0xf]
    %v1604 = vld [vmem:[#allocation12 + $0x8] sm:$0xf]
    %v1605 = vld [vmem:[#allocation12 + $0xc] sm:$0xf]
    %v1606 = vld [vmem:[#allocation12 + $0x10] sm:$0xf]
    %v1607 = vld [vmem:[#allocation12 + $0x14] sm:$0xf]
    %v1608 = vld [vmem:[#allocation12 + $0x18] sm:$0xf]
    %v1609 = vld [vmem:[#allocation12 + $0x1c] sm:$0xf]
    %v1610 = vld [vmem:[#allocation12 + $0x20] sm:$0xf]
    %v1611 = vld [vmem:[#allocation12 + $0x24] sm:$0xf]
    %v1612 = vld [vmem:[#allocation12 + $0x28] sm:$0xf]
    %v1613 = vld [vmem:[#allocation12 + $0x2c] sm:$0xf]
    %v1614 = vld [vmem:[#allocation12 + $0x30] sm:$0xf]
    %v1615 = vld [vmem:[#allocation12 + $0x34] sm:$0xf]
    %v1616 = vld [vmem:[#allocation12 + $0x38] sm:$0xf]
    %v1617 = vld [vmem:[#allocation12 + $0x3c] sm:$0xf]
    %v1618 = vld [vmem:[#allocation12 + $0x40] sm:$0xf]
    %v1619 = vld [vmem:[#allocation12 + $0x44] sm:$0xf]
    %v1620 = vld [vmem:[#allocation12 + $0x48] sm:$0xf]
    %v1621 = vld [vmem:[#allocation12 + $0x4c] sm:$0xf]
    %v1622 = vld [vmem:[#allocation12 + $0x50] sm:$0xf]
    %v1623 = vld [vmem:[#allocation12 + $0x54] sm:$0xf]
    %v1624 = vld [vmem:[#allocation12 + $0x58] sm:$0xf]
    %v1625 = vld [vmem:[#allocation12 + $0x5c] sm:$0xf]
    %v1626 = vld [vmem:[#allocation12 + $0x60] sm:$0xf]
    %v1627 = vld [vmem:[#allocation12 + $0x64] sm:$0xf]
    %v1628 = vld [vmem:[#allocation12 + $0x68] sm:$0xf]
    %v1629 = vld [vmem:[#allocation12 + $0x6c] sm:$0xf]
    %v1630 = vld [vmem:[#allocation12 + $0x70] sm:$0xf]
    %v1631 = vld [vmem:[#allocation12 + $0x74] sm:$0xf]
    %v1632 = vld [vmem:[#allocation12 + $0x78] sm:$0xf]
    %v1633 = vld [vmem:[#allocation12 + $0x7c] sm:$0xf]
    %v1634 = vld [vmem:[#allocation12 + $0x80] sm:$0xf]
    %v1635 = vld [vmem:[#allocation12 + $0x84] sm:$0xf]
    %v1636 = vld [vmem:[#allocation12 + $0x88] sm:$0xf]
    %v1637 = vld [vmem:[#allocation12 + $0x8c] sm:$0xf]
    %v1638 = vld [vmem:[#allocation12 + $0x90] sm:$0xf]
    %v1639 = vld [vmem:[#allocation12 + $0x94] sm:$0xf]
    %v1640 = vld [vmem:[#allocation12 + $0x98] sm:$0xf]
    %v1641 = vld [vmem:[#allocation12 + $0x9c] sm:$0xf]
    %v1642 = vld [vmem:[#allocation12 + $0xa0] sm:$0xf]
    %v1643 = vld [vmem:[#allocation12 + $0xa4] sm:$0xf]
    %v1644 = vld [vmem:[#allocation12 + $0xa8] sm:$0xf]
    %v1645 = vld [vmem:[#allocation12 + $0xac] sm:$0xf]
    %v1646 = vld [vmem:[#allocation12 + $0xb0] sm:$0xf]
    %v1647 = vld [vmem:[#allocation12 + $0xb4] sm:$0xf]
    %v1648 = vld [vmem:[#allocation12 + $0xb8] sm:$0xf]
    %v1649 = vld [vmem:[#allocation12 + $0xbc] sm:$0xf]
    %v1650 = vld [vmem:[#allocation12 + $0xc0] sm:$0xf]
    %v1651 = vld [vmem:[#allocation12 + $0xc4] sm:$0xf]
    %v1652 = vld [vmem:[#allocation12 + $0xc8] sm:$0xf]
    %v1653 = vld [vmem:[#allocation12 + $0xcc] sm:$0xf]
    %v1654 = vld [vmem:[#allocation12 + $0xd0] sm:$0xf]
    %v1655 = vld [vmem:[#allocation12 + $0xd4] sm:$0xf]
    %v1656 = vld [vmem:[#allocation12 + $0xd8] sm:$0xf]
    %v1657 = vld [vmem:[#allocation12 + $0xdc] sm:$0xf]
    %v1658 = vld [vmem:[#allocation12 + $0xe0] sm:$0xf]
    %v1659 = vld [vmem:[#allocation12 + $0xe4] sm:$0xf]
    %v1660 = vld [vmem:[#allocation12 + $0xe8] sm:$0xf]
    %v1661 = vld [vmem:[#allocation12 + $0xec] sm:$0xf]
    %v1662 = vld [vmem:[#allocation12 + $0xf0] sm:$0xf]
    %v1663 = vld [vmem:[#allocation12 + $0xf4] sm:$0xf]
    %v1664 = vld [vmem:[#allocation12 + $0xf8] sm:$0xf]
    %v1665 = vld [vmem:[#allocation12 + $0xfc] sm:$0xf]
    %v1666 = vld [vmem:[#allocation12 + $0x100] sm:$0xf]
    %v1667 = vld [vmem:[#allocation12 + $0x104] sm:$0xf]
    %v1668 = vld [vmem:[#allocation12 + $0x108] sm:$0xf]
    %v1669 = vld [vmem:[#allocation12 + $0x10c] sm:$0xf]
    %v1670 = vld [vmem:[#allocation12 + $0x110] sm:$0xf]
    %v1671 = vld [vmem:[#allocation12 + $0x114] sm:$0xf]
    %v1672 = vld [vmem:[#allocation12 + $0x118] sm:$0xf]
    %v1673 = vld [vmem:[#allocation12 + $0x11c] sm:$0xf]
    %v1674 = vld [vmem:[#allocation12 + $0x120] sm:$0xf]
    %v1675 = vld [vmem:[#allocation12 + $0x124] sm:$0xf]
    %v1676 = vld [vmem:[#allocation12 + $0x128] sm:$0xf]
    %v1677 = vld [vmem:[#allocation12 + $0x12c] sm:$0xf]
    %v1678 = vld [vmem:[#allocation12 + $0x130] sm:$0xf]
    %v1679 = vld [vmem:[#allocation12 + $0x134] sm:$0xf]
    %v1680 = vld [vmem:[#allocation12 + $0x138] sm:$0xf]
    %v1681 = vld [vmem:[#allocation12 + $0x13c] sm:$0xf]
    %v1682 = vld [vmem:[#allocation12 + $0x140] sm:$0xf]
    %v1683 = vld [vmem:[#allocation12 + $0x144] sm:$0xf]
    %v1684 = vld [vmem:[#allocation12 + $0x148] sm:$0xf]
    %v1685 = vld [vmem:[#allocation12 + $0x14c] sm:$0xf]
    %v1686 = vld [vmem:[#allocation12 + $0x150] sm:$0xf]
    %v1687 = vld [vmem:[#allocation12 + $0x154] sm:$0xf]
    %v1688 = vld [vmem:[#allocation12 + $0x158] sm:$0xf]
    %v1689 = vld [vmem:[#allocation12 + $0x15c] sm:$0xf]
    %v1690 = vld [vmem:[#allocation12 + $0x160] sm:$0xf]
    %v1691 = vld [vmem:[#allocation12 + $0x164] sm:$0xf]
    %v1692 = vld [vmem:[#allocation12 + $0x168] sm:$0xf]
    %v1693 = vld [vmem:[#allocation12 + $0x16c] sm:$0xf]
    %v1694 = vld [vmem:[#allocation12 + $0x170] sm:$0xf]
    %v1695 = vld [vmem:[#allocation12 + $0x174] sm:$0xf]
    %v1696 = vld [vmem:[#allocation12 + $0x178] sm:$0xf]
    %v1697 = vld [vmem:[#allocation12 + $0x17c] sm:$0xf]
    %v1698 = vld [vmem:[#allocation12 + $0x180] sm:$0xf]
    %v1699 = vld [vmem:[#allocation12 + $0x184] sm:$0xf]
    %v1700 = vld [vmem:[#allocation12 + $0x188] sm:$0xf]
    %v1701 = vld [vmem:[#allocation12 + $0x18c] sm:$0xf]
    %v1702 = vld [vmem:[#allocation12 + $0x190] sm:$0xf]
    %v1703 = vld [vmem:[#allocation12 + $0x194] sm:$0xf]
    %v1704 = vld [vmem:[#allocation12 + $0x198] sm:$0xf]
    %v1705 = vld [vmem:[#allocation12 + $0x19c] sm:$0xf]
    %v1706 = vld [vmem:[#allocation12 + $0x1a0] sm:$0xf]
    %v1707 = vld [vmem:[#allocation12 + $0x1a4] sm:$0xf]
    %v1708 = vld [vmem:[#allocation12 + $0x1a8] sm:$0xf]
    %v1709 = vld [vmem:[#allocation12 + $0x1ac] sm:$0xf]
    %v1710 = vld [vmem:[#allocation12 + $0x1b0] sm:$0xf]
    %v1711 = vld [vmem:[#allocation12 + $0x1b4] sm:$0xf]
    %v1712 = vld [vmem:[#allocation12 + $0x1b8] sm:$0xf]
    %v1713 = vld [vmem:[#allocation12 + $0x1bc] sm:$0xf]
    %v1714 = vld [vmem:[#allocation12 + $0x1c0] sm:$0xf]
    %v1715 = vld [vmem:[#allocation12 + $0x1c4] sm:$0xf]
    %v1716 = vld [vmem:[#allocation12 + $0x1c8] sm:$0xf]
    %v1717 = vld [vmem:[#allocation12 + $0x1cc] sm:$0xf]
    %v1718 = vld [vmem:[#allocation12 + $0x1d0] sm:$0xf]
    %v1719 = vld [vmem:[#allocation12 + $0x1d4] sm:$0xf]
    %v1720 = vld [vmem:[#allocation12 + $0x1d8] sm:$0xf]
    %v1721 = vld [vmem:[#allocation12 + $0x1dc] sm:$0xf]
    %v1722 = vld [vmem:[#allocation12 + $0x1e0] sm:$0xf]
    %v1723 = vld [vmem:[#allocation12 + $0x1e4] sm:$0xf]
    %v1724 = vld [vmem:[#allocation12 + $0x1e8] sm:$0xf]
    %v1725 = vld [vmem:[#allocation12 + $0x1ec] sm:$0xf]
    %v1726 = vld [vmem:[#allocation12 + $0x1f0] sm:$0xf]
    %v1727 = vld [vmem:[#allocation12 + $0x1f4] sm:$0xf]
    %v1728 = vld [vmem:[#allocation12 + $0x1f8] sm:$0xf]
    %v1729 = vld [vmem:[#allocation12 + $0x1fc] sm:$0xf]
    %v1730 = vld [vmem:[#allocation12 + $0x200] sm:$0xf]
    %v1731 = vld [vmem:[#allocation12 + $0x204] sm:$0xf]
    %v1732 = vld [vmem:[#allocation12 + $0x208] sm:$0xf]
    %v1733 = vld [vmem:[#allocation12 + $0x20c] sm:$0xf]
    %v1734 = vld [vmem:[#allocation12 + $0x210] sm:$0xf]
    %v1735 = vld [vmem:[#allocation12 + $0x214] sm:$0xf]
    %v1736 = vld [vmem:[#allocation12 + $0x218] sm:$0xf]
    %v1737 = vld [vmem:[#allocation12 + $0x21c] sm:$0xf]
    %v1738 = vld [vmem:[#allocation12 + $0x220] sm:$0xf]
    %v1739 = vld [vmem:[#allocation12 + $0x224] sm:$0xf]
    %v1740 = vld [vmem:[#allocation12 + $0x228] sm:$0xf]
    %v1741 = vld [vmem:[#allocation12 + $0x22c] sm:$0xf]
    %v1742 = vld [vmem:[#allocation12 + $0x230] sm:$0xf]
    %v1743 = vld [vmem:[#allocation12 + $0x234] sm:$0xf]
    %v1744 = vld [vmem:[#allocation12 + $0x238] sm:$0xf]
    %v1745 = vld [vmem:[#allocation12 + $0x23c] sm:$0xf]
    %v1746 = vld [vmem:[#allocation12 + $0x240] sm:$0xf]
    %v1747 = vld [vmem:[#allocation12 + $0x244] sm:$0xf]
    %v1748 = vld [vmem:[#allocation12 + $0x248] sm:$0xf]
    %v1749 = vld [vmem:[#allocation12 + $0x24c] sm:$0xf]
    %v1750 = vld [vmem:[#allocation12 + $0x250] sm:$0xf]
    %v1751 = vld [vmem:[#allocation12 + $0x254] sm:$0xf]
    %v1752 = vld [vmem:[#allocation12 + $0x258] sm:$0xf]
    %v1753 = vld [vmem:[#allocation12 + $0x25c] sm:$0xf]
    %v1754 = vld [vmem:[#allocation12 + $0x260] sm:$0xf]
    %v1755 = vld [vmem:[#allocation12 + $0x264] sm:$0xf]
    %v1756 = vld [vmem:[#allocation12 + $0x268] sm:$0xf]
    %v1757 = vld [vmem:[#allocation12 + $0x26c] sm:$0xf]
    %v1758 = vld [vmem:[#allocation12 + $0x270] sm:$0xf]
    %v1759 = vld [vmem:[#allocation12 + $0x274] sm:$0xf]
    %v1760 = vld [vmem:[#allocation12 + $0x278] sm:$0xf]
    %v1761 = vld [vmem:[#allocation12 + $0x27c] sm:$0xf]
    %v1762 = vld [vmem:[#allocation12 + $0x280] sm:$0xf]
    %v1763 = vld [vmem:[#allocation12 + $0x284] sm:$0xf]
    %v1764 = vld [vmem:[#allocation12 + $0x288] sm:$0xf]
    %v1765 = vld [vmem:[#allocation12 + $0x28c] sm:$0xf]
    %v1766 = vld [vmem:[#allocation12 + $0x290] sm:$0xf]
    %v1767 = vld [vmem:[#allocation12 + $0x294] sm:$0xf]
    %v1768 = vld [vmem:[#allocation12 + $0x298] sm:$0xf]
    %v1769 = vld [vmem:[#allocation12 + $0x29c] sm:$0xf]
    %v1770 = vld [vmem:[#allocation12 + $0x2a0] sm:$0xf]
    %v1771 = vld [vmem:[#allocation12 + $0x2a4] sm:$0xf]
    %v1772 = vld [vmem:[#allocation12 + $0x2a8] sm:$0xf]
    %v1773 = vld [vmem:[#allocation12 + $0x2ac] sm:$0xf]
    %v1774 = vld [vmem:[#allocation12 + $0x2b0] sm:$0xf]
    %v1775 = vld [vmem:[#allocation12 + $0x2b4] sm:$0xf]
    %v1776 = vld [vmem:[#allocation12 + $0x2b8] sm:$0xf]
    %v1777 = vld [vmem:[#allocation12 + $0x2bc] sm:$0xf]
    %v1778 = vld [vmem:[#allocation12 + $0x2c0] sm:$0xf]
    %v1779 = vld [vmem:[#allocation12 + $0x2c4] sm:$0xf]
    %v1780 = vld [vmem:[#allocation12 + $0x2c8] sm:$0xf]
    %v1781 = vld [vmem:[#allocation12 + $0x2cc] sm:$0xf]
    %v1782 = vld [vmem:[#allocation12 + $0x2d0] sm:$0xf]
    %v1783 = vld [vmem:[#allocation12 + $0x2d4] sm:$0xf]
    %v1784 = vld [vmem:[#allocation12 + $0x2d8] sm:$0xf]
    %v1785 = vld [vmem:[#allocation12 + $0x2dc] sm:$0xf]
    %v1786 = vld [vmem:[#allocation12 + $0x2e0] sm:$0xf]
    %v1787 = vld [vmem:[#allocation12 + $0x2e4] sm:$0xf]
    %v1788 = vld [vmem:[#allocation12 + $0x2e8] sm:$0xf]
    %v1789 = vld [vmem:[#allocation12 + $0x2ec] sm:$0xf]
    %v1790 = vld [vmem:[#allocation12 + $0x2f0] sm:$0xf]
    %v1791 = vld [vmem:[#allocation12 + $0x2f4] sm:$0xf]
    %v1792 = vld [vmem:[#allocation12 + $0x2f8] sm:$0xf]
    %v1793 = vld [vmem:[#allocation12 + $0x2fc] sm:$0xf]
    %v1794 = vld [vmem:[#allocation12 + $0x300] sm:$0xf]
    %v1795 = vld [vmem:[#allocation12 + $0x304] sm:$0xf]
    %v1796 = vld [vmem:[#allocation12 + $0x308] sm:$0xf]
    %v1797 = vld [vmem:[#allocation12 + $0x30c] sm:$0xf]
    %v1798 = vld [vmem:[#allocation12 + $0x310] sm:$0xf]
    %v1799 = vld [vmem:[#allocation12 + $0x314] sm:$0xf]
    %v1800 = vld [vmem:[#allocation12 + $0x318] sm:$0xf]
    %v1801 = vld [vmem:[#allocation12 + $0x31c] sm:$0xf]
    %v1802 = vld [vmem:[#allocation12 + $0x320] sm:$0xf]
    %v1803 = vld [vmem:[#allocation12 + $0x324] sm:$0xf]
    %v1804 = vld [vmem:[#allocation12 + $0x328] sm:$0xf]
    %v1805 = vld [vmem:[#allocation12 + $0x32c] sm:$0xf]
    %v1806 = vld [vmem:[#allocation12 + $0x330] sm:$0xf]
    %v1807 = vld [vmem:[#allocation12 + $0x334] sm:$0xf]
    %v1808 = vld [vmem:[#allocation12 + $0x338] sm:$0xf]
    %v1809 = vld [vmem:[#allocation12 + $0x33c] sm:$0xf]
    %v1810 = vld [vmem:[#allocation12 + $0x340] sm:$0xf]
    %v1811 = vld [vmem:[#allocation12 + $0x344] sm:$0xf]
    %v1812 = vld [vmem:[#allocation12 + $0x348] sm:$0xf]
    %v1813 = vld [vmem:[#allocation12 + $0x34c] sm:$0xf]
    %v1814 = vld [vmem:[#allocation12 + $0x350] sm:$0xf]
    %v1815 = vld [vmem:[#allocation12 + $0x354] sm:$0xf]
    %v1816 = vld [vmem:[#allocation12 + $0x358] sm:$0xf]
    %v1817 = vld [vmem:[#allocation12 + $0x35c] sm:$0xf]
    %v1818 = vld [vmem:[#allocation12 + $0x360] sm:$0xf]
    %v1819 = vld [vmem:[#allocation12 + $0x364] sm:$0xf]
    %v1820 = vld [vmem:[#allocation12 + $0x368] sm:$0xf]
    %v1821 = vld [vmem:[#allocation12 + $0x36c] sm:$0xf]
    %v1822 = vld [vmem:[#allocation12 + $0x370] sm:$0xf]
    %v1823 = vld [vmem:[#allocation12 + $0x374] sm:$0xf]
    %v1824 = vld [vmem:[#allocation12 + $0x378] sm:$0xf]
    %v1825 = vld [vmem:[#allocation12 + $0x37c] sm:$0xf]
    %v1826 = vld [vmem:[#allocation12 + $0x380] sm:$0xf]
    %v1827 = vld [vmem:[#allocation12 + $0x384] sm:$0xf]
    %v1828 = vld [vmem:[#allocation12 + $0x388] sm:$0xf]
    %v1829 = vld [vmem:[#allocation12 + $0x38c] sm:$0xf]
    %v1830 = vld [vmem:[#allocation12 + $0x390] sm:$0xf]
    %v1831 = vld [vmem:[#allocation12 + $0x394] sm:$0xf]
    %v1832 = vld [vmem:[#allocation12 + $0x398] sm:$0xf]
    %v1833 = vld [vmem:[#allocation12 + $0x39c] sm:$0xf]
    %v1834 = vld [vmem:[#allocation12 + $0x3a0] sm:$0xf]
    %v1835 = vld [vmem:[#allocation12 + $0x3a4] sm:$0xf]
    %v1836 = vld [vmem:[#allocation12 + $0x3a8] sm:$0xf]
    %v1837 = vld [vmem:[#allocation12 + $0x3ac] sm:$0xf]
    %v1838 = vld [vmem:[#allocation12 + $0x3b0] sm:$0xf]
    %v1839 = vld [vmem:[#allocation12 + $0x3b4] sm:$0xf]
    %v1840 = vld [vmem:[#allocation12 + $0x3b8] sm:$0xf]
    %v1841 = vld [vmem:[#allocation12 + $0x3bc] sm:$0xf]
    %v1842 = vld [vmem:[#allocation12 + $0x3c0] sm:$0xf]
    %v1843 = vld [vmem:[#allocation12 + $0x3c4] sm:$0xf]
    %v1844 = vld [vmem:[#allocation12 + $0x3c8] sm:$0xf]
    %v1845 = vld [vmem:[#allocation12 + $0x3cc] sm:$0xf]
    %v1846 = vld [vmem:[#allocation12 + $0x3d0] sm:$0xf]
    %v1847 = vld [vmem:[#allocation12 + $0x3d4] sm:$0xf]
    %v1848 = vld [vmem:[#allocation12 + $0x3d8] sm:$0xf]
    %v1849 = vld [vmem:[#allocation12 + $0x3dc] sm:$0xf]
    %v1850 = vld [vmem:[#allocation12 + $0x3e0] sm:$0xf]
    %v1851 = vld [vmem:[#allocation12 + $0x3e4] sm:$0xf]
    %v1852 = vld [vmem:[#allocation12 + $0x3e8] sm:$0xf]
    %v1853 = vld [vmem:[#allocation12 + $0x3ec] sm:$0xf]
    %v1854 = vld [vmem:[#allocation12 + $0x3f0] sm:$0xf]
    %v1855 = vld [vmem:[#allocation12 + $0x3f4] sm:$0xf]
    %v1856 = vld [vmem:[#allocation12 + $0x3f8] sm:$0xf]
    %v1857 = vld [vmem:[#allocation12 + $0x3fc] sm:$0xf]
    %v1858 = vld [vmem:[%s8] sm:$0x1]
    %v1860 = vperm.slane %v1858, 0
    %1863 = vst [vmem:[#allocation1] ss:$9 sm:$0xff] %v1600
    %v1864 = vld [vmem:[#allocation1] sm:$0xff]
    %v1865 = vld [vmem:[#allocation1 + $0x9] sm:$0xff]
    %v1866 = vld [vmem:[#allocation1 + $0x12] sm:$0xff]
    %v1867 = vld [vmem:[#allocation1 + $0x1b] sm:$0xff]
    %v1868 = vld [vmem:[#allocation1 + $0x24] sm:$0xff]
    %v1869 = vld [vmem:[#allocation1 + $0x2d] sm:$0xff]
    %v1870 = vld [vmem:[#allocation1 + $0x36] sm:$0xff]
    %v1871 = vld [vmem:[#allocation1 + $0x3f] sm:$0xff]
    %1873 = vst [vmem:[#allocation1] ss:$9 sm:$0xff] %v1601
    %v1874 = vld [vmem:[#allocation1] sm:$0xff]
    %v1875 = vld [vmem:[#allocation1 + $0x9] sm:$0xff]
    %v1876 = vld [vmem:[#allocation1 + $0x12] sm:$0xff]
    %v1877 = vld [vmem:[#allocation1 + $0x1b] sm:$0xff]
    %v1878 = vld [vmem:[#allocation1 + $0x24] sm:$0xff]
    %v1879 = vld [vmem:[#allocation1 + $0x2d] sm:$0xff]
    %v1880 = vld [vmem:[#allocation1 + $0x36] sm:$0xff]
    %v1881 = vld [vmem:[#allocation1 + $0x3f] sm:$0xff]
    %v2154 = vunpack.c.l.b16 %v1602
    %v2155 = vunpack.c.l.b16 %v1603
    %v2156 = vunpack.c.l.b16 %v1604
    %v2157 = vunpack.c.l.b16 %v1605
    %v2158 = vunpack.c.l.b16 %v1606
    %v2159 = vunpack.c.l.b16 %v1607
    %v2160 = vunpack.c.l.b16 %v1608
    %v2161 = vunpack.c.l.b16 %v1609
    %v2162 = vunpack.c.l.b16 %v1610
    %v2163 = vunpack.c.l.b16 %v1611
    %v2164 = vunpack.c.l.b16 %v1612
    %v2165 = vunpack.c.l.b16 %v1613
    %v2166 = vunpack.c.l.b16 %v1614
    %v2167 = vunpack.c.l.b16 %v1615
    %v2168 = vunpack.c.l.b16 %v1616
    %v2169 = vunpack.c.l.b16 %v1617
    %v2170 = vunpack.c.l.b16 %v1618
    %v2171 = vunpack.c.l.b16 %v1619
    %v2172 = vunpack.c.l.b16 %v1620
    %v2173 = vunpack.c.l.b16 %v1621
    %v2174 = vunpack.c.l.b16 %v1622
    %v2175 = vunpack.c.l.b16 %v1623
    %v2176 = vunpack.c.l.b16 %v1624
    %v2177 = vunpack.c.l.b16 %v1625
    %v2178 = vunpack.c.l.b16 %v1626
    %v2179 = vunpack.c.l.b16 %v1627
    %v2180 = vunpack.c.l.b16 %v1628
    %v2181 = vunpack.c.l.b16 %v1629
    %v2182 = vunpack.c.l.b16 %v1630
    %v2183 = vunpack.c.l.b16 %v1631
    %v2184 = vunpack.c.l.b16 %v1632
    %v2185 = vunpack.c.l.b16 %v1633
    %v2186 = vunpack.c.l.b16 %v1634
    %v2187 = vunpack.c.l.b16 %v1635
    %v2188 = vunpack.c.l.b16 %v1636
    %v2189 = vunpack.c.l.b16 %v1637
    %v2190 = vunpack.c.l.b16 %v1638
    %v2191 = vunpack.c.l.b16 %v1639
    %v2192 = vunpack.c.l.b16 %v1640
    %v2193 = vunpack.c.l.b16 %v1641
    %v2194 = vunpack.c.l.b16 %v1642
    %v2195 = vunpack.c.l.b16 %v1643
    %v2196 = vunpack.c.l.b16 %v1644
    %v2197 = vunpack.c.l.b16 %v1645
    %v2198 = vunpack.c.l.b16 %v1646
    %v2199 = vunpack.c.l.b16 %v1647
    %v2200 = vunpack.c.l.b16 %v1648
    %v2201 = vunpack.c.l.b16 %v1649
    %v2202 = vunpack.c.l.b16 %v1650
    %v2203 = vunpack.c.l.b16 %v1651
    %v2204 = vunpack.c.l.b16 %v1652
    %v2205 = vunpack.c.l.b16 %v1653
    %v2206 = vunpack.c.l.b16 %v1654
    %v2207 = vunpack.c.l.b16 %v1655
    %v2208 = vunpack.c.l.b16 %v1656
    %v2209 = vunpack.c.l.b16 %v1657
    %v2210 = vunpack.c.l.b16 %v1658
    %v2211 = vunpack.c.l.b16 %v1659
    %v2212 = vunpack.c.l.b16 %v1660
    %v2213 = vunpack.c.l.b16 %v1661
    %v2214 = vunpack.c.l.b16 %v1662
    %v2215 = vunpack.c.l.b16 %v1663
    %v2216 = vunpack.c.l.b16 %v1664
    %v2217 = vunpack.c.l.b16 %v1665
    %v2218 = vunpack.c.l.b16 %v1666
    %v2219 = vunpack.c.l.b16 %v1667
    %v2220 = vunpack.c.l.b16 %v1668
    %v2221 = vunpack.c.l.b16 %v1669
    %v2222 = vunpack.c.l.b16 %v1670
    %v2223 = vunpack.c.l.b16 %v1671
    %v2224 = vunpack.c.l.b16 %v1672
    %v2225 = vunpack.c.l.b16 %v1673
    %v2226 = vunpack.c.l.b16 %v1674
    %v2227 = vunpack.c.l.b16 %v1675
    %v2228 = vunpack.c.l.b16 %v1676
    %v2229 = vunpack.c.l.b16 %v1677
    %v2230 = vunpack.c.l.b16 %v1678
    %v2231 = vunpack.c.l.b16 %v1679
    %v2232 = vunpack.c.l.b16 %v1680
    %v2233 = vunpack.c.l.b16 %v1681
    %v2234 = vunpack.c.l.b16 %v1682
    %v2235 = vunpack.c.l.b16 %v1683
    %v2236 = vunpack.c.l.b16 %v1684
    %v2237 = vunpack.c.l.b16 %v1685
    %v2238 = vunpack.c.l.b16 %v1686
    %v2239 = vunpack.c.l.b16 %v1687
    %v2240 = vunpack.c.l.b16 %v1688
    %v2241 = vunpack.c.l.b16 %v1689
    %v2242 = vunpack.c.l.b16 %v1690
    %v2243 = vunpack.c.l.b16 %v1691
    %v2244 = vunpack.c.l.b16 %v1692
    %v2245 = vunpack.c.l.b16 %v1693
    %v2246 = vunpack.c.l.b16 %v1694
    %v2247 = vunpack.c.l.b16 %v1695
    %v2248 = vunpack.c.l.b16 %v1696
    %v2249 = vunpack.c.l.b16 %v1697
    %v2250 = vunpack.c.l.b16 %v1698
    %v2251 = vunpack.c.l.b16 %v1699
    %v2252 = vunpack.c.l.b16 %v1700
    %v2253 = vunpack.c.l.b16 %v1701
    %v2254 = vunpack.c.l.b16 %v1702
    %v2255 = vunpack.c.l.b16 %v1703
    %v2256 = vunpack.c.l.b16 %v1704
    %v2257 = vunpack.c.l.b16 %v1705
    %v2258 = vunpack.c.l.b16 %v1706
    %v2259 = vunpack.c.l.b16 %v1707
    %v2260 = vunpack.c.l.b16 %v1708
    %v2261 = vunpack.c.l.b16 %v1709
    %v2262 = vunpack.c.l.b16 %v1710
    %v2263 = vunpack.c.l.b16 %v1711
    %v2264 = vunpack.c.l.b16 %v1712
    %v2265 = vunpack.c.l.b16 %v1713
    %v2266 = vunpack.c.l.b16 %v1714
    %v2267 = vunpack.c.l.b16 %v1715
    %v2268 = vunpack.c.l.b16 %v1716
    %v2269 = vunpack.c.l.b16 %v1717
    %v2270 = vunpack.c.l.b16 %v1718
    %v2271 = vunpack.c.l.b16 %v1719
    %v2272 = vunpack.c.l.b16 %v1720
    %v2273 = vunpack.c.l.b16 %v1721
    %v2274 = vunpack.c.l.b16 %v1722
    %v2275 = vunpack.c.l.b16 %v1723
    %v2276 = vunpack.c.l.b16 %v1724
    %v2277 = vunpack.c.l.b16 %v1725
    %v2278 = vunpack.c.l.b16 %v1726
    %v2279 = vunpack.c.l.b16 %v1727
    %v2280 = vunpack.c.l.b16 %v1728
    %v2281 = vunpack.c.l.b16 %v1729
    %v2282 = vunpack.c.l.b16 %v1730
    %v2283 = vunpack.c.l.b16 %v1731
    %v2284 = vunpack.c.l.b16 %v1732
    %v2285 = vunpack.c.l.b16 %v1733
    %v2286 = vunpack.c.l.b16 %v1734
    %v2287 = vunpack.c.l.b16 %v1735
    %v2288 = vunpack.c.l.b16 %v1736
    %v2289 = vunpack.c.l.b16 %v1737
    %v2290 = vunpack.c.l.b16 %v1738
    %v2291 = vunpack.c.l.b16 %v1739
    %v2292 = vunpack.c.l.b16 %v1740
    %v2293 = vunpack.c.l.b16 %v1741
    %v2294 = vunpack.c.l.b16 %v1742
    %v2295 = vunpack.c.l.b16 %v1743
    %v2296 = vunpack.c.l.b16 %v1744
    %v2297 = vunpack.c.l.b16 %v1745
    %v2298 = vunpack.c.l.b16 %v1746
    %v2299 = vunpack.c.l.b16 %v1747
    %v2300 = vunpack.c.l.b16 %v1748
    %v2301 = vunpack.c.l.b16 %v1749
    %v2302 = vunpack.c.l.b16 %v1750
    %v2303 = vunpack.c.l.b16 %v1751
    %v2304 = vunpack.c.l.b16 %v1752
    %v2305 = vunpack.c.l.b16 %v1753
    %v2306 = vunpack.c.l.b16 %v1754
    %v2307 = vunpack.c.l.b16 %v1755
    %v2308 = vunpack.c.l.b16 %v1756
    %v2309 = vunpack.c.l.b16 %v1757
    %v2310 = vunpack.c.l.b16 %v1758
    %v2311 = vunpack.c.l.b16 %v1759
    %v2312 = vunpack.c.l.b16 %v1760
    %v2313 = vunpack.c.l.b16 %v1761
    %v2314 = vunpack.c.l.b16 %v1762
    %v2315 = vunpack.c.l.b16 %v1763
    %v2316 = vunpack.c.l.b16 %v1764
    %v2317 = vunpack.c.l.b16 %v1765
    %v2318 = vunpack.c.l.b16 %v1766
    %v2319 = vunpack.c.l.b16 %v1767
    %v2320 = vunpack.c.l.b16 %v1768
    %v2321 = vunpack.c.l.b16 %v1769
    %v2322 = vunpack.c.l.b16 %v1770
    %v2323 = vunpack.c.l.b16 %v1771
    %v2324 = vunpack.c.l.b16 %v1772
    %v2325 = vunpack.c.l.b16 %v1773
    %v2326 = vunpack.c.l.b16 %v1774
    %v2327 = vunpack.c.l.b16 %v1775
    %v2328 = vunpack.c.l.b16 %v1776
    %v2329 = vunpack.c.l.b16 %v1777
    %v2330 = vunpack.c.l.b16 %v1778
    %v2331 = vunpack.c.l.b16 %v1779
    %v2332 = vunpack.c.l.b16 %v1780
    %v2333 = vunpack.c.l.b16 %v1781
    %v2334 = vunpack.c.l.b16 %v1782
    %v2335 = vunpack.c.l.b16 %v1783
    %v2336 = vunpack.c.l.b16 %v1784
    %v2337 = vunpack.c.l.b16 %v1785
    %v2338 = vunpack.c.l.b16 %v1786
    %v2339 = vunpack.c.l.b16 %v1787
    %v2340 = vunpack.c.l.b16 %v1788
    %v2341 = vunpack.c.l.b16 %v1789
    %v2342 = vunpack.c.l.b16 %v1790
    %v2343 = vunpack.c.l.b16 %v1791
    %v2344 = vunpack.c.l.b16 %v1792
    %v2345 = vunpack.c.l.b16 %v1793
    %v2346 = vunpack.c.l.b16 %v1794
    %v2347 = vunpack.c.l.b16 %v1795
    %v2348 = vunpack.c.l.b16 %v1796
    %v2349 = vunpack.c.l.b16 %v1797
    %v2350 = vunpack.c.l.b16 %v1798
    %v2351 = vunpack.c.l.b16 %v1799
    %v2352 = vunpack.c.l.b16 %v1800
    %v2353 = vunpack.c.l.b16 %v1801
    %v2354 = vunpack.c.l.b16 %v1802
    %v2355 = vunpack.c.l.b16 %v1803
    %v2356 = vunpack.c.l.b16 %v1804
    %v2357 = vunpack.c.l.b16 %v1805
    %v2358 = vunpack.c.l.b16 %v1806
    %v2359 = vunpack.c.l.b16 %v1807
    %v2360 = vunpack.c.l.b16 %v1808
    %v2361 = vunpack.c.l.b16 %v1809
    %v2362 = vunpack.c.l.b16 %v1810
    %v2363 = vunpack.c.l.b16 %v1811
    %v2364 = vunpack.c.l.b16 %v1812
    %v2365 = vunpack.c.l.b16 %v1813
    %v2366 = vunpack.c.l.b16 %v1814
    %v2367 = vunpack.c.l.b16 %v1815
    %v2368 = vunpack.c.l.b16 %v1816
    %v2369 = vunpack.c.l.b16 %v1817
    %v2370 = vunpack.c.l.b16 %v1818
    %v2371 = vunpack.c.l.b16 %v1819
    %v2372 = vunpack.c.l.b16 %v1820
    %v2373 = vunpack.c.l.b16 %v1821
    %v2374 = vunpack.c.l.b16 %v1822
    %v2375 = vunpack.c.l.b16 %v1823
    %v2376 = vunpack.c.l.b16 %v1824
    %v2377 = vunpack.c.l.b16 %v1825
    %v2378 = vunpack.c.l.b16 %v1826
    %v2379 = vunpack.c.l.b16 %v1827
    %v2380 = vunpack.c.l.b16 %v1828
    %v2381 = vunpack.c.l.b16 %v1829
    %v2382 = vunpack.c.l.b16 %v1830
    %v2383 = vunpack.c.l.b16 %v1831
    %v2384 = vunpack.c.l.b16 %v1832
    %v2385 = vunpack.c.l.b16 %v1833
    %v2386 = vunpack.c.l.b16 %v1834
    %v2387 = vunpack.c.l.b16 %v1835
    %v2388 = vunpack.c.l.b16 %v1836
    %v2389 = vunpack.c.l.b16 %v1837
    %v2390 = vunpack.c.l.b16 %v1838
    %v2391 = vunpack.c.l.b16 %v1839
    %v2392 = vunpack.c.l.b16 %v1840
    %v2393 = vunpack.c.l.b16 %v1841
    %v2394 = vunpack.c.l.b16 %v1842
    %v2395 = vunpack.c.l.b16 %v1843
    %v2396 = vunpack.c.l.b16 %v1844
    %v2397 = vunpack.c.l.b16 %v1845
    %v2398 = vunpack.c.l.b16 %v1846
    %v2399 = vunpack.c.l.b16 %v1847
    %v2400 = vunpack.c.l.b16 %v1848
    %v2401 = vunpack.c.l.b16 %v1849
    %v2402 = vunpack.c.l.b16 %v1850
    %v2403 = vunpack.c.l.b16 %v1851
    %v2404 = vunpack.c.l.b16 %v1852
    %v2405 = vunpack.c.l.b16 %v1853
    %v2406 = vunpack.c.l.b16 %v1854
    %v2407 = vunpack.c.l.b16 %v1855
    %v2408 = vunpack.c.l.b16 %v1856
    %v2409 = vunpack.c.l.b16 %v1857
    %v2410 = vpack.c.b16 %v2155, %v2154
    %v2411 = vpack.c.b16 %v2157, %v2156
    %v2412 = vpack.c.b16 %v2159, %v2158
    %v2413 = vpack.c.b16 %v2161, %v2160
    %v2414 = vpack.c.b16 %v2163, %v2162
    %v2415 = vpack.c.b16 %v2165, %v2164
    %v2416 = vpack.c.b16 %v2167, %v2166
    %v2417 = vpack.c.b16 %v2169, %v2168
    %v2418 = vpack.c.b16 %v2171, %v2170
    %v2419 = vpack.c.b16 %v2173, %v2172
    %v2420 = vpack.c.b16 %v2175, %v2174
    %v2421 = vpack.c.b16 %v2177, %v2176
    %v2422 = vpack.c.b16 %v2179, %v2178
    %v2423 = vpack.c.b16 %v2181, %v2180
    %v2424 = vpack.c.b16 %v2183, %v2182
    %v2425 = vpack.c.b16 %v2185, %v2184
    %v2426 = vpack.c.b16 %v2187, %v2186
    %v2427 = vpack.c.b16 %v2189, %v2188
    %v2428 = vpack.c.b16 %v2191, %v2190
    %v2429 = vpack.c.b16 %v2193, %v2192
    %v2430 = vpack.c.b16 %v2195, %v2194
    %v2431 = vpack.c.b16 %v2197, %v2196
    %v2432 = vpack.c.b16 %v2199, %v2198
    %v2433 = vpack.c.b16 %v2201, %v2200
    %v2434 = vpack.c.b16 %v2203, %v2202
    %v2435 = vpack.c.b16 %v2205, %v2204
    %v2436 = vpack.c.b16 %v2207, %v2206
    %v2437 = vpack.c.b16 %v2209, %v2208
    %v2438 = vpack.c.b16 %v2211, %v2210
    %v2439 = vpack.c.b16 %v2213, %v2212
    %v2440 = vpack.c.b16 %v2215, %v2214
    %v2441 = vpack.c.b16 %v2217, %v2216
    %v2442 = vpack.c.b16 %v2219, %v2218
    %v2443 = vpack.c.b16 %v2221, %v2220
    %v2444 = vpack.c.b16 %v2223, %v2222
    %v2445 = vpack.c.b16 %v2225, %v2224
    %v2446 = vpack.c.b16 %v2227, %v2226
    %v2447 = vpack.c.b16 %v2229, %v2228
    %v2448 = vpack.c.b16 %v2231, %v2230
    %v2449 = vpack.c.b16 %v2233, %v2232
    %v2450 = vpack.c.b16 %v2235, %v2234
    %v2451 = vpack.c.b16 %v2237, %v2236
    %v2452 = vpack.c.b16 %v2239, %v2238
    %v2453 = vpack.c.b16 %v2241, %v2240
    %v2454 = vpack.c.b16 %v2243, %v2242
    %v2455 = vpack.c.b16 %v2245, %v2244
    %v2456 = vpack.c.b16 %v2247, %v2246
    %v2457 = vpack.c.b16 %v2249, %v2248
    %v2458 = vpack.c.b16 %v2251, %v2250
    %v2459 = vpack.c.b16 %v2253, %v2252
    %v2460 = vpack.c.b16 %v2255, %v2254
    %v2461 = vpack.c.b16 %v2257, %v2256
    %v2462 = vpack.c.b16 %v2259, %v2258
    %v2463 = vpack.c.b16 %v2261, %v2260
    %v2464 = vpack.c.b16 %v2263, %v2262
    %v2465 = vpack.c.b16 %v2265, %v2264
    %v2466 = vpack.c.b16 %v2267, %v2266
    %v2467 = vpack.c.b16 %v2269, %v2268
    %v2468 = vpack.c.b16 %v2271, %v2270
    %v2469 = vpack.c.b16 %v2273, %v2272
    %v2470 = vpack.c.b16 %v2275, %v2274
    %v2471 = vpack.c.b16 %v2277, %v2276
    %v2472 = vpack.c.b16 %v2279, %v2278
    %v2473 = vpack.c.b16 %v2281, %v2280
    %v2474 = vpack.c.b16 %v2283, %v2282
    %v2475 = vpack.c.b16 %v2285, %v2284
    %v2476 = vpack.c.b16 %v2287, %v2286
    %v2477 = vpack.c.b16 %v2289, %v2288
    %v2478 = vpack.c.b16 %v2291, %v2290
    %v2479 = vpack.c.b16 %v2293, %v2292
    %v2480 = vpack.c.b16 %v2295, %v2294
    %v2481 = vpack.c.b16 %v2297, %v2296
    %v2482 = vpack.c.b16 %v2299, %v2298
    %v2483 = vpack.c.b16 %v2301, %v2300
    %v2484 = vpack.c.b16 %v2303, %v2302
    %v2485 = vpack.c.b16 %v2305, %v2304
    %v2486 = vpack.c.b16 %v2307, %v2306
    %v2487 = vpack.c.b16 %v2309, %v2308
    %v2488 = vpack.c.b16 %v2311, %v2310
    %v2489 = vpack.c.b16 %v2313, %v2312
    %v2490 = vpack.c.b16 %v2315, %v2314
    %v2491 = vpack.c.b16 %v2317, %v2316
    %v2492 = vpack.c.b16 %v2319, %v2318
    %v2493 = vpack.c.b16 %v2321, %v2320
    %v2494 = vpack.c.b16 %v2323, %v2322
    %v2495 = vpack.c.b16 %v2325, %v2324
    %v2496 = vpack.c.b16 %v2327, %v2326
    %v2497 = vpack.c.b16 %v2329, %v2328
    %v2498 = vpack.c.b16 %v2331, %v2330
    %v2499 = vpack.c.b16 %v2333, %v2332
    %v2500 = vpack.c.b16 %v2335, %v2334
    %v2501 = vpack.c.b16 %v2337, %v2336
    %v2502 = vpack.c.b16 %v2339, %v2338
    %v2503 = vpack.c.b16 %v2341, %v2340
    %v2504 = vpack.c.b16 %v2343, %v2342
    %v2505 = vpack.c.b16 %v2345, %v2344
    %v2506 = vpack.c.b16 %v2347, %v2346
    %v2507 = vpack.c.b16 %v2349, %v2348
    %v2508 = vpack.c.b16 %v2351, %v2350
    %v2509 = vpack.c.b16 %v2353, %v2352
    %v2510 = vpack.c.b16 %v2355, %v2354
    %v2511 = vpack.c.b16 %v2357, %v2356
    %v2512 = vpack.c.b16 %v2359, %v2358
    %v2513 = vpack.c.b16 %v2361, %v2360
    %v2514 = vpack.c.b16 %v2363, %v2362
    %v2515 = vpack.c.b16 %v2365, %v2364
    %v2516 = vpack.c.b16 %v2367, %v2366
    %v2517 = vpack.c.b16 %v2369, %v2368
    %v2518 = vpack.c.b16 %v2371, %v2370
    %v2519 = vpack.c.b16 %v2373, %v2372
    %v2520 = vpack.c.b16 %v2375, %v2374
    %v2521 = vpack.c.b16 %v2377, %v2376
    %v2522 = vpack.c.b16 %v2379, %v2378
    %v2523 = vpack.c.b16 %v2381, %v2380
    %v2524 = vpack.c.b16 %v2383, %v2382
    %v2525 = vpack.c.b16 %v2385, %v2384
    %v2526 = vpack.c.b16 %v2387, %v2386
    %v2527 = vpack.c.b16 %v2389, %v2388
    %v2528 = vpack.c.b16 %v2391, %v2390
    %v2529 = vpack.c.b16 %v2393, %v2392
    %v2530 = vpack.c.b16 %v2395, %v2394
    %v2531 = vpack.c.b16 %v2397, %v2396
    %v2532 = vpack.c.b16 %v2399, %v2398
    %v2533 = vpack.c.b16 %v2401, %v2400
    %v2534 = vpack.c.b16 %v2403, %v2402
    %v2535 = vpack.c.b16 %v2405, %v2404
    %v2536 = vpack.c.b16 %v2407, %v2406
    %v2537 = vpack.c.b16 %v2409, %v2408
    %2666 = vmatpush.bf16.msra.mxu0 %v2417
    %2667 = vmatpush.bf16.msra.mxu0 %v2416
    %2668 = vmatpush.bf16.msra.mxu0 %v2415
    %2669 = vmatpush.bf16.msra.mxu0 %v2414
    %2670 = vmatpush.bf16.msra.mxu0 %v2413
    %2671 = vmatpush.bf16.msra.mxu0 %v2412
    %2672 = vmatpush.bf16.msra.mxu0 %v2411
    %2673 = vmatpush.bf16.msra.mxu0 %v2410
    %2674 = vmatmul.bf16.gmra.mxu0 %v1864
    %v2675 = vpop.f32.mrf.mxu0
    %v2676 = vadd.f32 %v1860, %v2675
    %v2677 = vpop.f32.mrf.mxu0
    %2678 = vdwg.mxu0
    %2679 = vmatpush.bf16.msra.mxu0 %v2425
    %2680 = vmatpush.bf16.msra.mxu0 %v2424
    %2681 = vmatpush.bf16.msra.mxu0 %v2423
    %2682 = vmatpush.bf16.msra.mxu0 %v2422
    %2683 = vmatpush.bf16.msra.mxu0 %v2421
    %2684 = vmatpush.bf16.msra.mxu0 %v2420
    %2685 = vmatpush.bf16.msra.mxu0 %v2419
    %2686 = vmatpush.bf16.msra.mxu0 %v2418
    %2687 = vmatmul.bf16.gmra.mxu0 %v1865
    %v2688 = vpop.f32.mrf.mxu0
    %v2689 = vadd.f32 %v2676, %v2688
    %v2690 = vpop.f32.mrf.mxu0
    %2691 = vdwg.mxu0
    %2692 = vmatpush.bf16.msra.mxu0 %v2433
    %2693 = vmatpush.bf16.msra.mxu0 %v2432
    %2694 = vmatpush.bf16.msra.mxu0 %v2431
    %2695 = vmatpush.bf16.msra.mxu0 %v2430
    %2696 = vmatpush.bf16.msra.mxu0 %v2429
    %2697 = vmatpush.bf16.msra.mxu0 %v2428
    %2698 = vmatpush.bf16.msra.mxu0 %v2427
    %2699 = vmatpush.bf16.msra.mxu0 %v2426
    %2700 = vmatmul.bf16.gmra.mxu0 %v1866
    %v2701 = vpop.f32.mrf.mxu0
    %v2702 = vadd.f32 %v2689, %v2701
    %v2703 = vpop.f32.mrf.mxu0
    %2704 = vdwg.mxu0
    %2705 = vmatpush.bf16.msra.mxu0 %v2441
    %2706 = vmatpush.bf16.msra.mxu0 %v2440
    %2707 = vmatpush.bf16.msra.mxu0 %v2439
    %2708 = vmatpush.bf16.msra.mxu0 %v2438
    %2709 = vmatpush.bf16.msra.mxu0 %v2437
    %2710 = vmatpush.bf16.msra.mxu0 %v2436
    %2711 = vmatpush.bf16.msra.mxu0 %v2435
    %2712 = vmatpush.bf16.msra.mxu0 %v2434
    %2713 = vmatmul.bf16.gmra.mxu0 %v1867
    %v2714 = vpop.f32.mrf.mxu0
    %v2715 = vadd.f32 %v2702, %v2714
    %v2716 = vpop.f32.mrf.mxu0
    %2717 = vdwg.mxu0
    %2718 = vmatpush.bf16.msra.mxu0 %v2449
    %2719 = vmatpush.bf16.msra.mxu0 %v2448
    %2720 = vmatpush.bf16.msra.mxu0 %v2447
    %2721 = vmatpush.bf16.msra.mxu0 %v2446
    %2722 = vmatpush.bf16.msra.mxu0 %v2445
    %2723 = vmatpush.bf16.msra.mxu0 %v2444
    %2724 = vmatpush.bf16.msra.mxu0 %v2443
    %2725 = vmatpush.bf16.msra.mxu0 %v2442
    %2726 = vmatmul.bf16.gmra.mxu0 %v1868
    %v2727 = vpop.f32.mrf.mxu0
    %v2728 = vadd.f32 %v2715, %v2727
    %v2729 = vpop.f32.mrf.mxu0
    %2730 = vdwg.mxu0
    %2731 = vmatpush.bf16.msra.mxu0 %v2457
    %2732 = vmatpush.bf16.msra.mxu0 %v2456
    %2733 = vmatpush.bf16.msra.mxu0 %v2455
    %2734 = vmatpush.bf16.msra.mxu0 %v2454
    %2735 = vmatpush.bf16.msra.mxu0 %v2453
    %2736 = vmatpush.bf16.msra.mxu0 %v2452
    %2737 = vmatpush.bf16.msra.mxu0 %v2451
    %2738 = vmatpush.bf16.msra.mxu0 %v2450
    %2739 = vmatmul.bf16.gmra.mxu0 %v1869
    %v2740 = vpop.f32.mrf.mxu0
    %v2741 = vadd.f32 %v2728, %v2740
    %v2742 = vpop.f32.mrf.mxu0
    %2743 = vdwg.mxu0
    %2744 = vmatpush.bf16.msra.mxu0 %v2465
    %2745 = vmatpush.bf16.msra.mxu0 %v2464
    %2746 = vmatpush.bf16.msra.mxu0 %v2463
    %2747 = vmatpush.bf16.msra.mxu0 %v2462
    %2748 = vmatpush.bf16.msra.mxu0 %v2461
    %2749 = vmatpush.bf16.msra.mxu0 %v2460
    %2750 = vmatpush.bf16.msra.mxu0 %v2459
    %2751 = vmatpush.bf16.msra.mxu0 %v2458
    %2752 = vmatmul.bf16.gmra.mxu0 %v1870
    %v2753 = vpop.f32.mrf.mxu0
    %v2754 = vadd.f32 %v2741, %v2753
    %v2755 = vpop.f32.mrf.mxu0
    %2756 = vdwg.mxu0
    %2757 = vmatpush.bf16.msra.mxu0 %v2473
    %2758 = vmatpush.bf16.msra.mxu0 %v2472
    %2759 = vmatpush.bf16.msra.mxu0 %v2471
    %2760 = vmatpush.bf16.msra.mxu0 %v2470
    %2761 = vmatpush.bf16.msra.mxu0 %v2469
    %2762 = vmatpush.bf16.msra.mxu0 %v2468
    %2763 = vmatpush.bf16.msra.mxu0 %v2467
    %2764 = vmatpush.bf16.msra.mxu0 %v2466
    %2765 = vmatmul.bf16.gmra.mxu0 %v1871
    %v2766 = vpop.f32.mrf.mxu0
    %v2767 = vadd.f32 %v2754, %v2766
    %v2768 = vpop.f32.mrf.mxu0
    %2769 = vdwg.mxu0
    %2770 = vmatpush.bf16.msra.mxu0 %v2481
    %2771 = vmatpush.bf16.msra.mxu0 %v2480
    %2772 = vmatpush.bf16.msra.mxu0 %v2479
    %2773 = vmatpush.bf16.msra.mxu0 %v2478
    %2774 = vmatpush.bf16.msra.mxu0 %v2477
    %2775 = vmatpush.bf16.msra.mxu0 %v2476
    %2776 = vmatpush.bf16.msra.mxu0 %v2475
    %2777 = vmatpush.bf16.msra.mxu0 %v2474
    %2778 = vmatmul.bf16.gmra.mxu0 %v1874
    %v2779 = vpop.f32.mrf.mxu0
    %v2780 = vadd.f32 %v2767, %v2779
    %v2781 = vpop.f32.mrf.mxu0
    %2782 = vdwg.mxu0
    %2783 = vmatpush.bf16.msra.mxu0 %v2489
    %2784 = vmatpush.bf16.msra.mxu0 %v2488
    %2785 = vmatpush.bf16.msra.mxu0 %v2487
    %2786 = vmatpush.bf16.msra.mxu0 %v2486
    %2787 = vmatpush.bf16.msra.mxu0 %v2485
    %2788 = vmatpush.bf16.msra.mxu0 %v2484
    %2789 = vmatpush.bf16.msra.mxu0 %v2483
    %2790 = vmatpush.bf16.msra.mxu0 %v2482
    %2791 = vmatmul.bf16.gmra.mxu0 %v1875
    %v2792 = vpop.f32.mrf.mxu0
    %v2793 = vadd.f32 %v2780, %v2792
    %v2794 = vpop.f32.mrf.mxu0
    %2795 = vdwg.mxu0
    %2796 = vmatpush.bf16.msra.mxu0 %v2497
    %2797 = vmatpush.bf16.msra.mxu0 %v2496
    %2798 = vmatpush.bf16.msra.mxu0 %v2495
    %2799 = vmatpush.bf16.msra.mxu0 %v2494
    %2800 = vmatpush.bf16.msra.mxu0 %v2493
    %2801 = vmatpush.bf16.msra.mxu0 %v2492
    %2802 = vmatpush.bf16.msra.mxu0 %v2491
    %2803 = vmatpush.bf16.msra.mxu0 %v2490
    %2804 = vmatmul.bf16.gmra.mxu0 %v1876
    %v2805 = vpop.f32.mrf.mxu0
    %v2806 = vadd.f32 %v2793, %v2805
    %v2807 = vpop.f32.mrf.mxu0
    %2808 = vdwg.mxu0
    %2809 = vmatpush.bf16.msra.mxu0 %v2505
    %2810 = vmatpush.bf16.msra.mxu0 %v2504
    %2811 = vmatpush.bf16.msra.mxu0 %v2503
    %2812 = vmatpush.bf16.msra.mxu0 %v2502
    %2813 = vmatpush.bf16.msra.mxu0 %v2501
    %2814 = vmatpush.bf16.msra.mxu0 %v2500
    %2815 = vmatpush.bf16.msra.mxu0 %v2499
    %2816 = vmatpush.bf16.msra.mxu0 %v2498
    %2817 = vmatmul.bf16.gmra.mxu0 %v1877
    %v2818 = vpop.f32.mrf.mxu0
    %v2819 = vadd.f32 %v2806, %v2818
    %v2820 = vpop.f32.mrf.mxu0
    %2821 = vdwg.mxu0
    %2822 = vmatpush.bf16.msra.mxu0 %v2513
    %2823 = vmatpush.bf16.msra.mxu0 %v2512
    %2824 = vmatpush.bf16.msra.mxu0 %v2511
    %2825 = vmatpush.bf16.msra.mxu0 %v2510
    %2826 = vmatpush.bf16.msra.mxu0 %v2509
    %2827 = vmatpush.bf16.msra.mxu0 %v2508
    %2828 = vmatpush.bf16.msra.mxu0 %v2507
    %2829 = vmatpush.bf16.msra.mxu0 %v2506
    %2830 = vmatmul.bf16.gmra.mxu0 %v1878
    %v2831 = vpop.f32.mrf.mxu0
    %v2832 = vadd.f32 %v2819, %v2831
    %v2833 = vpop.f32.mrf.mxu0
    %2834 = vdwg.mxu0
    %2835 = vmatpush.bf16.msra.mxu0 %v2521
    %2836 = vmatpush.bf16.msra.mxu0 %v2520
    %2837 = vmatpush.bf16.msra.mxu0 %v2519
    %2838 = vmatpush.bf16.msra.mxu0 %v2518
    %2839 = vmatpush.bf16.msra.mxu0 %v2517
    %2840 = vmatpush.bf16.msra.mxu0 %v2516
    %2841 = vmatpush.bf16.msra.mxu0 %v2515
    %2842 = vmatpush.bf16.msra.mxu0 %v2514
    %2843 = vmatmul.bf16.gmra.mxu0 %v1879
    %v2844 = vpop.f32.mrf.mxu0
    %v2845 = vadd.f32 %v2832, %v2844
    %v2846 = vpop.f32.mrf.mxu0
    %2847 = vdwg.mxu0
    %2848 = vmatpush.bf16.msra.mxu0 %v2529
    %2849 = vmatpush.bf16.msra.mxu0 %v2528
    %2850 = vmatpush.bf16.msra.mxu0 %v2527
    %2851 = vmatpush.bf16.msra.mxu0 %v2526
    %2852 = vmatpush.bf16.msra.mxu0 %v2525
    %2853 = vmatpush.bf16.msra.mxu0 %v2524
    %2854 = vmatpush.bf16.msra.mxu0 %v2523
    %2855 = vmatpush.bf16.msra.mxu0 %v2522
    %2856 = vmatmul.bf16.gmra.mxu0 %v1880
    %v2857 = vpop.f32.mrf.mxu0
    %v2858 = vadd.f32 %v2845, %v2857
    %v2859 = vpop.f32.mrf.mxu0
    %2860 = vdwg.mxu0
    %2861 = vmatpush.bf16.msra.mxu0 %v2537
    %2862 = vmatpush.bf16.msra.mxu0 %v2536
    %2863 = vmatpush.bf16.msra.mxu0 %v2535
    %2864 = vmatpush.bf16.msra.mxu0 %v2534
    %2865 = vmatpush.bf16.msra.mxu0 %v2533
    %2866 = vmatpush.bf16.msra.mxu0 %v2532
    %2867 = vmatpush.bf16.msra.mxu0 %v2531
    %2868 = vmatpush.bf16.msra.mxu0 %v2530
    %2869 = vmatmul.bf16.gmra.mxu0 %v1881
    %v2870 = vpop.f32.mrf.mxu0
    %v2871 = vadd.f32 %v2858, %v2870
    %v2872 = vpop.f32.mrf.mxu0
    %2873 = vdwg.mxu0
    %v2874 = vmax.f32 %v2871, 0.0
    %v2875 = vpack.c.bf16 %v2874, %v2874
    %v2876 = vld [vmem:[#allocation14] sm:$0xf]
    %v2877 = vld [vmem:[#allocation14 + $0x4] sm:$0xf]
    %v2878 = vld [vmem:[#allocation14 + $0x8] sm:$0xf]
    %v2879 = vld [vmem:[#allocation14 + $0xc] sm:$0xf]
    %v2880 = vld [vmem:[#allocation14 + $0x10] sm:$0xf]
    %v2881 = vld [vmem:[#allocation14 + $0x14] sm:$0xf]
    %v2882 = vld [vmem:[#allocation14 + $0x18] sm:$0xf]
    %v2883 = vld [vmem:[#allocation14 + $0x1c] sm:$0xf]
    %v2884 = vld [vmem:[#allocation14 + $0x20] sm:$0xf]
    %v2885 = vld [vmem:[#allocation14 + $0x24] sm:$0xf]
    %v2886 = vld [vmem:[#allocation14 + $0x28] sm:$0xf]
    %v2887 = vld [vmem:[#allocation14 + $0x2c] sm:$0xf]
    %v2888 = vld [vmem:[#allocation14 + $0x30] sm:$0xf]
    %v2889 = vld [vmem:[#allocation14 + $0x34] sm:$0xf]
    %v2890 = vld [vmem:[#allocation14 + $0x38] sm:$0xf]
    %v2891 = vld [vmem:[#allocation14 + $0x3c] sm:$0xf]
    %v2892 = vld [vmem:[%s10] sm:$0x1]
    %v2894 = vperm.slane %v2892, 0
    %v2912 = vunpack.c.l.b16 %v2876
    %v2913 = vunpack.c.l.b16 %v2877
    %v2914 = vunpack.c.l.b16 %v2878
    %v2915 = vunpack.c.l.b16 %v2879
    %v2916 = vunpack.c.l.b16 %v2880
    %v2917 = vunpack.c.l.b16 %v2881
    %v2918 = vunpack.c.l.b16 %v2882
    %v2919 = vunpack.c.l.b16 %v2883
    %v2920 = vunpack.c.l.b16 %v2884
    %v2921 = vunpack.c.l.b16 %v2885
    %v2922 = vunpack.c.l.b16 %v2886
    %v2923 = vunpack.c.l.b16 %v2887
    %v2924 = vunpack.c.l.b16 %v2888
    %v2925 = vunpack.c.l.b16 %v2889
    %v2926 = vunpack.c.l.b16 %v2890
    %v2927 = vunpack.c.l.b16 %v2891
    %v2928 = vpack.c.b16 %v2913, %v2912
    %v2929 = vpack.c.b16 %v2915, %v2914
    %v2930 = vpack.c.b16 %v2917, %v2916
    %v2931 = vpack.c.b16 %v2919, %v2918
    %v2932 = vpack.c.b16 %v2921, %v2920
    %v2933 = vpack.c.b16 %v2923, %v2922
    %v2934 = vpack.c.b16 %v2925, %v2924
    %v2935 = vpack.c.b16 %v2927, %v2926
    %2944 = vmatpush.bf16.msra.mxu0 %v2935
    %2945 = vmatpush.bf16.msra.mxu0 %v2934
    %2946 = vmatpush.bf16.msra.mxu0 %v2933
    %2947 = vmatpush.bf16.msra.mxu0 %v2932
    %2948 = vmatpush.bf16.msra.mxu0 %v2931
    %2949 = vmatpush.bf16.msra.mxu0 %v2930
    %2950 = vmatpush.bf16.msra.mxu0 %v2929
    %2951 = vmatpush.bf16.msra.mxu0 %v2928
    %2952 = vmatmul.bf16.gmra.mxu0 %v2875
    %v2953 = vpop.f32.mrf.mxu0
    %v2954 = vadd.f32 %v2894, %v2953
    %v2955 = vpop.f32.mrf.mxu0
    %2956 = vdwg.mxu0
    %v2957 = vmax.f32 %v2954, 0.0
    %v2958 = vpack.c.bf16 %v2957, %v2957
    %v2959 = vld [vmem:[#allocation15] sm:$0xf]
    %v2960 = vld [vmem:[#allocation15 + $0x4] sm:$0xf]
    %v2961 = vld [vmem:[#allocation15 + $0x8] sm:$0xf]
    %v2962 = vld [vmem:[#allocation15 + $0xc] sm:$0xf]
    %v2963 = vld [vmem:[#allocation15 + $0x10] sm:$0xf]
    %v2964 = vld [vmem:[#allocation15 + $0x14] sm:$0xf]
    %v2965 = vld [vmem:[#allocation15 + $0x18] sm:$0xf]
    %v2966 = vld [vmem:[#allocation15 + $0x1c] sm:$0xf]
    %v2967 = vld [vmem:[#allocation15 + $0x20] sm:$0xf]
    %v2968 = vld [vmem:[#allocation15 + $0x24] sm:$0xf]
    %v2969 = vld [vmem:[#allocation15 + $0x28] sm:$0xf]
    %v2970 = vld [vmem:[#allocation15 + $0x2c] sm:$0xf]
    %v2971 = vld [vmem:[#allocation15 + $0x30] sm:$0xf]
    %v2972 = vld [vmem:[#allocation15 + $0x34] sm:$0xf]
    %v2973 = vld [vmem:[#allocation15 + $0x38] sm:$0xf]
    %v2974 = vld [vmem:[#allocation15 + $0x3c] sm:$0xf]
    %v2975 = vld [vmem:[%s12] sm:$0x1]
    %v2977 = vperm.slane %v2975, 0
    %v2995 = vunpack.c.l.b16 %v2959
    %v2996 = vunpack.c.l.b16 %v2960
    %v2997 = vunpack.c.l.b16 %v2961
    %v2998 = vunpack.c.l.b16 %v2962
    %v2999 = vunpack.c.l.b16 %v2963
    %v3000 = vunpack.c.l.b16 %v2964
    %v3001 = vunpack.c.l.b16 %v2965
    %v3002 = vunpack.c.l.b16 %v2966
    %v3003 = vunpack.c.l.b16 %v2967
    %v3004 = vunpack.c.l.b16 %v2968
    %v3005 = vunpack.c.l.b16 %v2969
    %v3006 = vunpack.c.l.b16 %v2970
    %v3007 = vunpack.c.l.b16 %v2971
    %v3008 = vunpack.c.l.b16 %v2972
    %v3009 = vunpack.c.l.b16 %v2973
    %v3010 = vunpack.c.l.b16 %v2974
    %v3011 = vpack.c.b16 %v2996, %v2995
    %v3012 = vpack.c.b16 %v2998, %v2997
    %v3013 = vpack.c.b16 %v3000, %v2999
    %v3014 = vpack.c.b16 %v3002, %v3001
    %v3015 = vpack.c.b16 %v3004, %v3003
    %v3016 = vpack.c.b16 %v3006, %v3005
    %v3017 = vpack.c.b16 %v3008, %v3007
    %v3018 = vpack.c.b16 %v3010, %v3009
    %3027 = vmatpush.bf16.msra.mxu0 %v3018
    %3028 = vmatpush.bf16.msra.mxu0 %v3017
    %3029 = vmatpush.bf16.msra.mxu0 %v3016
    %3030 = vmatpush.bf16.msra.mxu0 %v3015
    %3031 = vmatpush.bf16.msra.mxu0 %v3014
    %3032 = vmatpush.bf16.msra.mxu0 %v3013
    %3033 = vmatpush.bf16.msra.mxu0 %v3012
    %3034 = vmatpush.bf16.msra.mxu0 %v3011
    %3035 = vmatmul.bf16.gmra.mxu0 %v2958
    %v3036 = vpop.f32.mrf.mxu0
    %v3037 = vadd.f32 %v2977, %v3036
    %v3038 = vpop.f32.mrf.mxu0
    %3039 = vdwg.mxu0
    %3040 = vst [vmem:[%s13] sm:$0x3] %v3037
    // Predicated region
    $region86: #{fried_conv_forward.1} parent=1 // pred_check
      _
    $region87: #{fried_conv_forward.1} parent=1 // pred_check_branch
      %3042 = sbr.rel (0) target = $region89
    $region88: #{fried_conv_forward.1} parent=1 // pred_region
      _
    $region89: #{fried_conv_forward.1} parent=1 // pred_fallthru
      _
    // Predicated region
    $region90: #{fried_conv_forward.1} parent=1 // pred_check
      _
    $region91: #{fried_conv_forward.1} parent=1 // pred_check_branch
      %3044 = sbr.rel (0) target = $region93
    $region92: #{fried_conv_forward.1} parent=1 // pred_region
      _
    $region93: #{fried_conv_forward.1} parent=1 // pred_fallthru
      _
    %3045 = vsyncpa [#allocation5], 1
    %3046 = vsyncpa [#allocation7], 1
    %3047 = vsyncpa [#allocation10], 1
    %3048 = vsyncpa [#allocation13], 1
    %3049 = vsyncpa [#allocation16], 1

</llo_original>
